<compile_context>
chip_gen: v7x
topology: tpu7x:2x2x1
jax: 0.10.0
libtpu: 0.0.40
codegen_flags: <defaults>
</compile_context>

<pallas_src>
import functools

import jax
import jax.numpy as jnp
import numpy as np
from jax.experimental import pallas as pl
from jax.experimental.pallas import tpu as pltpu

N_ATOMS = 51
Vmax = 10
Vmin = -10
DELTA_Z = (Vmax - Vmin) / (N_ATOMS - 1)
HIDDEN = 256

_COMPILER_PARAMS = pltpu.CompilerParams(
    dimension_semantics=("parallel",),       # batch tiles -> both v7x cores
    vmem_limit_bytes=32 * 1024 * 1024,       # near default; tiles are small
)


def _round_up(x, m):
    return ((x + m - 1) // m) * m


def _pick_batch_tile(batch):
    """Largest divisor of `batch` <= 8 that still leaves >= 4 grid steps
    (so v7x's two TensorCores both get several tiles); 1 for tiny batches."""
    cap = min(8, max(1, batch // 4))
    tb = 1
    for d in range(1, cap + 1):
        if batch % d == 0:
            tb = d
    return tb


# ----------------------------------------------------------------------------
# Pallas kernels
# ----------------------------------------------------------------------------
def _conv_kernel(x_ref, w_ref, b_ref, o_ref, *, tb, khp, oh):
    """One batch tile of a valid conv, phase-decomposed to stride 1.

    x_ref: (tb, Hs, Ws*Cs)        bf16  space-to-depth'd input rows
    w_ref: (khp, Ws*Cs, OW*Cout)  bf16  resident block-Toeplitz weight / offset
    b_ref: (1, OW*Cout)           f32   bias tiled over OW
    o_ref: (tb, OH, OW*Cout)      bf16  lane-dense output slab
    """
    bias = b_ref[...]
    for t in range(tb):                      # short static unroll
        acc = None
        for di in range(khp):                # row offsets of the reduced kernel
            win = x_ref[t, di:di + oh, :]    # (OH, Ws*Cs) shifted window
            part = jnp.dot(win, w_ref[di],
                           preferred_element_type=jnp.float32)
            acc = part if acc is None else acc + part
        o_ref[t] = jnp.maximum(acc + bias, 0.0).astype(o_ref.dtype)


def _head_kernel(f_ref, w1_ref, b1_ref, wv2_ref, bv2_ref, wa2_ref, ba2_ref,
                 mmean_ref, mtile_ref, o_ref, *, inv_actions):
    """Fused dueling distributional head (lane-padded fc2 widths stay zero)."""
    f = f_ref[...]                                             # (tb, kf) bf16
    h = jnp.maximum(
        jnp.dot(f, w1_ref[...], preferred_element_type=jnp.float32)
        + b1_ref[...], 0.0)                                    # (tb, 512)
    hv = h[:, :HIDDEN].astype(jnp.bfloat16)
    ha = h[:, HIDDEN:].astype(jnp.bfloat16)
    val = jnp.dot(hv, wv2_ref[...],
                  preferred_element_type=jnp.float32) + bv2_ref[...]   # (tb,128)
    adv = jnp.dot(ha, wa2_ref[...],
                  preferred_element_type=jnp.float32) + ba2_ref[...]   # (tb,384)
    # Per-atom sum over actions and broadcast back as small f32 matmuls; the
    # 1/n_actions scale is applied in f32 (matches the reference combine).
    adv_mean = jnp.dot(adv, mmean_ref[...],
                       preferred_element_type=jnp.float32) * inv_actions
    corr = jnp.dot(val - adv_mean, mtile_ref[...],
                   preferred_element_type=jnp.float32)
    o_ref[...] = adv + corr


# ----------------------------------------------------------------------------
# Wrappers (glue: space-to-depth, batch tiling, padding removal)
# ----------------------------------------------------------------------------
def conv_layer_pallas(x_nhwc, layer):
    """Valid conv + ReLU, no im2col / patches tensor in HBM."""
    B, H, W, C = x_nhwc.shape
    assert (H, W, C) == (layer["Hin"], layer["Win"], layer["Cin"])
    s = layer["s"]
    Hs, Ws, Cs = layer["Hs"], layer["Ws"], layer["Cs"]
    OH, OW, Cout, khp = layer["OH"], layer["OW"], layer["Cout"], layer["khp"]

    # Stride-phase space-to-depth: one relayout pass (pure reshape for s == 1).
    if s > 1:
        x = x_nhwc[:, :Hs * s, :Ws * s, :].reshape(B, Hs, s, Ws, s, C)
        x = jnp.transpose(x, (0, 1, 3, 2, 4, 5))
        x2 = x.reshape(B, Hs, Ws * Cs)
    else:
        x2 = x_nhwc.reshape(B, Hs, Ws * Cs)

    tb = _pick_batch_tile(B)
    n_lanes = OW * Cout
    flops = int(2 * B * khp * OH * (Ws * Cs) * n_lanes)
    bytes_accessed = int(B * Hs * Ws * Cs * 2 + khp * Ws * Cs * n_lanes * 2
                         + n_lanes * 4 + B * OH * n_lanes * 2)

    # TODO(synk): for very large spatial maps also tile OH/OW (the Toeplitz
    # weight grows with Ws*OW); Atari-sized maps keep it at a few MiB.
    out = pl.pallas_call(
        functools.partial(_conv_kernel, tb=tb, khp=khp, oh=OH),
        out_shape=jax.ShapeDtypeStruct((B, OH, n_lanes), jnp.bfloat16),
        grid=(B // tb,),
        in_specs=[
            pl.BlockSpec((tb, Hs, Ws * Cs), lambda i: (i, 0, 0)),      # stream
            pl.BlockSpec((khp, Ws * Cs, n_lanes), lambda i: (0, 0, 0)),  # resident
            pl.BlockSpec((1, n_lanes), lambda i: (0, 0)),                # resident
        ],
        out_specs=pl.BlockSpec((tb, OH, n_lanes), lambda i: (i, 0, 0)),
        compiler_params=_COMPILER_PARAMS,
        cost_estimate=pl.CostEstimate(flops=flops, transcendentals=0,
                                      bytes_accessed=bytes_accessed),
    )(x2, layer["w"], layer["b"])

    return out.reshape(B, OH, OW, Cout)


def head_pallas(f, prep):
    """Fused dueling head, batch-tiled, all weights resident in VMEM."""
    n_actions = prep["n_actions"]
    nap, vp = prep["nap"], prep["vp"]
    B, kf = f.shape
    assert kf == prep["kf"]

    if B <= 128:
        tb, b_pad = B, B
    else:
        tb = 128
        b_pad = _round_up(B, tb)
        if b_pad != B:
            f = jnp.pad(f, ((0, b_pad - B), (0, 0)))

    def resident(shape):
        return pl.BlockSpec(shape, lambda i: (0, 0))

    flops = int(2 * b_pad * (kf * 2 * HIDDEN + HIDDEN * (vp + nap)
                             + 2 * nap * vp))
    bytes_accessed = int(b_pad * kf * 2 + kf * 2 * HIDDEN * 2
                         + HIDDEN * (vp + nap) * 2 + 2 * nap * vp * 4
                         + b_pad * nap * 4)

    out = pl.pallas_call(
        functools.partial(_head_kernel, inv_actions=1.0 / n_actions),
        out_shape=jax.ShapeDtypeStruct((b_pad, nap), jnp.float32),
        grid=(b_pad // tb,),
        in_specs=[
            pl.BlockSpec((tb, kf), lambda i: (i, 0)),              # batch tile
            resident((kf, 2 * HIDDEN)), resident((1, 2 * HIDDEN)),  # fused fc1
            resident((HIDDEN, vp)), resident((1, vp)),              # val fc2
            resident((HIDDEN, nap)), resident((1, nap)),            # adv fc2
            resident((nap, vp)), resident((vp, nap)),               # mean / tile
        ],
        out_specs=pl.BlockSpec((tb, nap), lambda i: (i, 0)),
        compiler_params=_COMPILER_PARAMS,
        cost_estimate=pl.CostEstimate(flops=flops, transcendentals=0,
                                      bytes_accessed=bytes_accessed),
    )(f, prep["w1"], prep["b1"], prep["wv2"], prep["bv2"],
      prep["wa2"], prep["ba2"], prep["mmean"], prep["mtile"])

    return out[:B, :n_actions * N_ATOMS].reshape(B, n_actions, N_ATOMS)


def rainbow_forward(prep, x_nchw):
    """Equivalent of RainbowDQN.forward: returns (B, n_actions, N_ATOMS)."""
    B = x_nchw.shape[0]
    x = jnp.transpose(x_nchw, (0, 2, 3, 1)).astype(jnp.bfloat16)   # NCHW->NHWC
    h = x
    for layer in prep["conv_layers"]:
        h = conv_layer_pallas(h, layer)
    # NHWC flatten; fc1 weight rows were pre-permuted to this ordering, so no
    # runtime transpose of the conv feature map is needed.
    f = h.reshape(B, -1)
    return head_pallas(f, prep)


# ----------------------------------------------------------------------------
# One-time parameter preparation
# ----------------------------------------------------------------------------
def _conv_out_hw(h, w):
    for k, s in ((8, 4), (4, 2), (3, 1)):
        h = (h - k) // s + 1
        w = (w - k) // s + 1
    return h, w


def prepare_params(params, input_shape):
    """Fold /256 into conv1, build stride-phase block-Toeplitz conv weights,
    permute/concat the fc1 rows for the NHWC flatten, lane-pad fc2 widths and
    cast MXU operands to bf16."""
    C, H, W = input_shape
    n_actions = params["n_actions"]

    def conv_prep(w_oihw, b, stride, h_in, w_in, c_in, scale=1.0):
        w_oihw = np.asarray(w_oihw, np.float32) * scale
        cout, cin, kh, kw = w_oihw.shape
        assert cin == c_in and kh % stride == 0 and kw % stride == 0
        s = stride
        khp, kwp = kh // s, kw // s
        oh = (h_in - kh) // s + 1
        ow = (w_in - kw) // s + 1
        hs, ws = h_in // s, w_in // s
        cs = s * s * cin
        # (O,C,kh,kw) -> per-offset slabs wslab[di,dj][(p*s+q)*C + c, o],
        # matching the space-to-depth channel order of the input.
        w6 = w_oihw.reshape(cout, cin, khp, s, kwp, s)
        wslab = np.transpose(w6, (2, 4, 3, 5, 1, 0)).reshape(khp, kwp, cs, cout)
        # Block-Toeplitz along W: one (Ws*Cs, OW*Cout) matmul per row offset
        # merges the kwp column offsets and keeps the kernel purely 2-D.
        toep = np.zeros((khp, ws * cs, ow * cout), np.float32)
        for di in range(khp):
            for dj in range(kwp):
                for oc in range(ow):
                    wcol = oc + dj
                    toep[di, wcol * cs:(wcol + 1) * cs,
                         oc * cout:(oc + 1) * cout] = wslab[di, dj]
        brow = np.tile(np.asarray(b, np.float32).reshape(1, cout), (1, ow))
        return {
            "w": jnp.asarray(toep, jnp.bfloat16),
            "b": jnp.asarray(brow, jnp.float32),
            "s": s, "khp": khp, "Hin": h_in, "Win": w_in, "Cin": c_in,
            "Hs": hs, "Ws": ws, "Cs": cs, "OH": oh, "OW": ow, "Cout": cout,
        }

    l1 = conv_prep(params["conv1_w"], params["conv1_b"], 4, H, W, C,
                   scale=1.0 / 256.0)                        # /256 folded in
    l2 = conv_prep(params["conv2_w"], params["conv2_b"], 2,
                   l1["OH"], l1["OW"], l1["Cout"])
    l3 = conv_prep(params["conv3_w"], params["conv3_b"], 1,
                   l2["OH"], l2["OW"], l2["Cout"])
    layers = [l1, l2, l3]

    oh, ow, c3 = l3["OH"], l3["OW"], l3["Cout"]
    kf = c3 * oh * ow

    # NCHW-flatten -> NHWC-flatten row permutation (one-time weight permute
    # instead of a per-call transpose of the conv feature map).
    perm = np.arange(kf).reshape(c3, oh, ow).transpose(1, 2, 0).reshape(-1)

    # Fused fc1: [val | adv] in one (kf, 512) matmul; no kf lane padding.
    wv1 = np.asarray(params["wv1"], np.float32)[perm]
    wa1 = np.asarray(params["wa1"], np.float32)[perm]
    w1 = np.concatenate([wv1, wa1], axis=1)
    b1 = np.concatenate([np.asarray(params["bv1"], np.float32),
                         np.asarray(params["ba1"], np.float32)]).reshape(1, -1)

    vp = _round_up(N_ATOMS, 128)                  # 51  -> 128 (lane-dense)
    nap = _round_up(n_actions * N_ATOMS, 128)     # 306 -> 384 (lane-dense)

    def fc2_prep(w, b, n_pad):
        w = np.asarray(w, np.float32)
        b = np.asarray(b, np.float32).reshape(1, -1)
        n = w.shape[1]
        w = np.pad(w, ((0, 0), (0, n_pad - n)))
        b = np.pad(b, ((0, 0), (0, n_pad - n)))
        return jnp.asarray(w, jnp.bfloat16), jnp.asarray(b, jnp.float32)

    wv2, bv2 = fc2_prep(params["wv2"], params["bv2"], vp)
    wa2, ba2 = fc2_prep(params["wa2"], params["ba2"], nap)

    # Sum-over-actions and broadcast-back as small constant f32 matmuls
    # (padded rows/cols are zero, so the lane padding stays exactly zero).
    rows = np.arange(n_actions * N_ATOMS)
    mmean = np.zeros((nap, vp), np.float32)
    mmean[rows, rows % N_ATOMS] = 1.0
    mtile = np.zeros((vp, nap), np.float32)
    mtile[rows % N_ATOMS, rows] = 1.0

    return {
        "n_actions": n_actions, "conv_layers": layers,
        "kf": kf, "vp": vp, "nap": nap,
        "w1": jnp.asarray(w1, jnp.bfloat16), "b1": jnp.asarray(b1, jnp.float32),
        "wv2": wv2, "bv2": bv2, "wa2": wa2, "ba2": ba2,
        "mmean": jnp.asarray(mmean), "mtile": jnp.asarray(mtile),
    }


# ----------------------------------------------------------------------------
# Pure-JAX f32 reference (verification only)
# ----------------------------------------------------------------------------
def rainbow_forward_ref(params, x_nchw):
    n_actions = params["n_actions"]
    B = x_nchw.shape[0]
    fx = x_nchw.astype(jnp.float32) / 256.0

    def conv(x, w, b, s):
        y = jax.lax.conv_general_dilated(
            x, w, window_strides=(s, s), padding="VALID",
            dimension_numbers=("NCHW", "OIHW", "NCHW"))
        return jnp.maximum(y + b.reshape(1, -1, 1, 1), 0.0)

    h = conv(fx, params["conv1_w"], params["conv1_b"], 4)
    h = conv(h, params["conv2_w"], params["conv2_b"], 2)
    h = conv(h, params["conv3_w"], params["conv3_b"], 1)
    f = h.reshape(B, -1)

    hv = jnp.maximum(f @ params["wv1"] + params["bv1"], 0.0)
    val = (hv @ params["wv2"] + params["bv2"]).reshape(B, 1, N_ATOMS)
    ha = jnp.maximum(f @ params["wa1"] + params["ba1"], 0.0)
    adv = (ha @ params["wa2"] + params["ba2"]).reshape(B, n_actions, N_ATOMS)
    adv_mean = adv.mean(axis=1, keepdims=True)
    return val + (adv - adv_mean)


# ----------------------------------------------------------------------------
# Deterministic parameter init (synthetic; NoisyLinear noise folded in)
# ----------------------------------------------------------------------------
def init_params(key, input_shape, n_actions):
    C, H, W = input_shape
    oh, ow = _conv_out_hw(H, W)
    conv_out = 64 * oh * ow

    ks = jax.random.split(key, 14)
    n = lambda k, shape, s: (jax.random.normal(k, shape, jnp.float32) * s)
    return {
        "n_actions": n_actions,
        "conv1_w": n(ks[0], (32, C, 8, 8), 0.05),
        "conv1_b": n(ks[1], (32,), 0.05),
        "conv2_w": n(ks[2], (64, 32, 4, 4), 0.05),
        "conv2_b": n(ks[3], (64,), 0.05),
        "conv3_w": n(ks[4], (64, 64, 3, 3), 0.05),
        "conv3_b": n(ks[5], (64,), 0.05),
        # NoisyLinear effective weights (W_mu + sigma*eps folded, stored (in, out))
        "wv1": n(ks[6], (conv_out, 256), 0.05),
        "bv1": n(ks[7], (256,), 0.05),
        "wv2": n(ks[8], (256, N_ATOMS), 0.05),
        "bv2": n(ks[9], (N_ATOMS,), 0.05),
        "wa1": n(ks[10], (conv_out, 256), 0.05),
        "ba1": n(ks[11], (256,), 0.05),
        "wa2": n(ks[12], (256, n_actions * N_ATOMS), 0.05),
        "ba2": n(ks[13], (n_actions * N_ATOMS,), 0.05),
    }


if __name__ == "__main__":
    # Small but conv-valid input: 44x44 -> conv feature map 2x2x64 (conv_out=256),
    # so the space-to-depth / flatten / permutation paths are all exercised.
    B, C, H, W = 2, 4, 44, 44
    n_actions = 6

    key = jax.random.PRNGKey(0)
    k_x, k_p = jax.random.split(key)
    x = jax.random.uniform(k_x, (B, C, H, W), jnp.float32, 0.0, 255.0)
    params = init_params(k_p, (C, H, W), n_actions)
    prep = prepare_params(params, (C, H, W))

    fwd = jax.jit(lambda inp: rainbow_forward(prep, inp))
    out = jax.block_until_ready(fwd(x))

    ref = jax.block_until_ready(rainbow_forward_ref(params, x))
    assert out.shape == (B, n_actions, N_ATOMS), out.shape
    out_f = np.asarray(out, np.float32)
    ref_f = np.asarray(ref, np.float32)
    err = float(np.max(np.abs(out_f - ref_f)))
    # bf16 matmul operands with f32 accumulation -> looser tolerance than pure f32.
    assert np.allclose(out_f, ref_f, atol=2e-2, rtol=2e-2), err

    print("KERNEL_OK")
</pallas_src>

<mosaic_0001>
module attributes {stable_mosaic.version = 11 : i64} {
  func.func @_conv_kernel(%arg0: i32, %arg1: memref<1x11x704xbf16, #tpu.memory_space<vmem>>, %arg2: memref<2x704x320xbf16, #tpu.memory_space<vmem>>, %arg3: memref<1x320xf32, #tpu.memory_space<vmem>>, %arg4: memref<1x10x320xbf16, #tpu.memory_space<vmem>>) attributes {dimension_semantics = [#tpu.dimension_semantics<parallel>], iteration_bounds = array<i64: 2>, scalar_prefetch = 0 : i64, scratch_operands = 0 : i64, tpu.core_type = #tpu.core_type<tc>, window_params = [{transform_indices = @transform_0, window_bounds = array<i64: 1, 11, 704>}, {pipeline_mode = #tpu.pipeline_mode<synchronous>, transform_indices = @transform_1, window_bounds = array<i64: 2, 704, 320>}, {pipeline_mode = #tpu.pipeline_mode<synchronous>, transform_indices = @transform_2, window_bounds = array<i64: 1, 320>}, {transform_indices = @transform_3, window_bounds = array<i64: 1, 10, 320>}]} {
    %c0 = arith.constant 0 : index
    %c0_0 = arith.constant 0 : index
    %0 = vector.load %arg3[%c0, %c0_0] : memref<1x320xf32, #tpu.memory_space<vmem>>, vector<1x320xf32>
    %c0_1 = arith.constant 0 : index
    %c0_2 = arith.constant 0 : index
    %c0_3 = arith.constant 0 : index
    %1 = vector.load %arg1[%c0_1, %c0_2, %c0_3] : memref<1x11x704xbf16, #tpu.memory_space<vmem>>, vector<1x10x704xbf16>
    %2 = vector.shape_cast %1 : vector<1x10x704xbf16> to vector<10x704xbf16>
    %c0_4 = arith.constant 0 : index
    %c0_5 = arith.constant 0 : index
    %c0_6 = arith.constant 0 : index
    %3 = vector.load %arg2[%c0_4, %c0_5, %c0_6] : memref<2x704x320xbf16, #tpu.memory_space<vmem>>, vector<1x704x320xbf16>
    %4 = vector.shape_cast %3 : vector<1x704x320xbf16> to vector<704x320xbf16>
    %cst = arith.constant dense<0.000000e+00> : vector<10x320xf32>
    %5 = tpu.matmul %2, %4, %cst {dimension_numbers = #tpu.dot_dimension_numbers<[1], [0], [0], [1], [0, 0, 1, 1], [], []>} : vector<10x704xbf16>, vector<704x320xbf16>, vector<10x320xf32> -> vector<10x320xf32>
    %c0_7 = arith.constant 0 : index
    %c1 = arith.constant 1 : index
    %c0_8 = arith.constant 0 : index
    %6 = vector.load %arg1[%c0_7, %c1, %c0_8] : memref<1x11x704xbf16, #tpu.memory_space<vmem>>, vector<1x10x704xbf16>
    %7 = vector.shape_cast %6 : vector<1x10x704xbf16> to vector<10x704xbf16>
    %c1_9 = arith.constant 1 : index
    %c0_10 = arith.constant 0 : index
    %c0_11 = arith.constant 0 : index
    %8 = vector.load %arg2[%c1_9, %c0_10, %c0_11] : memref<2x704x320xbf16, #tpu.memory_space<vmem>>, vector<1x704x320xbf16>
    %9 = vector.shape_cast %8 : vector<1x704x320xbf16> to vector<704x320xbf16>
    %cst_12 = arith.constant dense<0.000000e+00> : vector<10x320xf32>
    %10 = tpu.matmul %7, %9, %cst_12 {dimension_numbers = #tpu.dot_dimension_numbers<[1], [0], [0], [1], [0, 0, 1, 1], [], []>} : vector<10x704xbf16>, vector<704x320xbf16>, vector<10x320xf32> -> vector<10x320xf32>
    %11 = arith.addf %5, %10 : vector<10x320xf32>
    %12 = vector.broadcast %0 : vector<1x320xf32> to vector<10x320xf32>
    %13 = arith.addf %11, %12 : vector<10x320xf32>
    %cst_13 = arith.constant 0.000000e+00 : f32
    %14 = vector.broadcast %cst_13 : f32 to vector<10x320xf32>
    %15 = arith.maximumf %13, %14 : vector<10x320xf32>
    %16 = arith.truncf %15 : vector<10x320xf32> to vector<10x320xbf16>
    %c0_14 = arith.constant 0 : index
    %c0_15 = arith.constant 0 : index
    %c0_16 = arith.constant 0 : index
    %17 = vector.load %arg4[%c0_14, %c0_15, %c0_16] : memref<1x10x320xbf16, #tpu.memory_space<vmem>>, vector<1x10x320xbf16>
    %18 = vector.shape_cast %17 : vector<1x10x320xbf16> to vector<10x320xbf16>
    %19 = vector.shape_cast %16 : vector<10x320xbf16> to vector<1x10x320xbf16>
    tpu.vector_store %arg4[%c0_14, %c0_15, %c0_16], %19 {strides = array<i32>} : memref<1x10x320xbf16, #tpu.memory_space<vmem>>, vector<1x10x320xbf16>,
    return
  }
  func.func @transform_0(%arg0: i32) -> (i32, i32, i32) {
    %c0_i32 = arith.constant 0 : i32
    %c0_i32_0 = arith.constant 0 : i32
    %c0_i32_1 = arith.constant 0 : i32
    return %arg0, %c0_i32, %c0_i32_0 : i32, i32, i32
  }
  func.func @transform_1(%arg0: i32) -> (i32, i32, i32) {
    %c0_i32 = arith.constant 0 : i32
    %c0_i32_0 = arith.constant 0 : i32
    %c0_i32_1 = arith.constant 0 : i32
    %c0_i32_2 = arith.constant 0 : i32
    return %c0_i32, %c0_i32_0, %c0_i32_1 : i32, i32, i32
  }
  func.func @transform_2(%arg0: i32) -> (i32, i32) {
    %c0_i32 = arith.constant 0 : i32
    %c0_i32_0 = arith.constant 0 : i32
    %c0_i32_1 = arith.constant 0 : i32
    return %c0_i32, %c0_i32_0 : i32, i32
  }
  func.func @transform_3(%arg0: i32) -> (i32, i32, i32) {
    %c0_i32 = arith.constant 0 : i32
    %c0_i32_0 = arith.constant 0 : i32
    %c0_i32_1 = arith.constant 0 : i32
    return %arg0, %c0_i32, %c0_i32_0 : i32, i32, i32
  }
}

module attributes {stable_mosaic.version = 11 : i64} {
  func.func @_conv_kernel(%arg0: i32, %arg1: memref<1x4x256xbf16, #tpu.memory_space<vmem>>, %arg2: memref<3x256x128xbf16, #tpu.memory_space<vmem>>, %arg3: memref<1x128xf32, #tpu.memory_space<vmem>>, %arg4: memref<1x2x128xbf16, #tpu.memory_space<vmem>>) attributes {dimension_semantics = [#tpu.dimension_semantics<parallel>], iteration_bounds = array<i64: 2>, scalar_prefetch = 0 : i64, scratch_operands = 0 : i64, tpu.core_type = #tpu.core_type<tc>, window_params = [{transform_indices = @transform_0, window_bounds = array<i64: 1, 4, 256>}, {pipeline_mode = #tpu.pipeline_mode<synchronous>, transform_indices = @transform_1, window_bounds = array<i64: 3, 256, 128>}, {pipeline_mode = #tpu.pipeline_mode<synchronous>, transform_indices = @transform_2, window_bounds = array<i64: 1, 128>}, {transform_indices = @transform_3, window_bounds = array<i64: 1, 2, 128>}]} {
    %c0 = arith.constant 0 : index
    %c0_0 = arith.constant 0 : index
    %0 = vector.load %arg3[%c0, %c0_0] : memref<1x128xf32, #tpu.memory_space<vmem>>, vector<1x128xf32>
    %c0_1 = arith.constant 0 : index
    %c0_2 = arith.constant 0 : index
    %c0_3 = arith.constant 0 : index
    %1 = vector.load %arg1[%c0_1, %c0_2, %c0_3] : memref<1x4x256xbf16, #tpu.memory_space<vmem>>, vector<1x2x256xbf16>
    %2 = vector.shape_cast %1 : vector<1x2x256xbf16> to vector<2x256xbf16>
    %c0_4 = arith.constant 0 : index
    %c0_5 = arith.constant 0 : index
    %c0_6 = arith.constant 0 : index
    %3 = vector.load %arg2[%c0_4, %c0_5, %c0_6] : memref<3x256x128xbf16, #tpu.memory_space<vmem>>, vector<1x256x128xbf16>
    %4 = vector.shape_cast %3 : vector<1x256x128xbf16> to vector<256x128xbf16>
    %cst = arith.constant dense<0.000000e+00> : vector<2x128xf32>
    %5 = tpu.matmul %2, %4, %cst {dimension_numbers = #tpu.dot_dimension_numbers<[1], [0], [0], [1], [0, 0, 1, 1], [], []>} : vector<2x256xbf16>, vector<256x128xbf16>, vector<2x128xf32> -> vector<2x128xf32>
    %c0_7 = arith.constant 0 : index
    %c1 = arith.constant 1 : index
    %c0_8 = arith.constant 0 : index
    %6 = vector.load %arg1[%c0_7, %c1, %c0_8] : memref<1x4x256xbf16, #tpu.memory_space<vmem>>, vector<1x2x256xbf16>
    %7 = vector.shape_cast %6 : vector<1x2x256xbf16> to vector<2x256xbf16>
    %c1_9 = arith.constant 1 : index
    %c0_10 = arith.constant 0 : index
    %c0_11 = arith.constant 0 : index
    %8 = vector.load %arg2[%c1_9, %c0_10, %c0_11] : memref<3x256x128xbf16, #tpu.memory_space<vmem>>, vector<1x256x128xbf16>
    %9 = vector.shape_cast %8 : vector<1x256x128xbf16> to vector<256x128xbf16>
    %cst_12 = arith.constant dense<0.000000e+00> : vector<2x128xf32>
    %10 = tpu.matmul %7, %9, %cst_12 {dimension_numbers = #tpu.dot_dimension_numbers<[1], [0], [0], [1], [0, 0, 1, 1], [], []>} : vector<2x256xbf16>, vector<256x128xbf16>, vector<2x128xf32> -> vector<2x128xf32>
    %11 = arith.addf %5, %10 : vector<2x128xf32>
    %c0_13 = arith.constant 0 : index
    %c2 = arith.constant 2 : index
    %c0_14 = arith.constant 0 : index
    %12 = vector.load %arg1[%c0_13, %c2, %c0_14] : memref<1x4x256xbf16, #tpu.memory_space<vmem>>, vector<1x2x256xbf16>
    %13 = vector.shape_cast %12 : vector<1x2x256xbf16> to vector<2x256xbf16>
    %c2_15 = arith.constant 2 : index
    %c0_16 = arith.constant 0 : index
    %c0_17 = arith.constant 0 : index
    %14 = vector.load %arg2[%c2_15, %c0_16, %c0_17] : memref<3x256x128xbf16, #tpu.memory_space<vmem>>, vector<1x256x128xbf16>
    %15 = vector.shape_cast %14 : vector<1x256x128xbf16> to vector<256x128xbf16>
    %cst_18 = arith.constant dense<0.000000e+00> : vector<2x128xf32>
    %16 = tpu.matmul %13, %15, %cst_18 {dimension_numbers = #tpu.dot_dimension_numbers<[1], [0], [0], [1], [0, 0, 1, 1], [], []>} : vector<2x256xbf16>, vector<256x128xbf16>, vector<2x128xf32> -> vector<2x128xf32>
    %17 = arith.addf %11, %16 : vector<2x128xf32>
    %18 = vector.broadcast %0 : vector<1x128xf32> to vector<2x128xf32>
    %19 = arith.addf %17, %18 : vector<2x128xf32>
    %cst_19 = arith.constant 0.000000e+00 : f32
    %20 = vector.broadcast %cst_19 : f32 to vector<2x128xf32>
    %21 = arith.maximumf %19, %20 : vector<2x128xf32>
    %22 = arith.truncf %21 : vector<2x128xf32> to vector<2x128xbf16>
    %c0_20 = arith.constant 0 : index
    %c0_21 = arith.constant 0 : index
    %c0_22 = arith.constant 0 : index
    %23 = vector.load %arg4[%c0_20, %c0_21, %c0_22] : memref<1x2x128xbf16, #tpu.memory_space<vmem>>, vector<1x2x128xbf16>
    %24 = vector.shape_cast %23 : vector<1x2x128xbf16> to vector<2x128xbf16>
    %25 = vector.shape_cast %22 : vector<2x128xbf16> to vector<1x2x128xbf16>
    tpu.vector_store %arg4[%c0_20, %c0_21, %c0_22], %25 {strides = array<i32>} : memref<1x2x128xbf16, #tpu.memory_space<vmem>>, vector<1x2x128xbf16>,
    return
  }
  func.func @transform_0(%arg0: i32) -> (i32, i32, i32) {
    %c0_i32 = arith.constant 0 : i32
    %c0_i32_0 = arith.constant 0 : i32
    %c0_i32_1 = arith.constant 0 : i32
    return %arg0, %c0_i32, %c0_i32_0 : i32, i32, i32
  }
  func.func @transform_1(%arg0: i32) -> (i32, i32, i32) {
    %c0_i32 = arith.constant 0 : i32
    %c0_i32_0 = arith.constant 0 : i32
    %c0_i32_1 = arith.constant 0 : i32
    %c0_i32_2 = arith.constant 0 : i32
    return %c0_i32, %c0_i32_0, %c0_i32_1 : i32, i32, i32
  }
  func.func @transform_2(%arg0: i32) -> (i32, i32) {
    %c0_i32 = arith.constant 0 : i32
    %c0_i32_0 = arith.constant 0 : i32
    %c0_i32_1 = arith.constant 0 : i32
    return %c0_i32, %c0_i32_0 : i32, i32
  }
  func.func @transform_3(%arg0: i32) -> (i32, i32, i32) {
    %c0_i32 = arith.constant 0 : i32
    %c0_i32_0 = arith.constant 0 : i32
    %c0_i32_1 = arith.constant 0 : i32
    return %arg0, %c0_i32, %c0_i32_0 : i32, i32, i32
  }
}

module attributes {stable_mosaic.version = 11 : i64} {
  func.func @_conv_kernel(%arg0: i32, %arg1: memref<1x5x640xbf16, #tpu.memory_space<vmem>>, %arg2: memref<2x640x256xbf16, #tpu.memory_space<vmem>>, %arg3: memref<1x256xf32, #tpu.memory_space<vmem>>, %arg4: memref<1x4x256xbf16, #tpu.memory_space<vmem>>) attributes {dimension_semantics = [#tpu.dimension_semantics<parallel>], iteration_bounds = array<i64: 2>, scalar_prefetch = 0 : i64, scratch_operands = 0 : i64, tpu.core_type = #tpu.core_type<tc>, window_params = [{transform_indices = @transform_0, window_bounds = array<i64: 1, 5, 640>}, {pipeline_mode = #tpu.pipeline_mode<synchronous>, transform_indices = @transform_1, window_bounds = array<i64: 2, 640, 256>}, {pipeline_mode = #tpu.pipeline_mode<synchronous>, transform_indices = @transform_2, window_bounds = array<i64: 1, 256>}, {transform_indices = @transform_3, window_bounds = array<i64: 1, 4, 256>}]} {
    %c0 = arith.constant 0 : index
    %c0_0 = arith.constant 0 : index
    %0 = vector.load %arg3[%c0, %c0_0] : memref<1x256xf32, #tpu.memory_space<vmem>>, vector<1x256xf32>
    %c0_1 = arith.constant 0 : index
    %c0_2 = arith.constant 0 : index
    %c0_3 = arith.constant 0 : index
    %1 = vector.load %arg1[%c0_1, %c0_2, %c0_3] : memref<1x5x640xbf16, #tpu.memory_space<vmem>>, vector<1x4x640xbf16>
    %2 = vector.shape_cast %1 : vector<1x4x640xbf16> to vector<4x640xbf16>
    %c0_4 = arith.constant 0 : index
    %c0_5 = arith.constant 0 : index
    %c0_6 = arith.constant 0 : index
    %3 = vector.load %arg2[%c0_4, %c0_5, %c0_6] : memref<2x640x256xbf16, #tpu.memory_space<vmem>>, vector<1x640x256xbf16>
    %4 = vector.shape_cast %3 : vector<1x640x256xbf16> to vector<640x256xbf16>
    %cst = arith.constant dense<0.000000e+00> : vector<4x256xf32>
    %5 = tpu.matmul %2, %4, %cst {dimension_numbers = #tpu.dot_dimension_numbers<[1], [0], [0], [1], [0, 0, 1, 1], [], []>} : vector<4x640xbf16>, vector<640x256xbf16>, vector<4x256xf32> -> vector<4x256xf32>
    %c0_7 = arith.constant 0 : index
    %c1 = arith.constant 1 : index
    %c0_8 = arith.constant 0 : index
    %6 = vector.load %arg1[%c0_7, %c1, %c0_8] : memref<1x5x640xbf16, #tpu.memory_space<vmem>>, vector<1x4x640xbf16>
    %7 = vector.shape_cast %6 : vector<1x4x640xbf16> to vector<4x640xbf16>
    %c1_9 = arith.constant 1 : index
    %c0_10 = arith.constant 0 : index
    %c0_11 = arith.constant 0 : index
    %8 = vector.load %arg2[%c1_9, %c0_10, %c0_11] : memref<2x640x256xbf16, #tpu.memory_space<vmem>>, vector<1x640x256xbf16>
    %9 = vector.shape_cast %8 : vector<1x640x256xbf16> to vector<640x256xbf16>
    %cst_12 = arith.constant dense<0.000000e+00> : vector<4x256xf32>
    %10 = tpu.matmul %7, %9, %cst_12 {dimension_numbers = #tpu.dot_dimension_numbers<[1], [0], [0], [1], [0, 0, 1, 1], [], []>} : vector<4x640xbf16>, vector<640x256xbf16>, vector<4x256xf32> -> vector<4x256xf32>
    %11 = arith.addf %5, %10 : vector<4x256xf32>
    %12 = vector.broadcast %0 : vector<1x256xf32> to vector<4x256xf32>
    %13 = arith.addf %11, %12 : vector<4x256xf32>
    %cst_13 = arith.constant 0.000000e+00 : f32
    %14 = vector.broadcast %cst_13 : f32 to vector<4x256xf32>
    %15 = arith.maximumf %13, %14 : vector<4x256xf32>
    %16 = arith.truncf %15 : vector<4x256xf32> to vector<4x256xbf16>
    %c0_14 = arith.constant 0 : index
    %c0_15 = arith.constant 0 : index
    %c0_16 = arith.constant 0 : index
    %17 = vector.load %arg4[%c0_14, %c0_15, %c0_16] : memref<1x4x256xbf16, #tpu.memory_space<vmem>>, vector<1x4x256xbf16>
    %18 = vector.shape_cast %17 : vector<1x4x256xbf16> to vector<4x256xbf16>
    %19 = vector.shape_cast %16 : vector<4x256xbf16> to vector<1x4x256xbf16>
    tpu.vector_store %arg4[%c0_14, %c0_15, %c0_16], %19 {strides = array<i32>} : memref<1x4x256xbf16, #tpu.memory_space<vmem>>, vector<1x4x256xbf16>,
    return
  }
  func.func @transform_0(%arg0: i32) -> (i32, i32, i32) {
    %c0_i32 = arith.constant 0 : i32
    %c0_i32_0 = arith.constant 0 : i32
    %c0_i32_1 = arith.constant 0 : i32
    return %arg0, %c0_i32, %c0_i32_0 : i32, i32, i32
  }
  func.func @transform_1(%arg0: i32) -> (i32, i32, i32) {
    %c0_i32 = arith.constant 0 : i32
    %c0_i32_0 = arith.constant 0 : i32
    %c0_i32_1 = arith.constant 0 : i32
    %c0_i32_2 = arith.constant 0 : i32
    return %c0_i32, %c0_i32_0, %c0_i32_1 : i32, i32, i32
  }
  func.func @transform_2(%arg0: i32) -> (i32, i32) {
    %c0_i32 = arith.constant 0 : i32
    %c0_i32_0 = arith.constant 0 : i32
    %c0_i32_1 = arith.constant 0 : i32
    return %c0_i32, %c0_i32_0 : i32, i32
  }
  func.func @transform_3(%arg0: i32) -> (i32, i32, i32) {
    %c0_i32 = arith.constant 0 : i32
    %c0_i32_0 = arith.constant 0 : i32
    %c0_i32_1 = arith.constant 0 : i32
    return %arg0, %c0_i32, %c0_i32_0 : i32, i32, i32
  }
}

module attributes {stable_mosaic.version = 11 : i64} {
  func.func @_head_kernel(%arg0: i32, %arg1: memref<2x256xbf16, #tpu.memory_space<vmem>>, %arg2: memref<256x512xbf16, #tpu.memory_space<vmem>>, %arg3: memref<1x512xf32, #tpu.memory_space<vmem>>, %arg4: memref<256x128xbf16, #tpu.memory_space<vmem>>, %arg5: memref<1x128xf32, #tpu.memory_space<vmem>>, %arg6: memref<256x384xbf16, #tpu.memory_space<vmem>>, %arg7: memref<1x384xf32, #tpu.memory_space<vmem>>, %arg8: memref<384x128xf32, #tpu.memory_space<vmem>>, %arg9: memref<128x384xf32, #tpu.memory_space<vmem>>, %arg10: memref<2x384xf32, #tpu.memory_space<vmem>>) attributes {dimension_semantics = [#tpu.dimension_semantics<parallel>], iteration_bounds = array<i64: 1>, scalar_prefetch = 0 : i64, scratch_operands = 0 : i64, tpu.core_type = #tpu.core_type<tc>, window_params = [{transform_indices = @transform_0, window_bounds = array<i64: 2, 256>}, {pipeline_mode = #tpu.pipeline_mode<synchronous>, transform_indices = @transform_1, window_bounds = array<i64: 256, 512>}, {pipeline_mode = #tpu.pipeline_mode<synchronous>, transform_indices = @transform_2, window_bounds = array<i64: 1, 512>}, {pipeline_mode = #tpu.pipeline_mode<synchronous>, transform_indices = @transform_3, window_bounds = array<i64: 256, 128>}, {pipeline_mode = #tpu.pipeline_mode<synchronous>, transform_indices = @transform_4, window_bounds = array<i64: 1, 128>}, {pipeline_mode = #tpu.pipeline_mode<synchronous>, transform_indices = @transform_5, window_bounds = array<i64: 256, 384>}, {pipeline_mode = #tpu.pipeline_mode<synchronous>, transform_indices = @transform_6, window_bounds = array<i64: 1, 384>}, {pipeline_mode = #tpu.pipeline_mode<synchronous>, transform_indices = @transform_7, window_bounds = array<i64: 384, 128>}, {pipeline_mode = #tpu.pipeline_mode<synchronous>, transform_indices = @transform_8, window_bounds = array<i64: 128, 384>}, {transform_indices = @transform_9, window_bounds = array<i64: 2, 384>}]} {
    %c0 = arith.constant 0 : index
    %c0_0 = arith.constant 0 : index
    %0 = vector.load %arg1[%c0, %c0_0] : memref<2x256xbf16, #tpu.memory_space<vmem>>, vector<2x256xbf16>
    %c0_1 = arith.constant 0 : index
    %c0_2 = arith.constant 0 : index
    %1 = vector.load %arg2[%c0_1, %c0_2] : memref<256x512xbf16, #tpu.memory_space<vmem>>, vector<256x512xbf16>
    %cst = arith.constant dense<0.000000e+00> : vector<2x512xf32>
    %2 = tpu.matmul %0, %1, %cst {dimension_numbers = #tpu.dot_dimension_numbers<[1], [0], [0], [1], [0, 0, 1, 1], [], []>} : vector<2x256xbf16>, vector<256x512xbf16>, vector<2x512xf32> -> vector<2x512xf32>
    %c0_3 = arith.constant 0 : index
    %c0_4 = arith.constant 0 : index
    %3 = vector.load %arg3[%c0_3, %c0_4] : memref<1x512xf32, #tpu.memory_space<vmem>>, vector<1x512xf32>
    %4 = vector.broadcast %3 : vector<1x512xf32> to vector<2x512xf32>
    %5 = arith.addf %2, %4 : vector<2x512xf32>
    %cst_5 = arith.constant 0.000000e+00 : f32
    %6 = vector.broadcast %cst_5 : f32 to vector<2x512xf32>
    %7 = arith.maximumf %5, %6 : vector<2x512xf32>
    %8 = vector.extract_strided_slice %7 {offsets = [0, 0], sizes = [2, 256], strides = [1, 1]} : vector<2x512xf32> to vector<2x256xf32>
    %9 = arith.truncf %8 : vector<2x256xf32> to vector<2x256xbf16>
    %10 = vector.extract_strided_slice %7 {offsets = [0, 256], sizes = [2, 256], strides = [1, 1]} : vector<2x512xf32> to vector<2x256xf32>
    %11 = arith.truncf %10 : vector<2x256xf32> to vector<2x256xbf16>
    %c0_6 = arith.constant 0 : index
    %c0_7 = arith.constant 0 : index
    %12 = vector.load %arg4[%c0_6, %c0_7] : memref<256x128xbf16, #tpu.memory_space<vmem>>, vector<256x128xbf16>
    %cst_8 = arith.constant dense<0.000000e+00> : vector<2x128xf32>
    %13 = tpu.matmul %9, %12, %cst_8 {dimension_numbers = #tpu.dot_dimension_numbers<[1], [0], [0], [1], [0, 0, 1, 1], [], []>} : vector<2x256xbf16>, vector<256x128xbf16>, vector<2x128xf32> -> vector<2x128xf32>
    %c0_9 = arith.constant 0 : index
    %c0_10 = arith.constant 0 : index
    %14 = vector.load %arg5[%c0_9, %c0_10] : memref<1x128xf32, #tpu.memory_space<vmem>>, vector<1x128xf32>
    %15 = vector.broadcast %14 : vector<1x128xf32> to vector<2x128xf32>
    %16 = arith.addf %13, %15 : vector<2x128xf32>
    %c0_11 = arith.constant 0 : index
    %c0_12 = arith.constant 0 : index
    %17 = vector.load %arg6[%c0_11, %c0_12] : memref<256x384xbf16, #tpu.memory_space<vmem>>, vector<256x384xbf16>
    %cst_13 = arith.constant dense<0.000000e+00> : vector<2x384xf32>
    %18 = tpu.matmul %11, %17, %cst_13 {dimension_numbers = #tpu.dot_dimension_numbers<[1], [0], [0], [1], [0, 0, 1, 1], [], []>} : vector<2x256xbf16>, vector<256x384xbf16>, vector<2x384xf32> -> vector<2x384xf32>
    %c0_14 = arith.constant 0 : index
    %c0_15 = arith.constant 0 : index
    %19 = vector.load %arg7[%c0_14, %c0_15] : memref<1x384xf32, #tpu.memory_space<vmem>>, vector<1x384xf32>
    %20 = vector.broadcast %19 : vector<1x384xf32> to vector<2x384xf32>
    %21 = arith.addf %18, %20 : vector<2x384xf32>
    %c0_16 = arith.constant 0 : index
    %c0_17 = arith.constant 0 : index
    %22 = vector.load %arg8[%c0_16, %c0_17] : memref<384x128xf32, #tpu.memory_space<vmem>>, vector<384x128xf32>
    %cst_18 = arith.constant dense<0.000000e+00> : vector<2x128xf32>
    %23 = tpu.matmul %21, %22, %cst_18 {dimension_numbers = #tpu.dot_dimension_numbers<[1], [0], [0], [1], [0, 0, 1, 1], [], []>} : vector<2x384xf32>, vector<384x128xf32>, vector<2x128xf32> -> vector<2x128xf32>
    %cst_19 = arith.constant 0.166666672 : f32
    %24 = vector.broadcast %cst_19 : f32 to vector<2x128xf32>
    %25 = arith.mulf %23, %24 : vector<2x128xf32>
    %26 = arith.subf %16, %25 : vector<2x128xf32>
    %c0_20 = arith.constant 0 : index
    %c0_21 = arith.constant 0 : index
    %27 = vector.load %arg9[%c0_20, %c0_21] : memref<128x384xf32, #tpu.memory_space<vmem>>, vector<128x384xf32>
    %cst_22 = arith.constant dense<0.000000e+00> : vector<2x384xf32>
    %28 = tpu.matmul %26, %27, %cst_22 {dimension_numbers = #tpu.dot_dimension_numbers<[1], [0], [0], [1], [0, 0, 1, 1], [], []>} : vector<2x128xf32>, vector<128x384xf32>, vector<2x384xf32> -> vector<2x384xf32>
    %29 = arith.addf %21, %28 : vector<2x384xf32>
    %c0_23 = arith.constant 0 : index
    %c0_24 = arith.constant 0 : index
    %30 = vector.load %arg10[%c0_23, %c0_24] : memref<2x384xf32, #tpu.memory_space<vmem>>, vector<2x384xf32>
    tpu.vector_store %arg10[%c0_23, %c0_24], %29 {strides = array<i32>} : memref<2x384xf32, #tpu.memory_space<vmem>>, vector<2x384xf32>,
    return
  }
  func.func @transform_0(%arg0: i32) -> (i32, i32) {
    %c0_i32 = arith.constant 0 : i32
    %c0_i32_0 = arith.constant 0 : i32
    return %arg0, %c0_i32 : i32, i32
  }
  func.func @transform_1(%arg0: i32) -> (i32, i32) {
    %c0_i32 = arith.constant 0 : i32
    %c0_i32_0 = arith.constant 0 : i32
    %c0_i32_1 = arith.constant 0 : i32
    return %c0_i32, %c0_i32_0 : i32, i32
  }
  func.func @transform_2(%arg0: i32) -> (i32, i32) {
    %c0_i32 = arith.constant 0 : i32
    %c0_i32_0 = arith.constant 0 : i32
    %c0_i32_1 = arith.constant 0 : i32
    return %c0_i32, %c0_i32_0 : i32, i32
  }
  func.func @transform_3(%arg0: i32) -> (i32, i32) {
    %c0_i32 = arith.constant 0 : i32
    %c0_i32_0 = arith.constant 0 : i32
    %c0_i32_1 = arith.constant 0 : i32
    return %c0_i32, %c0_i32_0 : i32, i32
  }
  func.func @transform_4(%arg0: i32) -> (i32, i32) {
    %c0_i32 = arith.constant 0 : i32
    %c0_i32_0 = arith.constant 0 : i32
    %c0_i32_1 = arith.constant 0 : i32
    return %c0_i32, %c0_i32_0 : i32, i32
  }
  func.func @transform_5(%arg0: i32) -> (i32, i32) {
    %c0_i32 = arith.constant 0 : i32
    %c0_i32_0 = arith.constant 0 : i32
    %c0_i32_1 = arith.constant 0 : i32
    return %c0_i32, %c0_i32_0 : i32, i32
  }
  func.func @transform_6(%arg0: i32) -> (i32, i32) {
    %c0_i32 = arith.constant 0 : i32
    %c0_i32_0 = arith.constant 0 : i32
    %c0_i32_1 = arith.constant 0 : i32
    return %c0_i32, %c0_i32_0 : i32, i32
  }
  func.func @transform_7(%arg0: i32) -> (i32, i32) {
    %c0_i32 = arith.constant 0 : i32
    %c0_i32_0 = arith.constant 0 : i32
    %c0_i32_1 = arith.constant 0 : i32
    return %c0_i32, %c0_i32_0 : i32, i32
  }
  func.func @transform_8(%arg0: i32) -> (i32, i32) {
    %c0_i32 = arith.constant 0 : i32
    %c0_i32_0 = arith.constant 0 : i32
    %c0_i32_1 = arith.constant 0 : i32
    return %c0_i32, %c0_i32_0 : i32, i32
  }
  func.func @transform_9(%arg0: i32) -> (i32, i32) {
    %c0_i32 = arith.constant 0 : i32
    %c0_i32_0 = arith.constant 0 : i32
    return %arg0, %c0_i32 : i32, i32
  }
}

</mosaic_0001>

<llo_original>
// kernel: _lambda_.4
$region0: #{_lambda_.4}
  #allocation0 [shape = 'u32[]', space=smem, size = 0x4, offset = 0x4, fixed_abs, tag = 'smem constant byte address 0x4 - core index']
  #allocation1 [shape = 'u32[144,128]{1,0:T(1,128)}', space=vmem, size = 0x12000, scoped, tag = 'internal scratch']
  %s0 = inlined_call_operand.vmem [shape: bf16[2,11,704], index: 0, kind: input, shape index: {}]
  %s1 = inlined_call_operand.vmem [shape: bf16[2,704,320], index: 1, kind: input, shape index: {}]
  %s2 = inlined_call_operand.vmem [shape: f32[1,320], index: 2, kind: input, shape index: {}]
  %s3 = inlined_call_operand.vmem [shape: bf16[2,10,320], index: 3, kind: output, shape index: {}]
  %s4 = sld [smem:[#allocation0]]
  $region45: #{_lambda_.4} parent=0
    _
  %s6 = ssub.s32 1, %s4
  %s7 = scalar_select 0, %s6, %s4
  loop: start=0, step=1, limit=4
  $region2: #{_lambda_.4} parent=0 // loop_pre_header
    _
  $region3: #{_lambda_.4} parent=0 // loop_header
    %s9 = sphi 0, %s13
    %p10 = scmp.ge.s32.totalorder %s9, 4
    %s19 = sphi 0, %s21
    %s22 = sphi 0, %s19
    %s23 = sphi 0, %s22
    %s39 = sphi 0, %s23
    %s43 = sphi 0, %s43
    %s45 = sphi 0, %s43
    %s46 = sphi 0, %s45
    %s60 = sphi 0, %s46
    %s64 = sphi 0, %s64
    %s66 = sphi 0, %s64
    %s67 = sphi 0, %s66
    %s81 = sphi 0, %s67
    %s87 = sphi 0, %s89
    %s90 = sphi 0, %s87
    %s91 = sphi 0, %s90
    %s107 = sphi 0, %s91
  $region4: #{_lambda_.4} parent=0 // loop_header_branch
    %12 = sbr.rel (%p10) target = $region8
  $region5: #{_lambda_.4} parent=0 // loop_body
    %s14 = ssub.s32 %s9, 1
    %s15 = ssub.s32 %s9, 2
    %s16 = sadd.s32 %s9, 1
    %s17 = ssub.s32 %s9, %s16
    %p18 = scmp.eq.s32.totalorder %s17, 0
    %s20 = sadd.s32 %s19, 1
    %s21 = scalar_select %p18, %s19, %s20
    %p24 = pneg %p18
    %p25 = scmp.eq.s32.totalorder %s9, 1
    %p26 = por %p24, %p25
    %p27 = scmp.ne.s32.totalorder %s19, %s22
    %p28 = scmp.eq.s32.totalorder %s9, 0
    %p29 = por %p27, %p28
    %p30 = scmp.ne.s32.totalorder %s19, %s22
    %p31 = scmp.eq.s32.totalorder %s14, 1
    %p32 = por %p30, %p31
    %p33 = scmp.ne.s32.totalorder %s22, %s23
    %p34 = scmp.eq.s32.totalorder %s14, 0
    %p35 = por %p33, %p34
    %p36 = scmp.ne.s32.totalorder %s22, %s23
    %p37 = scmp.eq.s32.totalorder %s15, 1
    %p38 = por %p36, %p37
    %p40 = scmp.ne.s32.totalorder %s23, %s39
    %p41 = scmp.eq.s32.totalorder %s15, 0
    %p42 = por %p40, %p41
    %s44 = sadd.s32 %s43, 1
    %p47 = scmp.eq.s32.totalorder %s9, 1
    %p48 = scmp.ne.s32.totalorder %s43, %s45
    %p49 = scmp.eq.s32.totalorder %s9, 0
    %p50 = por %p48, %p49
    %p51 = scmp.ne.s32.totalorder %s43, %s45
    %p52 = scmp.eq.s32.totalorder %s14, 1
    %p53 = por %p51, %p52
    %p54 = scmp.ne.s32.totalorder %s45, %s46
    %p55 = scmp.eq.s32.totalorder %s14, 0
    %p56 = por %p54, %p55
    %p57 = scmp.ne.s32.totalorder %s45, %s46
    %p58 = scmp.eq.s32.totalorder %s15, 1
    %p59 = por %p57, %p58
    %p61 = scmp.ne.s32.totalorder %s46, %s60
    %p62 = scmp.eq.s32.totalorder %s15, 0
    %p63 = por %p61, %p62
    %s65 = sadd.s32 %s64, 1
    %p68 = scmp.eq.s32.totalorder %s9, 1
    %p69 = scmp.ne.s32.totalorder %s64, %s66
    %p70 = scmp.eq.s32.totalorder %s9, 0
    %p71 = por %p69, %p70
    %p72 = scmp.ne.s32.totalorder %s64, %s66
    %p73 = scmp.eq.s32.totalorder %s14, 1
    %p74 = por %p72, %p73
    %p75 = scmp.ne.s32.totalorder %s66, %s67
    %p76 = scmp.eq.s32.totalorder %s14, 0
    %p77 = por %p75, %p76
    %p78 = scmp.ne.s32.totalorder %s66, %s67
    %p79 = scmp.eq.s32.totalorder %s15, 1
    %p80 = por %p78, %p79
    %p82 = scmp.ne.s32.totalorder %s67, %s81
    %p83 = scmp.eq.s32.totalorder %s15, 0
    %p84 = por %p82, %p83
    %s85 = ssub.s32 %s9, %s16
    %p86 = scmp.eq.s32.totalorder %s85, 0
    %s88 = sadd.s32 %s87, 1
    %s89 = scalar_select %p86, %s87, %s88
    %p92 = pneg %p86
    %p93 = scmp.eq.s32.totalorder %s9, 1
    %p94 = por %p92, %p93
    %p95 = scmp.ne.s32.totalorder %s87, %s90
    %p96 = scmp.eq.s32.totalorder %s9, 0
    %p97 = por %p95, %p96
    %p98 = scmp.ne.s32.totalorder %s87, %s90
    %p99 = scmp.eq.s32.totalorder %s14, 1
    %p100 = por %p98, %p99
    %p101 = scmp.ne.s32.totalorder %s90, %s91
    %p102 = scmp.eq.s32.totalorder %s14, 0
    %p103 = por %p101, %p102
    %p104 = scmp.ne.s32.totalorder %s90, %s91
    %p105 = scmp.eq.s32.totalorder %s15, 1
    %p106 = por %p104, %p105
    %p108 = scmp.ne.s32.totalorder %s91, %s107
    %p109 = scmp.eq.s32.totalorder %s15, 0
    %p110 = por %p108, %p109
    %p111 = scmp.le.s32.totalorder 1, %s9
    %p112 = scmp.lt.s32.totalorder %s9, 3
    %p113 = pnand %p111, %p112
    %p114 = pneg %p113
    // Predicated region
    $region9: #{_lambda_.4} parent=5 // pred_check
      _
    $region10: #{_lambda_.4} parent=5 // pred_check_branch
      %116 = sbr.rel (%p113) target = $region12
    $region11: #{_lambda_.4} parent=5 // pred_region
      %s117 = ssub.s32 %s9, 1
      // Predicated region
      $region13: #{_lambda_.4} parent=11 // pred_check
        %p118 = pneg %p56
      $region14: #{_lambda_.4} parent=11 // pred_check_branch
        %120 = sbr.rel (%p118) target = $region16
      $region15: #{_lambda_.4} parent=11 // pred_region
        _
      $region16: #{_lambda_.4} parent=11 // pred_fallthru
        _
      // Predicated region
      $region17: #{_lambda_.4} parent=11 // pred_check
        %p121 = pneg %p77
      $region18: #{_lambda_.4} parent=11 // pred_check_branch
        %123 = sbr.rel (%p121) target = $region20
      $region19: #{_lambda_.4} parent=11 // pred_region
        _
      $region20: #{_lambda_.4} parent=11 // pred_fallthru
        _
    $region12: #{_lambda_.4} parent=5 // pred_fallthru
      _
    %p124 = scmp.lt.s32.totalorder %s9, 2
    // Predicated region
    $region21: #{_lambda_.4} parent=5 // pred_check
      %p125 = pneg %p124
    $region22: #{_lambda_.4} parent=5 // pred_check_branch
      %127 = sbr.rel (%p125) target = $region24
    $region23: #{_lambda_.4} parent=5 // pred_region
      // Predicated region
      $region25: #{_lambda_.4} parent=23 // pred_check
        %p128 = pneg %p29
      $region26: #{_lambda_.4} parent=23 // pred_check_branch
        %130 = sbr.rel (%p128) target = $region28
      $region27: #{_lambda_.4} parent=23 // pred_region
        %p131 = scmp.lt.s32.totalorder %s9, 1
        %s132 = scalar_select %p131, %s9, 1
        %s133 = smul.addr %s132, 12
        %s134 = smul.addr %s133, 4
        %s135 = scalar_lea.vmem %s0, %s134
      $region28: #{_lambda_.4} parent=23 // pred_fallthru
        _
    $region24: #{_lambda_.4} parent=5 // pred_fallthru
      _
    %p136 = scmp.le.s32.totalorder 1, %s9
    %p137 = scmp.lt.s32.totalorder %s9, 3
    %p138 = pnand %p136, %p137
    %p139 = pneg %p138
    // Predicated region
    $region29: #{_lambda_.4} parent=5 // pred_check
      _
    $region30: #{_lambda_.4} parent=5 // pred_check_branch
      %141 = sbr.rel (%p138) target = $region32
    $region31: #{_lambda_.4} parent=5 // pred_region
      %s142 = ssub.s32 %s9, 1
      %p143 = scmp.lt.s32.totalorder %s14, 1
      %s144 = scalar_select %p143, %s14, 1
      %s145 = smul.addr %s144, 12
      %s146 = smul.addr %s145, 4
      %s147 = scalar_lea.vmem %s0, %s146
      %p148 = pneg %p35
      %p149 = pneg %p32
      %p150 = pneg %p56
      %p151 = pneg %p53
      %p152 = pneg %p77
      %p153 = pneg %p74
      %p154 = pneg %p103
      %p155 = pneg %p100
      %p156 = scmp.lt.s32.totalorder %s14, 1
      %s157 = scalar_select %p156, %s14, 1
      %s158 = smul.addr %s157, 6
      %s159 = smul.addr %s158, 4
      %s160 = scalar_lea.vmem %s3, %s159
      %p161 = scmp.lt.s32.totalorder %s14, 1
      %s162 = scalar_select %p161, %s14, 1
      %s163 = smul.addr %s162, 12
      %s164 = smul.addr %s163, 4
      %s165 = scalar_lea.vmem %s0, %s164
      %p166 = scmp.lt.s32.totalorder %s14, 1
      %s167 = scalar_select %p166, %s14, 1
      %s168 = smul.addr %s167, 6
      %s169 = smul.addr %s168, 4
      %s170 = scalar_lea.vmem %s3, %s169
      %v172 = vld [vmem:[%s2] sm:$0x7]
      %v173 = vld [vmem:[%s165] sm:$0xff]
      %v174 = vld [vmem:[%s165 + $0x8] sm:$0xff]
      %v175 = vld [vmem:[%s165 + $0x10] sm:$0xff]
      %v176 = vld [vmem:[%s165 + $0x18] sm:$0x11]
      %v177 = vld [vmem:[%s165 + $0x20] sm:$0x11]
      %v178 = vld [vmem:[%s165 + $0x28] sm:$0x11]
      %v179 = vld [vmem:[%s1] sm:$0xff]
      %v180 = vld [vmem:[%s1 + $0x8] sm:$0xf]
      %v181 = vld [vmem:[%s1 + $0xc] sm:$0xff]
      %v182 = vld [vmem:[%s1 + $0x14] sm:$0xf]
      %v183 = vld [vmem:[%s1 + $0x18] sm:$0xff]
      %v184 = vld [vmem:[%s1 + $0x20] sm:$0xf]
      %v185 = vld [vmem:[%s1 + $0x24] sm:$0xff]
      %v186 = vld [vmem:[%s1 + $0x2c] sm:$0xf]
      %v187 = vld [vmem:[%s1 + $0x30] sm:$0xff]
      %v188 = vld [vmem:[%s1 + $0x38] sm:$0xf]
      %v189 = vld [vmem:[%s1 + $0x3c] sm:$0xff]
      %v190 = vld [vmem:[%s1 + $0x44] sm:$0xf]
      %v191 = vld [vmem:[%s1 + $0x48] sm:$0xff]
      %v192 = vld [vmem:[%s1 + $0x50] sm:$0xf]
      %v193 = vld [vmem:[%s1 + $0x54] sm:$0xff]
      %v194 = vld [vmem:[%s1 + $0x5c] sm:$0xf]
      %v195 = vld [vmem:[%s1 + $0x60] sm:$0xff]
      %v196 = vld [vmem:[%s1 + $0x68] sm:$0xf]
      %v197 = vld [vmem:[%s1 + $0x6c] sm:$0xff]
      %v198 = vld [vmem:[%s1 + $0x74] sm:$0xf]
      %v199 = vld [vmem:[%s1 + $0x78] sm:$0xff]
      %v200 = vld [vmem:[%s1 + $0x80] sm:$0xf]
      %v201 = vld [vmem:[%s1 + $0x84] sm:$0xff]
      %v202 = vld [vmem:[%s1 + $0x8c] sm:$0xf]
      %v203 = vld [vmem:[%s1 + $0x90] sm:$0xff]
      %v204 = vld [vmem:[%s1 + $0x98] sm:$0xf]
      %v205 = vld [vmem:[%s1 + $0x9c] sm:$0xff]
      %v206 = vld [vmem:[%s1 + $0xa4] sm:$0xf]
      %v207 = vld [vmem:[%s1 + $0xa8] sm:$0xff]
      %v208 = vld [vmem:[%s1 + $0xb0] sm:$0xf]
      %v209 = vld [vmem:[%s1 + $0xb4] sm:$0xff]
      %v210 = vld [vmem:[%s1 + $0xbc] sm:$0xf]
      %v211 = vld [vmem:[%s1 + $0xc0] sm:$0xff]
      %v212 = vld [vmem:[%s1 + $0xc8] sm:$0xf]
      %v213 = vld [vmem:[%s1 + $0xcc] sm:$0xff]
      %v214 = vld [vmem:[%s1 + $0xd4] sm:$0xf]
      %v215 = vld [vmem:[%s1 + $0xd8] sm:$0xff]
      %v216 = vld [vmem:[%s1 + $0xe0] sm:$0xf]
      %v217 = vld [vmem:[%s1 + $0xe4] sm:$0xff]
      %v218 = vld [vmem:[%s1 + $0xec] sm:$0xf]
      %v219 = vld [vmem:[%s1 + $0xf0] sm:$0xff]
      %v220 = vld [vmem:[%s1 + $0xf8] sm:$0xf]
      %v221 = vld [vmem:[%s1 + $0xfc] sm:$0xff]
      %v222 = vld [vmem:[%s1 + $0x104] sm:$0xf]
      %v223 = vld [vmem:[%s1 + $0x108] sm:$0xff]
      %v224 = vld [vmem:[%s1 + $0x110] sm:$0xf]
      %v225 = vld [vmem:[%s1 + $0x114] sm:$0xff]
      %v226 = vld [vmem:[%s1 + $0x11c] sm:$0xf]
      %v227 = vld [vmem:[%s1 + $0x120] sm:$0xff]
      %v228 = vld [vmem:[%s1 + $0x128] sm:$0xf]
      %v229 = vld [vmem:[%s1 + $0x12c] sm:$0xff]
      %v230 = vld [vmem:[%s1 + $0x134] sm:$0xf]
      %v231 = vld [vmem:[%s1 + $0x138] sm:$0xff]
      %v232 = vld [vmem:[%s1 + $0x140] sm:$0xf]
      %v233 = vld [vmem:[%s1 + $0x144] sm:$0xff]
      %v234 = vld [vmem:[%s1 + $0x14c] sm:$0xf]
      %v235 = vld [vmem:[%s1 + $0x150] sm:$0xff]
      %v236 = vld [vmem:[%s1 + $0x158] sm:$0xf]
      %v237 = vld [vmem:[%s1 + $0x15c] sm:$0xff]
      %v238 = vld [vmem:[%s1 + $0x164] sm:$0xf]
      %v239 = vld [vmem:[%s1 + $0x168] sm:$0xff]
      %v240 = vld [vmem:[%s1 + $0x170] sm:$0xf]
      %v241 = vld [vmem:[%s1 + $0x174] sm:$0xff]
      %v242 = vld [vmem:[%s1 + $0x17c] sm:$0xf]
      %v243 = vld [vmem:[%s1 + $0x180] sm:$0xff]
      %v244 = vld [vmem:[%s1 + $0x188] sm:$0xf]
      %v245 = vld [vmem:[%s1 + $0x18c] sm:$0xff]
      %v246 = vld [vmem:[%s1 + $0x194] sm:$0xf]
      %v247 = vld [vmem:[%s1 + $0x198] sm:$0xff]
      %v248 = vld [vmem:[%s1 + $0x1a0] sm:$0xf]
      %v249 = vld [vmem:[%s1 + $0x1a4] sm:$0xff]
      %v250 = vld [vmem:[%s1 + $0x1ac] sm:$0xf]
      %v251 = vld [vmem:[%s1 + $0x1b0] sm:$0xff]
      %v252 = vld [vmem:[%s1 + $0x1b8] sm:$0xf]
      %v253 = vld [vmem:[%s1 + $0x1bc] sm:$0xff]
      %v254 = vld [vmem:[%s1 + $0x1c4] sm:$0xf]
      %v255 = vld [vmem:[%s1 + $0x1c8] sm:$0xff]
      %v256 = vld [vmem:[%s1 + $0x1d0] sm:$0xf]
      %v257 = vld [vmem:[%s1 + $0x1d4] sm:$0xff]
      %v258 = vld [vmem:[%s1 + $0x1dc] sm:$0xf]
      %v259 = vld [vmem:[%s1 + $0x1e0] sm:$0xff]
      %v260 = vld [vmem:[%s1 + $0x1e8] sm:$0xf]
      %v261 = vld [vmem:[%s1 + $0x1ec] sm:$0xff]
      %v262 = vld [vmem:[%s1 + $0x1f4] sm:$0xf]
      %v263 = vld [vmem:[%s1 + $0x1f8] sm:$0xff]
      %v264 = vld [vmem:[%s1 + $0x200] sm:$0xf]
      %v265 = vld [vmem:[%s1 + $0x204] sm:$0xff]
      %v266 = vld [vmem:[%s1 + $0x20c] sm:$0xf]
      %v267 = vld [vmem:[%s1 + $0x210] sm:$0xff]
      %v268 = vld [vmem:[%s1 + $0x218] sm:$0xf]
      %v269 = vld [vmem:[%s1 + $0x21c] sm:$0xff]
      %v270 = vld [vmem:[%s1 + $0x224] sm:$0xf]
      %v271 = vld [vmem:[%s1 + $0x228] sm:$0xff]
      %v272 = vld [vmem:[%s1 + $0x230] sm:$0xf]
      %v273 = vld [vmem:[%s1 + $0x234] sm:$0xff]
      %v274 = vld [vmem:[%s1 + $0x23c] sm:$0xf]
      %v275 = vld [vmem:[%s1 + $0x240] sm:$0xff]
      %v276 = vld [vmem:[%s1 + $0x248] sm:$0xf]
      %v277 = vld [vmem:[%s1 + $0x24c] sm:$0xff]
      %v278 = vld [vmem:[%s1 + $0x254] sm:$0xf]
      %v279 = vld [vmem:[%s1 + $0x258] sm:$0xff]
      %v280 = vld [vmem:[%s1 + $0x260] sm:$0xf]
      %v281 = vld [vmem:[%s1 + $0x264] sm:$0xff]
      %v282 = vld [vmem:[%s1 + $0x26c] sm:$0xf]
      %v283 = vld [vmem:[%s1 + $0x270] sm:$0xff]
      %v284 = vld [vmem:[%s1 + $0x278] sm:$0xf]
      %v285 = vld [vmem:[%s1 + $0x27c] sm:$0xff]
      %v286 = vld [vmem:[%s1 + $0x284] sm:$0xf]
      %v287 = vld [vmem:[%s1 + $0x288] sm:$0xff]
      %v288 = vld [vmem:[%s1 + $0x290] sm:$0xf]
      %v289 = vld [vmem:[%s1 + $0x294] sm:$0xff]
      %v290 = vld [vmem:[%s1 + $0x29c] sm:$0xf]
      %v291 = vld [vmem:[%s1 + $0x2a0] sm:$0xff]
      %v292 = vld [vmem:[%s1 + $0x2a8] sm:$0xf]
      %v293 = vld [vmem:[%s1 + $0x2ac] sm:$0xff]
      %v294 = vld [vmem:[%s1 + $0x2b4] sm:$0xf]
      %v295 = vld [vmem:[%s1 + $0x2b8] sm:$0xff]
      %v296 = vld [vmem:[%s1 + $0x2c0] sm:$0xf]
      %v297 = vld [vmem:[%s1 + $0x2c4] sm:$0xff]
      %v298 = vld [vmem:[%s1 + $0x2cc] sm:$0xf]
      %v299 = vld [vmem:[%s1 + $0x2d0] sm:$0xff]
      %v300 = vld [vmem:[%s1 + $0x2d8] sm:$0xf]
      %v301 = vld [vmem:[%s1 + $0x2dc] sm:$0xff]
      %v302 = vld [vmem:[%s1 + $0x2e4] sm:$0xf]
      %v303 = vld [vmem:[%s1 + $0x2e8] sm:$0xff]
      %v304 = vld [vmem:[%s1 + $0x2f0] sm:$0xf]
      %v305 = vld [vmem:[%s1 + $0x2f4] sm:$0xff]
      %v306 = vld [vmem:[%s1 + $0x2fc] sm:$0xf]
      %v307 = vld [vmem:[%s1 + $0x300] sm:$0xff]
      %v308 = vld [vmem:[%s1 + $0x308] sm:$0xf]
      %v309 = vld [vmem:[%s1 + $0x30c] sm:$0xff]
      %v310 = vld [vmem:[%s1 + $0x314] sm:$0xf]
      %v311 = vld [vmem:[%s1 + $0x318] sm:$0xff]
      %v312 = vld [vmem:[%s1 + $0x320] sm:$0xf]
      %v313 = vld [vmem:[%s1 + $0x324] sm:$0xff]
      %v314 = vld [vmem:[%s1 + $0x32c] sm:$0xf]
      %v315 = vld [vmem:[%s1 + $0x330] sm:$0xff]
      %v316 = vld [vmem:[%s1 + $0x338] sm:$0xf]
      %v317 = vld [vmem:[%s1 + $0x33c] sm:$0xff]
      %v318 = vld [vmem:[%s1 + $0x344] sm:$0xf]
      %v319 = vld [vmem:[%s1 + $0x348] sm:$0xff]
      %v320 = vld [vmem:[%s1 + $0x350] sm:$0xf]
      %v321 = vld [vmem:[%s1 + $0x354] sm:$0xff]
      %v322 = vld [vmem:[%s1 + $0x35c] sm:$0xf]
      %v323 = vld [vmem:[%s1 + $0x360] sm:$0xff]
      %v324 = vld [vmem:[%s1 + $0x368] sm:$0xf]
      %v325 = vld [vmem:[%s1 + $0x36c] sm:$0xff]
      %v326 = vld [vmem:[%s1 + $0x374] sm:$0xf]
      %v327 = vld [vmem:[%s1 + $0x378] sm:$0xff]
      %v328 = vld [vmem:[%s1 + $0x380] sm:$0xf]
      %v329 = vld [vmem:[%s1 + $0x384] sm:$0xff]
      %v330 = vld [vmem:[%s1 + $0x38c] sm:$0xf]
      %v331 = vld [vmem:[%s1 + $0x390] sm:$0xff]
      %v332 = vld [vmem:[%s1 + $0x398] sm:$0xf]
      %v333 = vld [vmem:[%s1 + $0x39c] sm:$0xff]
      %v334 = vld [vmem:[%s1 + $0x3a4] sm:$0xf]
      %v335 = vld [vmem:[%s1 + $0x3a8] sm:$0xff]
      %v336 = vld [vmem:[%s1 + $0x3b0] sm:$0xf]
      %v337 = vld [vmem:[%s1 + $0x3b4] sm:$0xff]
      %v338 = vld [vmem:[%s1 + $0x3bc] sm:$0xf]
      %v339 = vld [vmem:[%s1 + $0x3c0] sm:$0xff]
      %v340 = vld [vmem:[%s1 + $0x3c8] sm:$0xf]
      %v341 = vld [vmem:[%s1 + $0x3cc] sm:$0xff]
      %v342 = vld [vmem:[%s1 + $0x3d4] sm:$0xf]
      %v343 = vld [vmem:[%s1 + $0x3d8] sm:$0xff]
      %v344 = vld [vmem:[%s1 + $0x3e0] sm:$0xf]
      %v345 = vld [vmem:[%s1 + $0x3e4] sm:$0xff]
      %v346 = vld [vmem:[%s1 + $0x3ec] sm:$0xf]
      %v347 = vld [vmem:[%s1 + $0x3f0] sm:$0xff]
      %v348 = vld [vmem:[%s1 + $0x3f8] sm:$0xf]
      %v349 = vld [vmem:[%s1 + $0x3fc] sm:$0xff]
      %v350 = vld [vmem:[%s1 + $0x404] sm:$0xf]
      %v351 = vld [vmem:[%s1 + $0x408] sm:$0xff]
      %v352 = vld [vmem:[%s1 + $0x410] sm:$0xf]
      %v353 = vld [vmem:[%s1 + $0x414] sm:$0xff]
      %v354 = vld [vmem:[%s1 + $0x41c] sm:$0xf]
      %v355 = vld [vmem:[%s165 + $0x18] sm:$0x33]
      %v356 = vld [vmem:[%s165 + $0x20] sm:$0x33]
      %v357 = vld [vmem:[%s165 + $0x28] sm:$0x33]
      %s358 = scalar_lea.vmem %s1, 1056
      %v359 = vld [vmem:[%s358] sm:$0xff]
      %v360 = vld [vmem:[%s358 + $0x8] sm:$0xf]
      %v361 = vld [vmem:[%s358 + $0xc] sm:$0xff]
      %v362 = vld [vmem:[%s358 + $0x14] sm:$0xf]
      %v363 = vld [vmem:[%s358 + $0x18] sm:$0xff]
      %v364 = vld [vmem:[%s358 + $0x20] sm:$0xf]
      %v365 = vld [vmem:[%s358 + $0x24] sm:$0xff]
      %v366 = vld [vmem:[%s358 + $0x2c] sm:$0xf]
      %v367 = vld [vmem:[%s358 + $0x30] sm:$0xff]
      %v368 = vld [vmem:[%s358 + $0x38] sm:$0xf]
      %v369 = vld [vmem:[%s358 + $0x3c] sm:$0xff]
      %v370 = vld [vmem:[%s358 + $0x44] sm:$0xf]
      %v371 = vld [vmem:[%s358 + $0x48] sm:$0xff]
      %v372 = vld [vmem:[%s358 + $0x50] sm:$0xf]
      %v373 = vld [vmem:[%s358 + $0x54] sm:$0xff]
      %v374 = vld [vmem:[%s358 + $0x5c] sm:$0xf]
      %v375 = vld [vmem:[%s358 + $0x60] sm:$0xff]
      %v376 = vld [vmem:[%s358 + $0x68] sm:$0xf]
      %v377 = vld [vmem:[%s358 + $0x6c] sm:$0xff]
      %v378 = vld [vmem:[%s358 + $0x74] sm:$0xf]
      %v379 = vld [vmem:[%s358 + $0x78] sm:$0xff]
      %v380 = vld [vmem:[%s358 + $0x80] sm:$0xf]
      %v381 = vld [vmem:[%s358 + $0x84] sm:$0xff]
      %v382 = vld [vmem:[%s358 + $0x8c] sm:$0xf]
      %v383 = vld [vmem:[%s358 + $0x90] sm:$0xff]
      %v384 = vld [vmem:[%s358 + $0x98] sm:$0xf]
      %v385 = vld [vmem:[%s358 + $0x9c] sm:$0xff]
      %v386 = vld [vmem:[%s358 + $0xa4] sm:$0xf]
      %v387 = vld [vmem:[%s358 + $0xa8] sm:$0xff]
      %v388 = vld [vmem:[%s358 + $0xb0] sm:$0xf]
      %v389 = vld [vmem:[%s358 + $0xb4] sm:$0xff]
      %v390 = vld [vmem:[%s358 + $0xbc] sm:$0xf]
      %v391 = vld [vmem:[%s358 + $0xc0] sm:$0xff]
      %v392 = vld [vmem:[%s358 + $0xc8] sm:$0xf]
      %v393 = vld [vmem:[%s358 + $0xcc] sm:$0xff]
      %v394 = vld [vmem:[%s358 + $0xd4] sm:$0xf]
      %v395 = vld [vmem:[%s358 + $0xd8] sm:$0xff]
      %v396 = vld [vmem:[%s358 + $0xe0] sm:$0xf]
      %v397 = vld [vmem:[%s358 + $0xe4] sm:$0xff]
      %v398 = vld [vmem:[%s358 + $0xec] sm:$0xf]
      %v399 = vld [vmem:[%s358 + $0xf0] sm:$0xff]
      %v400 = vld [vmem:[%s358 + $0xf8] sm:$0xf]
      %v401 = vld [vmem:[%s358 + $0xfc] sm:$0xff]
      %v402 = vld [vmem:[%s358 + $0x104] sm:$0xf]
      %v403 = vld [vmem:[%s358 + $0x108] sm:$0xff]
      %v404 = vld [vmem:[%s358 + $0x110] sm:$0xf]
      %v405 = vld [vmem:[%s358 + $0x114] sm:$0xff]
      %v406 = vld [vmem:[%s358 + $0x11c] sm:$0xf]
      %v407 = vld [vmem:[%s358 + $0x120] sm:$0xff]
      %v408 = vld [vmem:[%s358 + $0x128] sm:$0xf]
      %v409 = vld [vmem:[%s358 + $0x12c] sm:$0xff]
      %v410 = vld [vmem:[%s358 + $0x134] sm:$0xf]
      %v411 = vld [vmem:[%s358 + $0x138] sm:$0xff]
      %v412 = vld [vmem:[%s358 + $0x140] sm:$0xf]
      %v413 = vld [vmem:[%s358 + $0x144] sm:$0xff]
      %v414 = vld [vmem:[%s358 + $0x14c] sm:$0xf]
      %v415 = vld [vmem:[%s358 + $0x150] sm:$0xff]
      %v416 = vld [vmem:[%s358 + $0x158] sm:$0xf]
      %v417 = vld [vmem:[%s358 + $0x15c] sm:$0xff]
      %v418 = vld [vmem:[%s358 + $0x164] sm:$0xf]
      %v419 = vld [vmem:[%s358 + $0x168] sm:$0xff]
      %v420 = vld [vmem:[%s358 + $0x170] sm:$0xf]
      %v421 = vld [vmem:[%s358 + $0x174] sm:$0xff]
      %v422 = vld [vmem:[%s358 + $0x17c] sm:$0xf]
      %v423 = vld [vmem:[%s358 + $0x180] sm:$0xff]
      %v424 = vld [vmem:[%s358 + $0x188] sm:$0xf]
      %v425 = vld [vmem:[%s358 + $0x18c] sm:$0xff]
      %v426 = vld [vmem:[%s358 + $0x194] sm:$0xf]
      %v427 = vld [vmem:[%s358 + $0x198] sm:$0xff]
      %v428 = vld [vmem:[%s358 + $0x1a0] sm:$0xf]
      %v429 = vld [vmem:[%s358 + $0x1a4] sm:$0xff]
      %v430 = vld [vmem:[%s358 + $0x1ac] sm:$0xf]
      %v431 = vld [vmem:[%s358 + $0x1b0] sm:$0xff]
      %v432 = vld [vmem:[%s358 + $0x1b8] sm:$0xf]
      %v433 = vld [vmem:[%s358 + $0x1bc] sm:$0xff]
      %v434 = vld [vmem:[%s358 + $0x1c4] sm:$0xf]
      %v435 = vld [vmem:[%s358 + $0x1c8] sm:$0xff]
      %v436 = vld [vmem:[%s358 + $0x1d0] sm:$0xf]
      %v437 = vld [vmem:[%s358 + $0x1d4] sm:$0xff]
      %v438 = vld [vmem:[%s358 + $0x1dc] sm:$0xf]
      %v439 = vld [vmem:[%s358 + $0x1e0] sm:$0xff]
      %v440 = vld [vmem:[%s358 + $0x1e8] sm:$0xf]
      %v441 = vld [vmem:[%s358 + $0x1ec] sm:$0xff]
      %v442 = vld [vmem:[%s358 + $0x1f4] sm:$0xf]
      %v443 = vld [vmem:[%s358 + $0x1f8] sm:$0xff]
      %v444 = vld [vmem:[%s358 + $0x200] sm:$0xf]
      %v445 = vld [vmem:[%s358 + $0x204] sm:$0xff]
      %v446 = vld [vmem:[%s358 + $0x20c] sm:$0xf]
      %v447 = vld [vmem:[%s358 + $0x210] sm:$0xff]
      %v448 = vld [vmem:[%s358 + $0x218] sm:$0xf]
      %v449 = vld [vmem:[%s358 + $0x21c] sm:$0xff]
      %v450 = vld [vmem:[%s358 + $0x224] sm:$0xf]
      %v451 = vld [vmem:[%s358 + $0x228] sm:$0xff]
      %v452 = vld [vmem:[%s358 + $0x230] sm:$0xf]
      %v453 = vld [vmem:[%s358 + $0x234] sm:$0xff]
      %v454 = vld [vmem:[%s358 + $0x23c] sm:$0xf]
      %v455 = vld [vmem:[%s358 + $0x240] sm:$0xff]
      %v456 = vld [vmem:[%s358 + $0x248] sm:$0xf]
      %v457 = vld [vmem:[%s358 + $0x24c] sm:$0xff]
      %v458 = vld [vmem:[%s358 + $0x254] sm:$0xf]
      %v459 = vld [vmem:[%s358 + $0x258] sm:$0xff]
      %v460 = vld [vmem:[%s358 + $0x260] sm:$0xf]
      %v461 = vld [vmem:[%s358 + $0x264] sm:$0xff]
      %v462 = vld [vmem:[%s358 + $0x26c] sm:$0xf]
      %v463 = vld [vmem:[%s358 + $0x270] sm:$0xff]
      %v464 = vld [vmem:[%s358 + $0x278] sm:$0xf]
      %v465 = vld [vmem:[%s358 + $0x27c] sm:$0xff]
      %v466 = vld [vmem:[%s358 + $0x284] sm:$0xf]
      %v467 = vld [vmem:[%s358 + $0x288] sm:$0xff]
      %v468 = vld [vmem:[%s358 + $0x290] sm:$0xf]
      %v469 = vld [vmem:[%s358 + $0x294] sm:$0xff]
      %v470 = vld [vmem:[%s358 + $0x29c] sm:$0xf]
      %v471 = vld [vmem:[%s358 + $0x2a0] sm:$0xff]
      %v472 = vld [vmem:[%s358 + $0x2a8] sm:$0xf]
      %v473 = vld [vmem:[%s358 + $0x2ac] sm:$0xff]
      %v474 = vld [vmem:[%s358 + $0x2b4] sm:$0xf]
      %v475 = vld [vmem:[%s358 + $0x2b8] sm:$0xff]
      %v476 = vld [vmem:[%s358 + $0x2c0] sm:$0xf]
      %v477 = vld [vmem:[%s358 + $0x2c4] sm:$0xff]
      %v478 = vld [vmem:[%s358 + $0x2cc] sm:$0xf]
      %v479 = vld [vmem:[%s358 + $0x2d0] sm:$0xff]
      %v480 = vld [vmem:[%s358 + $0x2d8] sm:$0xf]
      %v481 = vld [vmem:[%s358 + $0x2dc] sm:$0xff]
      %v482 = vld [vmem:[%s358 + $0x2e4] sm:$0xf]
      %v483 = vld [vmem:[%s358 + $0x2e8] sm:$0xff]
      %v484 = vld [vmem:[%s358 + $0x2f0] sm:$0xf]
      %v485 = vld [vmem:[%s358 + $0x2f4] sm:$0xff]
      %v486 = vld [vmem:[%s358 + $0x2fc] sm:$0xf]
      %v487 = vld [vmem:[%s358 + $0x300] sm:$0xff]
      %v488 = vld [vmem:[%s358 + $0x308] sm:$0xf]
      %v489 = vld [vmem:[%s358 + $0x30c] sm:$0xff]
      %v490 = vld [vmem:[%s358 + $0x314] sm:$0xf]
      %v491 = vld [vmem:[%s358 + $0x318] sm:$0xff]
      %v492 = vld [vmem:[%s358 + $0x320] sm:$0xf]
      %v493 = vld [vmem:[%s358 + $0x324] sm:$0xff]
      %v494 = vld [vmem:[%s358 + $0x32c] sm:$0xf]
      %v495 = vld [vmem:[%s358 + $0x330] sm:$0xff]
      %v496 = vld [vmem:[%s358 + $0x338] sm:$0xf]
      %v497 = vld [vmem:[%s358 + $0x33c] sm:$0xff]
      %v498 = vld [vmem:[%s358 + $0x344] sm:$0xf]
      %v499 = vld [vmem:[%s358 + $0x348] sm:$0xff]
      %v500 = vld [vmem:[%s358 + $0x350] sm:$0xf]
      %v501 = vld [vmem:[%s358 + $0x354] sm:$0xff]
      %v502 = vld [vmem:[%s358 + $0x35c] sm:$0xf]
      %v503 = vld [vmem:[%s358 + $0x360] sm:$0xff]
      %v504 = vld [vmem:[%s358 + $0x368] sm:$0xf]
      %v505 = vld [vmem:[%s358 + $0x36c] sm:$0xff]
      %v506 = vld [vmem:[%s358 + $0x374] sm:$0xf]
      %v507 = vld [vmem:[%s358 + $0x378] sm:$0xff]
      %v508 = vld [vmem:[%s358 + $0x380] sm:$0xf]
      %v509 = vld [vmem:[%s358 + $0x384] sm:$0xff]
      %v510 = vld [vmem:[%s358 + $0x38c] sm:$0xf]
      %v511 = vld [vmem:[%s358 + $0x390] sm:$0xff]
      %v512 = vld [vmem:[%s358 + $0x398] sm:$0xf]
      %v513 = vld [vmem:[%s358 + $0x39c] sm:$0xff]
      %v514 = vld [vmem:[%s358 + $0x3a4] sm:$0xf]
      %v515 = vld [vmem:[%s358 + $0x3a8] sm:$0xff]
      %v516 = vld [vmem:[%s358 + $0x3b0] sm:$0xf]
      %v517 = vld [vmem:[%s358 + $0x3b4] sm:$0xff]
      %v518 = vld [vmem:[%s358 + $0x3bc] sm:$0xf]
      %v519 = vld [vmem:[%s358 + $0x3c0] sm:$0xff]
      %v520 = vld [vmem:[%s358 + $0x3c8] sm:$0xf]
      %v521 = vld [vmem:[%s358 + $0x3cc] sm:$0xff]
      %v522 = vld [vmem:[%s358 + $0x3d4] sm:$0xf]
      %v523 = vld [vmem:[%s358 + $0x3d8] sm:$0xff]
      %v524 = vld [vmem:[%s358 + $0x3e0] sm:$0xf]
      %v525 = vld [vmem:[%s358 + $0x3e4] sm:$0xff]
      %v526 = vld [vmem:[%s358 + $0x3ec] sm:$0xf]
      %v527 = vld [vmem:[%s358 + $0x3f0] sm:$0xff]
      %v528 = vld [vmem:[%s358 + $0x3f8] sm:$0xf]
      %v529 = vld [vmem:[%s358 + $0x3fc] sm:$0xff]
      %v530 = vld [vmem:[%s358 + $0x404] sm:$0xf]
      %v531 = vld [vmem:[%s358 + $0x408] sm:$0xff]
      %v532 = vld [vmem:[%s358 + $0x410] sm:$0xf]
      %v533 = vld [vmem:[%s358 + $0x414] sm:$0xff]
      %v534 = vld [vmem:[%s358 + $0x41c] sm:$0xf]
      %v541 = vunpack.c.l.b16 %v173
      %v542 = vunpack.c.h.b16 %v173
      %v543 = vunpack.c.l.b16 %v174
      %v544 = vunpack.c.h.b16 %v174
      %v545 = vunpack.c.l.b16 %v175
      %v546 = vunpack.c.h.b16 %v175
      %v547 = vunpack.c.l.b16 %v355
      %v548 = vunpack.c.h.b16 %v355
      %v549 = vunpack.c.l.b16 %v356
      %v550 = vunpack.c.h.b16 %v356
      %v551 = vunpack.c.l.b16 %v357
      %v552 = vunpack.c.h.b16 %v357
      %v553 = vpack.c.b16 %v547, %v541
      %v554 = vpack.c.b16 %v548, %v542
      %v555 = vpack.c.b16 %v549, %v543
      %v556 = vpack.c.b16 %v550, %v544
      %v557 = vpack.c.b16 %v551, %v545
      %v558 = vpack.c.b16 %v552, %v546
      %v560 = vshrl.u32 %v553, 16
      %v562 = vshll.u32 %v553, 16
      %v564 = vrot.slane %v562, 1
      %v565 = vor.u32 %v560, %v564
      %v567 = vshrl.u32 %v554, 16
      %v569 = vshll.u32 %v554, 16
      %v571 = vrot.slane %v569, 1
      %v572 = vor.u32 %v567, %v571
      %v574 = vshrl.u32 %v555, 16
      %v576 = vshll.u32 %v555, 16
      %v578 = vrot.slane %v576, 1
      %v579 = vor.u32 %v574, %v578
      %v581 = vshrl.u32 %v556, 16
      %v583 = vshll.u32 %v556, 16
      %v585 = vrot.slane %v583, 1
      %v586 = vor.u32 %v581, %v585
      %v588 = vshrl.u32 %v557, 16
      %v590 = vshll.u32 %v557, 16
      %v592 = vrot.slane %v590, 1
      %v593 = vor.u32 %v588, %v592
      %v595 = vshrl.u32 %v558, 16
      %v597 = vshll.u32 %v558, 16
      %v599 = vrot.slane %v597, 1
      %v600 = vor.u32 %v595, %v599
      %v782 = vunpack.c.l.b16 %v359
      %v783 = vunpack.c.h.b16 %v359
      %v784 = vunpack.c.l.b16 %v360
      %v785 = vunpack.c.l.b16 %v361
      %v786 = vunpack.c.h.b16 %v361
      %v787 = vunpack.c.l.b16 %v362
      %v788 = vunpack.c.l.b16 %v363
      %v789 = vunpack.c.h.b16 %v363
      %v790 = vunpack.c.l.b16 %v364
      %v791 = vunpack.c.l.b16 %v365
      %v792 = vunpack.c.h.b16 %v365
      %v793 = vunpack.c.l.b16 %v366
      %v794 = vunpack.c.l.b16 %v367
      %v795 = vunpack.c.h.b16 %v367
      %v796 = vunpack.c.l.b16 %v368
      %v797 = vunpack.c.l.b16 %v369
      %v798 = vunpack.c.h.b16 %v369
      %v799 = vunpack.c.l.b16 %v370
      %v800 = vunpack.c.l.b16 %v371
      %v801 = vunpack.c.h.b16 %v371
      %v802 = vunpack.c.l.b16 %v372
      %v803 = vunpack.c.l.b16 %v373
      %v804 = vunpack.c.h.b16 %v373
      %v805 = vunpack.c.l.b16 %v374
      %v806 = vunpack.c.l.b16 %v375
      %v807 = vunpack.c.h.b16 %v375
      %v808 = vunpack.c.l.b16 %v376
      %v809 = vunpack.c.l.b16 %v377
      %v810 = vunpack.c.h.b16 %v377
      %v811 = vunpack.c.l.b16 %v378
      %v812 = vunpack.c.l.b16 %v379
      %v813 = vunpack.c.h.b16 %v379
      %v814 = vunpack.c.l.b16 %v380
      %v815 = vunpack.c.l.b16 %v381
      %v816 = vunpack.c.h.b16 %v381
      %v817 = vunpack.c.l.b16 %v382
      %v818 = vunpack.c.l.b16 %v383
      %v819 = vunpack.c.h.b16 %v383
      %v820 = vunpack.c.l.b16 %v384
      %v821 = vunpack.c.l.b16 %v385
      %v822 = vunpack.c.h.b16 %v385
      %v823 = vunpack.c.l.b16 %v386
      %v824 = vunpack.c.l.b16 %v387
      %v825 = vunpack.c.h.b16 %v387
      %v826 = vunpack.c.l.b16 %v388
      %v827 = vunpack.c.l.b16 %v389
      %v828 = vunpack.c.h.b16 %v389
      %v829 = vunpack.c.l.b16 %v390
      %v830 = vunpack.c.l.b16 %v391
      %v831 = vunpack.c.h.b16 %v391
      %v832 = vunpack.c.l.b16 %v392
      %v833 = vunpack.c.l.b16 %v393
      %v834 = vunpack.c.h.b16 %v393
      %v835 = vunpack.c.l.b16 %v394
      %v836 = vunpack.c.l.b16 %v395
      %v837 = vunpack.c.h.b16 %v395
      %v838 = vunpack.c.l.b16 %v396
      %v839 = vunpack.c.l.b16 %v397
      %v840 = vunpack.c.h.b16 %v397
      %v841 = vunpack.c.l.b16 %v398
      %v842 = vunpack.c.l.b16 %v399
      %v843 = vunpack.c.h.b16 %v399
      %v844 = vunpack.c.l.b16 %v400
      %v845 = vunpack.c.l.b16 %v401
      %v846 = vunpack.c.h.b16 %v401
      %v847 = vunpack.c.l.b16 %v402
      %v848 = vunpack.c.l.b16 %v403
      %v849 = vunpack.c.h.b16 %v403
      %v850 = vunpack.c.l.b16 %v404
      %v851 = vunpack.c.l.b16 %v405
      %v852 = vunpack.c.h.b16 %v405
      %v853 = vunpack.c.l.b16 %v406
      %v854 = vunpack.c.l.b16 %v407
      %v855 = vunpack.c.h.b16 %v407
      %v856 = vunpack.c.l.b16 %v408
      %v857 = vunpack.c.l.b16 %v409
      %v858 = vunpack.c.h.b16 %v409
      %v859 = vunpack.c.l.b16 %v410
      %v860 = vunpack.c.l.b16 %v411
      %v861 = vunpack.c.h.b16 %v411
      %v862 = vunpack.c.l.b16 %v412
      %v863 = vunpack.c.l.b16 %v413
      %v864 = vunpack.c.h.b16 %v413
      %v865 = vunpack.c.l.b16 %v414
      %v866 = vunpack.c.l.b16 %v415
      %v867 = vunpack.c.h.b16 %v415
      %v868 = vunpack.c.l.b16 %v416
      %v869 = vunpack.c.l.b16 %v417
      %v870 = vunpack.c.h.b16 %v417
      %v871 = vunpack.c.l.b16 %v418
      %v872 = vunpack.c.l.b16 %v419
      %v873 = vunpack.c.h.b16 %v419
      %v874 = vunpack.c.l.b16 %v420
      %v875 = vunpack.c.l.b16 %v421
      %v876 = vunpack.c.h.b16 %v421
      %v877 = vunpack.c.l.b16 %v422
      %v878 = vunpack.c.l.b16 %v423
      %v879 = vunpack.c.h.b16 %v423
      %v880 = vunpack.c.l.b16 %v424
      %v881 = vunpack.c.l.b16 %v425
      %v882 = vunpack.c.h.b16 %v425
      %v883 = vunpack.c.l.b16 %v426
      %v884 = vunpack.c.l.b16 %v427
      %v885 = vunpack.c.h.b16 %v427
      %v886 = vunpack.c.l.b16 %v428
      %v887 = vunpack.c.l.b16 %v429
      %v888 = vunpack.c.h.b16 %v429
      %v889 = vunpack.c.l.b16 %v430
      %v890 = vunpack.c.l.b16 %v431
      %v891 = vunpack.c.h.b16 %v431
      %v892 = vunpack.c.l.b16 %v432
      %v893 = vunpack.c.l.b16 %v433
      %v894 = vunpack.c.h.b16 %v433
      %v895 = vunpack.c.l.b16 %v434
      %v896 = vunpack.c.l.b16 %v435
      %v897 = vunpack.c.h.b16 %v435
      %v898 = vunpack.c.l.b16 %v436
      %v899 = vunpack.c.l.b16 %v437
      %v900 = vunpack.c.h.b16 %v437
      %v901 = vunpack.c.l.b16 %v438
      %v902 = vunpack.c.l.b16 %v439
      %v903 = vunpack.c.h.b16 %v439
      %v904 = vunpack.c.l.b16 %v440
      %v905 = vunpack.c.l.b16 %v441
      %v906 = vunpack.c.h.b16 %v441
      %v907 = vunpack.c.l.b16 %v442
      %v908 = vunpack.c.l.b16 %v443
      %v909 = vunpack.c.h.b16 %v443
      %v910 = vunpack.c.l.b16 %v444
      %v911 = vunpack.c.l.b16 %v445
      %v912 = vunpack.c.h.b16 %v445
      %v913 = vunpack.c.l.b16 %v446
      %v914 = vunpack.c.l.b16 %v447
      %v915 = vunpack.c.h.b16 %v447
      %v916 = vunpack.c.l.b16 %v448
      %v917 = vunpack.c.l.b16 %v449
      %v918 = vunpack.c.h.b16 %v449
      %v919 = vunpack.c.l.b16 %v450
      %v920 = vunpack.c.l.b16 %v451
      %v921 = vunpack.c.h.b16 %v451
      %v922 = vunpack.c.l.b16 %v452
      %v923 = vunpack.c.l.b16 %v453
      %v924 = vunpack.c.h.b16 %v453
      %v925 = vunpack.c.l.b16 %v454
      %v926 = vunpack.c.l.b16 %v455
      %v927 = vunpack.c.h.b16 %v455
      %v928 = vunpack.c.l.b16 %v456
      %v929 = vunpack.c.l.b16 %v457
      %v930 = vunpack.c.h.b16 %v457
      %v931 = vunpack.c.l.b16 %v458
      %v932 = vunpack.c.l.b16 %v459
      %v933 = vunpack.c.h.b16 %v459
      %v934 = vunpack.c.l.b16 %v460
      %v935 = vunpack.c.l.b16 %v461
      %v936 = vunpack.c.h.b16 %v461
      %v937 = vunpack.c.l.b16 %v462
      %v938 = vunpack.c.l.b16 %v463
      %v939 = vunpack.c.h.b16 %v463
      %v940 = vunpack.c.l.b16 %v464
      %v941 = vunpack.c.l.b16 %v465
      %v942 = vunpack.c.h.b16 %v465
      %v943 = vunpack.c.l.b16 %v466
      %v944 = vunpack.c.l.b16 %v467
      %v945 = vunpack.c.h.b16 %v467
      %v946 = vunpack.c.l.b16 %v468
      %v947 = vunpack.c.l.b16 %v469
      %v948 = vunpack.c.h.b16 %v469
      %v949 = vunpack.c.l.b16 %v470
      %v950 = vunpack.c.l.b16 %v471
      %v951 = vunpack.c.h.b16 %v471
      %v952 = vunpack.c.l.b16 %v472
      %v953 = vunpack.c.l.b16 %v473
      %v954 = vunpack.c.h.b16 %v473
      %v955 = vunpack.c.l.b16 %v474
      %v956 = vunpack.c.l.b16 %v475
      %v957 = vunpack.c.h.b16 %v475
      %v958 = vunpack.c.l.b16 %v476
      %v959 = vunpack.c.l.b16 %v477
      %v960 = vunpack.c.h.b16 %v477
      %v961 = vunpack.c.l.b16 %v478
      %v962 = vunpack.c.l.b16 %v479
      %v963 = vunpack.c.h.b16 %v479
      %v964 = vunpack.c.l.b16 %v480
      %v965 = vunpack.c.l.b16 %v481
      %v966 = vunpack.c.h.b16 %v481
      %v967 = vunpack.c.l.b16 %v482
      %v968 = vunpack.c.l.b16 %v483
      %v969 = vunpack.c.h.b16 %v483
      %v970 = vunpack.c.l.b16 %v484
      %v971 = vunpack.c.l.b16 %v485
      %v972 = vunpack.c.h.b16 %v485
      %v973 = vunpack.c.l.b16 %v486
      %v974 = vunpack.c.l.b16 %v487
      %v975 = vunpack.c.h.b16 %v487
      %v976 = vunpack.c.l.b16 %v488
      %v977 = vunpack.c.l.b16 %v489
      %v978 = vunpack.c.h.b16 %v489
      %v979 = vunpack.c.l.b16 %v490
      %v980 = vunpack.c.l.b16 %v491
      %v981 = vunpack.c.h.b16 %v491
      %v982 = vunpack.c.l.b16 %v492
      %v983 = vunpack.c.l.b16 %v493
      %v984 = vunpack.c.h.b16 %v493
      %v985 = vunpack.c.l.b16 %v494
      %v986 = vunpack.c.l.b16 %v495
      %v987 = vunpack.c.h.b16 %v495
      %v988 = vunpack.c.l.b16 %v496
      %v989 = vunpack.c.l.b16 %v497
      %v990 = vunpack.c.h.b16 %v497
      %v991 = vunpack.c.l.b16 %v498
      %v992 = vunpack.c.l.b16 %v499
      %v993 = vunpack.c.h.b16 %v499
      %v994 = vunpack.c.l.b16 %v500
      %v995 = vunpack.c.l.b16 %v501
      %v996 = vunpack.c.h.b16 %v501
      %v997 = vunpack.c.l.b16 %v502
      %v998 = vunpack.c.l.b16 %v503
      %v999 = vunpack.c.h.b16 %v503
      %v1000 = vunpack.c.l.b16 %v504
      %v1001 = vunpack.c.l.b16 %v505
      %v1002 = vunpack.c.h.b16 %v505
      %v1003 = vunpack.c.l.b16 %v506
      %v1004 = vunpack.c.l.b16 %v507
      %v1005 = vunpack.c.h.b16 %v507
      %v1006 = vunpack.c.l.b16 %v508
      %v1007 = vunpack.c.l.b16 %v509
      %v1008 = vunpack.c.h.b16 %v509
      %v1009 = vunpack.c.l.b16 %v510
      %v1010 = vunpack.c.l.b16 %v511
      %v1011 = vunpack.c.h.b16 %v511
      %v1012 = vunpack.c.l.b16 %v512
      %v1013 = vunpack.c.l.b16 %v513
      %v1014 = vunpack.c.h.b16 %v513
      %v1015 = vunpack.c.l.b16 %v514
      %v1016 = vunpack.c.l.b16 %v515
      %v1017 = vunpack.c.h.b16 %v515
      %v1018 = vunpack.c.l.b16 %v516
      %v1019 = vunpack.c.l.b16 %v517
      %v1020 = vunpack.c.h.b16 %v517
      %v1021 = vunpack.c.l.b16 %v518
      %v1022 = vunpack.c.l.b16 %v519
      %v1023 = vunpack.c.h.b16 %v519
      %v1024 = vunpack.c.l.b16 %v520
      %v1025 = vunpack.c.l.b16 %v521
      %v1026 = vunpack.c.h.b16 %v521
      %v1027 = vunpack.c.l.b16 %v522
      %v1028 = vunpack.c.l.b16 %v523
      %v1029 = vunpack.c.h.b16 %v523
      %v1030 = vunpack.c.l.b16 %v524
      %v1031 = vunpack.c.l.b16 %v525
      %v1032 = vunpack.c.h.b16 %v525
      %v1033 = vunpack.c.l.b16 %v526
      %v1034 = vunpack.c.l.b16 %v527
      %v1035 = vunpack.c.h.b16 %v527
      %v1036 = vunpack.c.l.b16 %v528
      %v1037 = vunpack.c.l.b16 %v529
      %v1038 = vunpack.c.h.b16 %v529
      %v1039 = vunpack.c.l.b16 %v530
      %v1040 = vunpack.c.l.b16 %v531
      %v1041 = vunpack.c.h.b16 %v531
      %v1042 = vunpack.c.l.b16 %v532
      %v1043 = vunpack.c.l.b16 %v533
      %v1044 = vunpack.c.h.b16 %v533
      %v1045 = vunpack.c.l.b16 %v534
      %v1046 = vpack.c.b16 %v785, %v782
      %v1047 = vpack.c.b16 %v786, %v783
      %v1048 = vpack.c.b16 %v787, %v784
      %v1049 = vpack.c.b16 %v791, %v788
      %v1050 = vpack.c.b16 %v792, %v789
      %v1051 = vpack.c.b16 %v793, %v790
      %v1052 = vpack.c.b16 %v797, %v794
      %v1053 = vpack.c.b16 %v798, %v795
      %v1054 = vpack.c.b16 %v799, %v796
      %v1055 = vpack.c.b16 %v803, %v800
      %v1056 = vpack.c.b16 %v804, %v801
      %v1057 = vpack.c.b16 %v805, %v802
      %v1058 = vpack.c.b16 %v809, %v806
      %v1059 = vpack.c.b16 %v810, %v807
      %v1060 = vpack.c.b16 %v811, %v808
      %v1061 = vpack.c.b16 %v815, %v812
      %v1062 = vpack.c.b16 %v816, %v813
      %v1063 = vpack.c.b16 %v817, %v814
      %v1064 = vpack.c.b16 %v821, %v818
      %v1065 = vpack.c.b16 %v822, %v819
      %v1066 = vpack.c.b16 %v823, %v820
      %v1067 = vpack.c.b16 %v827, %v824
      %v1068 = vpack.c.b16 %v828, %v825
      %v1069 = vpack.c.b16 %v829, %v826
      %v1070 = vpack.c.b16 %v833, %v830
      %v1071 = vpack.c.b16 %v834, %v831
      %v1072 = vpack.c.b16 %v835, %v832
      %v1073 = vpack.c.b16 %v839, %v836
      %v1074 = vpack.c.b16 %v840, %v837
      %v1075 = vpack.c.b16 %v841, %v838
      %v1076 = vpack.c.b16 %v845, %v842
      %v1077 = vpack.c.b16 %v846, %v843
      %v1078 = vpack.c.b16 %v847, %v844
      %v1079 = vpack.c.b16 %v851, %v848
      %v1080 = vpack.c.b16 %v852, %v849
      %v1081 = vpack.c.b16 %v853, %v850
      %v1082 = vpack.c.b16 %v857, %v854
      %v1083 = vpack.c.b16 %v858, %v855
      %v1084 = vpack.c.b16 %v859, %v856
      %v1085 = vpack.c.b16 %v863, %v860
      %v1086 = vpack.c.b16 %v864, %v861
      %v1087 = vpack.c.b16 %v865, %v862
      %v1088 = vpack.c.b16 %v869, %v866
      %v1089 = vpack.c.b16 %v870, %v867
      %v1090 = vpack.c.b16 %v871, %v868
      %v1091 = vpack.c.b16 %v875, %v872
      %v1092 = vpack.c.b16 %v876, %v873
      %v1093 = vpack.c.b16 %v877, %v874
      %v1094 = vpack.c.b16 %v881, %v878
      %v1095 = vpack.c.b16 %v882, %v879
      %v1096 = vpack.c.b16 %v883, %v880
      %v1097 = vpack.c.b16 %v887, %v884
      %v1098 = vpack.c.b16 %v888, %v885
      %v1099 = vpack.c.b16 %v889, %v886
      %v1100 = vpack.c.b16 %v893, %v890
      %v1101 = vpack.c.b16 %v894, %v891
      %v1102 = vpack.c.b16 %v895, %v892
      %v1103 = vpack.c.b16 %v899, %v896
      %v1104 = vpack.c.b16 %v900, %v897
      %v1105 = vpack.c.b16 %v901, %v898
      %v1106 = vpack.c.b16 %v905, %v902
      %v1107 = vpack.c.b16 %v906, %v903
      %v1108 = vpack.c.b16 %v907, %v904
      %v1109 = vpack.c.b16 %v911, %v908
      %v1110 = vpack.c.b16 %v912, %v909
      %v1111 = vpack.c.b16 %v913, %v910
      %v1112 = vpack.c.b16 %v917, %v914
      %v1113 = vpack.c.b16 %v918, %v915
      %v1114 = vpack.c.b16 %v919, %v916
      %v1115 = vpack.c.b16 %v923, %v920
      %v1116 = vpack.c.b16 %v924, %v921
      %v1117 = vpack.c.b16 %v925, %v922
      %v1118 = vpack.c.b16 %v929, %v926
      %v1119 = vpack.c.b16 %v930, %v927
      %v1120 = vpack.c.b16 %v931, %v928
      %v1121 = vpack.c.b16 %v935, %v932
      %v1122 = vpack.c.b16 %v936, %v933
      %v1123 = vpack.c.b16 %v937, %v934
      %v1124 = vpack.c.b16 %v941, %v938
      %v1125 = vpack.c.b16 %v942, %v939
      %v1126 = vpack.c.b16 %v943, %v940
      %v1127 = vpack.c.b16 %v947, %v944
      %v1128 = vpack.c.b16 %v948, %v945
      %v1129 = vpack.c.b16 %v949, %v946
      %v1130 = vpack.c.b16 %v953, %v950
      %v1131 = vpack.c.b16 %v954, %v951
      %v1132 = vpack.c.b16 %v955, %v952
      %v1133 = vpack.c.b16 %v959, %v956
      %v1134 = vpack.c.b16 %v960, %v957
      %v1135 = vpack.c.b16 %v961, %v958
      %v1136 = vpack.c.b16 %v965, %v962
      %v1137 = vpack.c.b16 %v966, %v963
      %v1138 = vpack.c.b16 %v967, %v964
      %v1139 = vpack.c.b16 %v971, %v968
      %v1140 = vpack.c.b16 %v972, %v969
      %v1141 = vpack.c.b16 %v973, %v970
      %v1142 = vpack.c.b16 %v977, %v974
      %v1143 = vpack.c.b16 %v978, %v975
      %v1144 = vpack.c.b16 %v979, %v976
      %v1145 = vpack.c.b16 %v983, %v980
      %v1146 = vpack.c.b16 %v984, %v981
      %v1147 = vpack.c.b16 %v985, %v982
      %v1148 = vpack.c.b16 %v989, %v986
      %v1149 = vpack.c.b16 %v990, %v987
      %v1150 = vpack.c.b16 %v991, %v988
      %v1151 = vpack.c.b16 %v995, %v992
      %v1152 = vpack.c.b16 %v996, %v993
      %v1153 = vpack.c.b16 %v997, %v994
      %v1154 = vpack.c.b16 %v1001, %v998
      %v1155 = vpack.c.b16 %v1002, %v999
      %v1156 = vpack.c.b16 %v1003, %v1000
      %v1157 = vpack.c.b16 %v1007, %v1004
      %v1158 = vpack.c.b16 %v1008, %v1005
      %v1159 = vpack.c.b16 %v1009, %v1006
      %v1160 = vpack.c.b16 %v1013, %v1010
      %v1161 = vpack.c.b16 %v1014, %v1011
      %v1162 = vpack.c.b16 %v1015, %v1012
      %v1163 = vpack.c.b16 %v1019, %v1016
      %v1164 = vpack.c.b16 %v1020, %v1017
      %v1165 = vpack.c.b16 %v1021, %v1018
      %v1166 = vpack.c.b16 %v1025, %v1022
      %v1167 = vpack.c.b16 %v1026, %v1023
      %v1168 = vpack.c.b16 %v1027, %v1024
      %v1169 = vpack.c.b16 %v1031, %v1028
      %v1170 = vpack.c.b16 %v1032, %v1029
      %v1171 = vpack.c.b16 %v1033, %v1030
      %v1172 = vpack.c.b16 %v1037, %v1034
      %v1173 = vpack.c.b16 %v1038, %v1035
      %v1174 = vpack.c.b16 %v1039, %v1036
      %v1175 = vpack.c.b16 %v1043, %v1040
      %v1176 = vpack.c.b16 %v1044, %v1041
      %v1177 = vpack.c.b16 %v1045, %v1042
      %vm1310 = vcmask 523264
      %v1312 = vsel %vm1310, %v600, 0
      %1314 = vmatprep.subr.bf16.mxu0 %v1047
      %1315 = vmatpush1.bf16.msra.mxu0 %v1046
      %1316 = vmatprep.subr.bf16.mxu0 %v1050
      %1317 = vmatpush1.bf16.msra.mxu0 %v1049
      %1318 = vmatprep.subr.bf16.mxu0 %v1053
      %1319 = vmatpush1.bf16.msra.mxu0 %v1052
      %1320 = vmatprep.subr.bf16.mxu0 %v1056
      %1321 = vmatpush1.bf16.msra.mxu0 %v1055
      %1322 = vmatprep.subr.bf16.mxu0 %v1059
      %1323 = vmatpush1.bf16.msra.mxu0 %v1058
      %1324 = vmatprep.subr.bf16.mxu0 %v1062
      %1325 = vmatpush1.bf16.msra.mxu0 %v1061
      %1326 = vmatprep.subr.bf16.mxu0 %v1065
      %1327 = vmatpush1.bf16.msra.mxu0 %v1064
      %1328 = vmatprep.subr.bf16.mxu0 %v1068
      %1329 = vmatpush1.bf16.msra.mxu0 %v1067
      %1330 = vmatprep.subr.bf16.mxu0 %v1071
      %1331 = vmatpush1.bf16.msra.mxu0 %v1070
      %1332 = vmatprep.subr.bf16.mxu0 %v1074
      %1333 = vmatpush1.bf16.msra.mxu0 %v1073
      %1334 = vmatprep.subr.bf16.mxu0 %v1077
      %1335 = vmatpush1.bf16.msra.mxu0 %v1076
      %1336 = vmatprep.subr.bf16.mxu0 %v1080
      %1337 = vmatpush1.bf16.msra.mxu0 %v1079
      %1338 = vmatprep.subr.bf16.mxu0 %v1083
      %1339 = vmatpush1.bf16.msra.mxu0 %v1082
      %1340 = vmatprep.subr.bf16.mxu0 %v1086
      %1341 = vmatpush1.bf16.msra.mxu0 %v1085
      %1342 = vmatprep.subr.bf16.mxu0 %v1089
      %1343 = vmatpush1.bf16.msra.mxu0 %v1088
      %1344 = vmatprep.subr.bf16.mxu0 %v1092
      %1345 = vmatpush1.bf16.msra.mxu0 %v1091
      %1346 = vmatprep.mubr.bf16.mxu0 %v572
      %1347 = vmatmul.mubr.bf16.gmra.mrb[0].mxu0 %v565
      %v1348 = vpop.f32.mrb[0].mxu0
      %v1349 = vadd.f32 0.0, %v1348
      %v1350 = vpop.f32.mrb[0].mxu0
      %v1351 = vadd.f32 0.0, %v1350
      %v1352 = vpop.f32.mrb[0].mxu0
      %v1353 = vadd.f32 0.0, %v1352
      %v1354 = vpop.f32.mrb[0].mxu0
      %v1355 = vadd.f32 0.0, %v1354
      %1356 = vdwg.mxu0
      %1357 = vmatprep.subr.bf16.mxu0 %v1095
      %1358 = vmatpush1.bf16.msra.mxu0 %v1094
      %1359 = vmatprep.subr.bf16.mxu0 %v1098
      %1360 = vmatpush1.bf16.msra.mxu0 %v1097
      %1361 = vmatprep.subr.bf16.mxu0 %v1101
      %1362 = vmatpush1.bf16.msra.mxu0 %v1100
      %1363 = vmatprep.subr.bf16.mxu0 %v1104
      %1364 = vmatpush1.bf16.msra.mxu0 %v1103
      %1365 = vmatprep.subr.bf16.mxu0 %v1107
      %1366 = vmatpush1.bf16.msra.mxu0 %v1106
      %1367 = vmatprep.subr.bf16.mxu0 %v1110
      %1368 = vmatpush1.bf16.msra.mxu0 %v1109
      %1369 = vmatprep.subr.bf16.mxu0 %v1113
      %1370 = vmatpush1.bf16.msra.mxu0 %v1112
      %1371 = vmatprep.subr.bf16.mxu0 %v1116
      %1372 = vmatpush1.bf16.msra.mxu0 %v1115
      %1373 = vmatprep.subr.bf16.mxu0 %v1119
      %1374 = vmatpush1.bf16.msra.mxu0 %v1118
      %1375 = vmatprep.subr.bf16.mxu0 %v1122
      %1376 = vmatpush1.bf16.msra.mxu0 %v1121
      %1377 = vmatprep.subr.bf16.mxu0 %v1125
      %1378 = vmatpush1.bf16.msra.mxu0 %v1124
      %1379 = vmatprep.subr.bf16.mxu0 %v1128
      %1380 = vmatpush1.bf16.msra.mxu0 %v1127
      %1381 = vmatprep.subr.bf16.mxu0 %v1131
      %1382 = vmatpush1.bf16.msra.mxu0 %v1130
      %1383 = vmatprep.subr.bf16.mxu0 %v1134
      %1384 = vmatpush1.bf16.msra.mxu0 %v1133
      %1385 = vmatprep.subr.bf16.mxu0 %v1137
      %1386 = vmatpush1.bf16.msra.mxu0 %v1136
      %1387 = vmatprep.subr.bf16.mxu0 %v1140
      %1388 = vmatpush1.bf16.msra.mxu0 %v1139
      %1389 = vmatprep.mubr.bf16.mxu0 %v586
      %1390 = vmatmul.mubr.bf16.gmra.mrb[0].mxu0 %v579
      %v1391 = vpop.f32.mrb[0].mxu0
      %v1392 = vadd.f32 %v1349, %v1391
      %v1393 = vpop.f32.mrb[0].mxu0
      %v1394 = vadd.f32 %v1351, %v1393
      %v1395 = vpop.f32.mrb[0].mxu0
      %v1396 = vadd.f32 %v1353, %v1395
      %v1397 = vpop.f32.mrb[0].mxu0
      %v1398 = vadd.f32 %v1355, %v1397
      %1399 = vdwg.mxu0
      %1400 = vmatprep.subr.bf16.mxu0 %v1143
      %1401 = vmatpush1.bf16.msra.mxu0 %v1142
      %1402 = vmatprep.subr.bf16.mxu0 %v1146
      %1403 = vmatpush1.bf16.msra.mxu0 %v1145
      %1404 = vmatprep.subr.bf16.mxu0 %v1149
      %1405 = vmatpush1.bf16.msra.mxu0 %v1148
      %1406 = vmatprep.subr.bf16.mxu0 %v1152
      %1407 = vmatpush1.bf16.msra.mxu0 %v1151
      %1408 = vmatprep.subr.bf16.mxu0 %v1155
      %1409 = vmatpush1.bf16.msra.mxu0 %v1154
      %1410 = vmatprep.subr.bf16.mxu0 %v1158
      %1411 = vmatpush1.bf16.msra.mxu0 %v1157
      %1412 = vmatprep.subr.bf16.mxu0 %v1161
      %1413 = vmatpush1.bf16.msra.mxu0 %v1160
      %1414 = vmatprep.subr.bf16.mxu0 %v1164
      %1415 = vmatpush1.bf16.msra.mxu0 %v1163
      %1416 = vmatprep.subr.bf16.mxu0 %v1167
      %1417 = vmatpush1.bf16.msra.mxu0 %v1166
      %1418 = vmatprep.subr.bf16.mxu0 %v1170
      %1419 = vmatpush1.bf16.msra.mxu0 %v1169
      %1420 = vmatprep.subr.bf16.mxu0 %v1173
      %1421 = vmatpush1.bf16.msra.mxu0 %v1172
      %1422 = vmatprep.subr.bf16.mxu0 %v1176
      %1423 = vmatpush1.bf16.msra.mxu0 %v1175
      %1424 = vmatprep.subr.bf16.mxu0 0
      %1425 = vmatpush1.bf16.msra.mxu0 0
      %1426 = vmatprep.subr.bf16.mxu0 0
      %1427 = vmatpush1.bf16.msra.mxu0 0
      %1428 = vmatprep.subr.bf16.mxu0 0
      %1429 = vmatpush1.bf16.msra.mxu0 0
      %1430 = vmatprep.subr.bf16.mxu0 0
      %1431 = vmatpush1.bf16.msra.mxu0 0
      %1432 = vmatprep.mubr.bf16.mxu0 %v1312
      %1433 = vmatmul.mubr.bf16.gmra.mrb[0].mxu0 %v593
      %v1434 = vpop.f32.mrb[0].mxu0
      %v1435 = vadd.f32 %v1392, %v1434
      %v1436 = vpop.f32.mrb[0].mxu0
      %v1437 = vadd.f32 %v1394, %v1436
      %v1438 = vpop.f32.mrb[0].mxu0
      %v1439 = vadd.f32 %v1396, %v1438
      %v1440 = vpop.f32.mrb[0].mxu0
      %v1441 = vadd.f32 %v1398, %v1440
      %1442 = vdwg.mxu0
      %1443 = vmatprep.subr.bf16.mxu0 0
      %1444 = vmatpush1.bf16.msra.mxu0 %v1048
      %1445 = vmatprep.subr.bf16.mxu0 0
      %1446 = vmatpush1.bf16.msra.mxu0 %v1051
      %1447 = vmatprep.subr.bf16.mxu0 0
      %1448 = vmatpush1.bf16.msra.mxu0 %v1054
      %1449 = vmatprep.subr.bf16.mxu0 0
      %1450 = vmatpush1.bf16.msra.mxu0 %v1057
      %1451 = vmatprep.subr.bf16.mxu0 0
      %1452 = vmatpush1.bf16.msra.mxu0 %v1060
      %1453 = vmatprep.subr.bf16.mxu0 0
      %1454 = vmatpush1.bf16.msra.mxu0 %v1063
      %1455 = vmatprep.subr.bf16.mxu0 0
      %1456 = vmatpush1.bf16.msra.mxu0 %v1066
      %1457 = vmatprep.subr.bf16.mxu0 0
      %1458 = vmatpush1.bf16.msra.mxu0 %v1069
      %1459 = vmatprep.subr.bf16.mxu0 0
      %1460 = vmatpush1.bf16.msra.mxu0 %v1072
      %1461 = vmatprep.subr.bf16.mxu0 0
      %1462 = vmatpush1.bf16.msra.mxu0 %v1075
      %1463 = vmatprep.subr.bf16.mxu0 0
      %1464 = vmatpush1.bf16.msra.mxu0 %v1078
      %1465 = vmatprep.subr.bf16.mxu0 0
      %1466 = vmatpush1.bf16.msra.mxu0 %v1081
      %1467 = vmatprep.subr.bf16.mxu0 0
      %1468 = vmatpush1.bf16.msra.mxu0 %v1084
      %1469 = vmatprep.subr.bf16.mxu0 0
      %1470 = vmatpush1.bf16.msra.mxu0 %v1087
      %1471 = vmatprep.subr.bf16.mxu0 0
      %1472 = vmatpush1.bf16.msra.mxu0 %v1090
      %1473 = vmatprep.subr.bf16.mxu0 0
      %1474 = vmatpush1.bf16.msra.mxu0 %v1093
      %1475 = vmatprep.mubr.bf16.mxu0 %v572
      %1476 = vmatmul.mubr.bf16.gmra.mrb[0].mxu0 %v565
      %v1477 = vpop.f32.mrb[0].mxu0
      %v1478 = vadd.f32 0.0, %v1477
      %v1479 = vpop.f32.mrb[0].mxu0
      %v1480 = vpop.f32.mrb[0].mxu0
      %v1481 = vadd.f32 0.0, %v1480
      %v1482 = vpop.f32.mrb[0].mxu0
      %1483 = vdwg.mxu0
      %1484 = vmatprep.subr.bf16.mxu0 0
      %1485 = vmatpush1.bf16.msra.mxu0 %v1096
      %1486 = vmatprep.subr.bf16.mxu0 0
      %1487 = vmatpush1.bf16.msra.mxu0 %v1099
      %1488 = vmatprep.subr.bf16.mxu0 0
      %1489 = vmatpush1.bf16.msra.mxu0 %v1102
      %1490 = vmatprep.subr.bf16.mxu0 0
      %1491 = vmatpush1.bf16.msra.mxu0 %v1105
      %1492 = vmatprep.subr.bf16.mxu0 0
      %1493 = vmatpush1.bf16.msra.mxu0 %v1108
      %1494 = vmatprep.subr.bf16.mxu0 0
      %1495 = vmatpush1.bf16.msra.mxu0 %v1111
      %1496 = vmatprep.subr.bf16.mxu0 0
      %1497 = vmatpush1.bf16.msra.mxu0 %v1114
      %1498 = vmatprep.subr.bf16.mxu0 0
      %1499 = vmatpush1.bf16.msra.mxu0 %v1117
      %1500 = vmatprep.subr.bf16.mxu0 0
      %1501 = vmatpush1.bf16.msra.mxu0 %v1120
      %1502 = vmatprep.subr.bf16.mxu0 0
      %1503 = vmatpush1.bf16.msra.mxu0 %v1123
      %1504 = vmatprep.subr.bf16.mxu0 0
      %1505 = vmatpush1.bf16.msra.mxu0 %v1126
      %1506 = vmatprep.subr.bf16.mxu0 0
      %1507 = vmatpush1.bf16.msra.mxu0 %v1129
      %1508 = vmatprep.subr.bf16.mxu0 0
      %1509 = vmatpush1.bf16.msra.mxu0 %v1132
      %1510 = vmatprep.subr.bf16.mxu0 0
      %1511 = vmatpush1.bf16.msra.mxu0 %v1135
      %1512 = vmatprep.subr.bf16.mxu0 0
      %1513 = vmatpush1.bf16.msra.mxu0 %v1138
      %1514 = vmatprep.subr.bf16.mxu0 0
      %1515 = vmatpush1.bf16.msra.mxu0 %v1141
      %1516 = vmatprep.mubr.bf16.mxu0 %v586
      %1517 = vmatmul.mubr.bf16.gmra.mrb[0].mxu0 %v579
      %v1518 = vpop.f32.mrb[0].mxu0
      %v1519 = vadd.f32 %v1478, %v1518
      %v1520 = vpop.f32.mrb[0].mxu0
      %v1521 = vpop.f32.mrb[0].mxu0
      %v1522 = vadd.f32 %v1481, %v1521
      %v1523 = vpop.f32.mrb[0].mxu0
      %1524 = vdwg.mxu0
      %1525 = vmatprep.subr.bf16.mxu0 0
      %1526 = vmatpush1.bf16.msra.mxu0 %v1144
      %1527 = vmatprep.subr.bf16.mxu0 0
      %1528 = vmatpush1.bf16.msra.mxu0 %v1147
      %1529 = vmatprep.subr.bf16.mxu0 0
      %1530 = vmatpush1.bf16.msra.mxu0 %v1150
      %1531 = vmatprep.subr.bf16.mxu0 0
      %1532 = vmatpush1.bf16.msra.mxu0 %v1153
      %1533 = vmatprep.subr.bf16.mxu0 0
      %1534 = vmatpush1.bf16.msra.mxu0 %v1156
      %1535 = vmatprep.subr.bf16.mxu0 0
      %1536 = vmatpush1.bf16.msra.mxu0 %v1159
      %1537 = vmatprep.subr.bf16.mxu0 0
      %1538 = vmatpush1.bf16.msra.mxu0 %v1162
      %1539 = vmatprep.subr.bf16.mxu0 0
      %1540 = vmatpush1.bf16.msra.mxu0 %v1165
      %1541 = vmatprep.subr.bf16.mxu0 0
      %1542 = vmatpush1.bf16.msra.mxu0 %v1168
      %1543 = vmatprep.subr.bf16.mxu0 0
      %1544 = vmatpush1.bf16.msra.mxu0 %v1171
      %1545 = vmatprep.subr.bf16.mxu0 0
      %1546 = vmatpush1.bf16.msra.mxu0 %v1174
      %1547 = vmatprep.subr.bf16.mxu0 0
      %1548 = vmatpush1.bf16.msra.mxu0 %v1177
      %1549 = vmatprep.subr.bf16.mxu0 0
      %1550 = vmatpush1.bf16.msra.mxu0 0
      %1551 = vmatprep.subr.bf16.mxu0 0
      %1552 = vmatpush1.bf16.msra.mxu0 0
      %1553 = vmatprep.subr.bf16.mxu0 0
      %1554 = vmatpush1.bf16.msra.mxu0 0
      %1555 = vmatprep.subr.bf16.mxu0 0
      %1556 = vmatpush1.bf16.msra.mxu0 0
      %1557 = vmatprep.mubr.bf16.mxu0 %v1312
      %1558 = vmatmul.mubr.bf16.gmra.mrb[0].mxu0 %v593
      %v1559 = vpop.f32.mrb[0].mxu0
      %v1560 = vadd.f32 %v1519, %v1559
      %v1561 = vpop.f32.mrb[0].mxu0
      %v1562 = vpop.f32.mrb[0].mxu0
      %v1563 = vadd.f32 %v1522, %v1562
      %v1564 = vpop.f32.mrb[0].mxu0
      %1565 = vdwg.mxu0
      %v1569 = vunpack.c.l.b16 %v176
      %v1570 = vunpack.c.h.b16 %v176
      %v1571 = vunpack.c.l.b16 %v177
      %v1572 = vunpack.c.h.b16 %v177
      %v1573 = vunpack.c.l.b16 %v178
      %v1574 = vunpack.c.h.b16 %v178
      %v1575 = vpack.c.b16 %v1569, %v541
      %v1576 = vpack.c.b16 %v1570, %v542
      %v1577 = vpack.c.b16 %v1571, %v543
      %v1578 = vpack.c.b16 %v1572, %v544
      %v1579 = vpack.c.b16 %v1573, %v545
      %v1580 = vpack.c.b16 %v1574, %v546
      %v1762 = vunpack.c.l.b16 %v179
      %v1763 = vunpack.c.h.b16 %v179
      %v1764 = vunpack.c.l.b16 %v180
      %v1765 = vunpack.c.l.b16 %v181
      %v1766 = vunpack.c.h.b16 %v181
      %v1767 = vunpack.c.l.b16 %v182
      %v1768 = vunpack.c.l.b16 %v183
      %v1769 = vunpack.c.h.b16 %v183
      %v1770 = vunpack.c.l.b16 %v184
      %v1771 = vunpack.c.l.b16 %v185
      %v1772 = vunpack.c.h.b16 %v185
      %v1773 = vunpack.c.l.b16 %v186
      %v1774 = vunpack.c.l.b16 %v187
      %v1775 = vunpack.c.h.b16 %v187
      %v1776 = vunpack.c.l.b16 %v188
      %v1777 = vunpack.c.l.b16 %v189
      %v1778 = vunpack.c.h.b16 %v189
      %v1779 = vunpack.c.l.b16 %v190
      %v1780 = vunpack.c.l.b16 %v191
      %v1781 = vunpack.c.h.b16 %v191
      %v1782 = vunpack.c.l.b16 %v192
      %v1783 = vunpack.c.l.b16 %v193
      %v1784 = vunpack.c.h.b16 %v193
      %v1785 = vunpack.c.l.b16 %v194
      %v1786 = vunpack.c.l.b16 %v195
      %v1787 = vunpack.c.h.b16 %v195
      %v1788 = vunpack.c.l.b16 %v196
      %v1789 = vunpack.c.l.b16 %v197
      %v1790 = vunpack.c.h.b16 %v197
      %v1791 = vunpack.c.l.b16 %v198
      %v1792 = vunpack.c.l.b16 %v199
      %v1793 = vunpack.c.h.b16 %v199
      %v1794 = vunpack.c.l.b16 %v200
      %v1795 = vunpack.c.l.b16 %v201
      %v1796 = vunpack.c.h.b16 %v201
      %v1797 = vunpack.c.l.b16 %v202
      %v1798 = vunpack.c.l.b16 %v203
      %v1799 = vunpack.c.h.b16 %v203
      %v1800 = vunpack.c.l.b16 %v204
      %v1801 = vunpack.c.l.b16 %v205
      %v1802 = vunpack.c.h.b16 %v205
      %v1803 = vunpack.c.l.b16 %v206
      %v1804 = vunpack.c.l.b16 %v207
      %v1805 = vunpack.c.h.b16 %v207
      %v1806 = vunpack.c.l.b16 %v208
      %v1807 = vunpack.c.l.b16 %v209
      %v1808 = vunpack.c.h.b16 %v209
      %v1809 = vunpack.c.l.b16 %v210
      %v1810 = vunpack.c.l.b16 %v211
      %v1811 = vunpack.c.h.b16 %v211
      %v1812 = vunpack.c.l.b16 %v212
      %v1813 = vunpack.c.l.b16 %v213
      %v1814 = vunpack.c.h.b16 %v213
      %v1815 = vunpack.c.l.b16 %v214
      %v1816 = vunpack.c.l.b16 %v215
      %v1817 = vunpack.c.h.b16 %v215
      %v1818 = vunpack.c.l.b16 %v216
      %v1819 = vunpack.c.l.b16 %v217
      %v1820 = vunpack.c.h.b16 %v217
      %v1821 = vunpack.c.l.b16 %v218
      %v1822 = vunpack.c.l.b16 %v219
      %v1823 = vunpack.c.h.b16 %v219
      %v1824 = vunpack.c.l.b16 %v220
      %v1825 = vunpack.c.l.b16 %v221
      %v1826 = vunpack.c.h.b16 %v221
      %v1827 = vunpack.c.l.b16 %v222
      %v1828 = vunpack.c.l.b16 %v223
      %v1829 = vunpack.c.h.b16 %v223
      %v1830 = vunpack.c.l.b16 %v224
      %v1831 = vunpack.c.l.b16 %v225
      %v1832 = vunpack.c.h.b16 %v225
      %v1833 = vunpack.c.l.b16 %v226
      %v1834 = vunpack.c.l.b16 %v227
      %v1835 = vunpack.c.h.b16 %v227
      %v1836 = vunpack.c.l.b16 %v228
      %v1837 = vunpack.c.l.b16 %v229
      %v1838 = vunpack.c.h.b16 %v229
      %v1839 = vunpack.c.l.b16 %v230
      %v1840 = vunpack.c.l.b16 %v231
      %v1841 = vunpack.c.h.b16 %v231
      %v1842 = vunpack.c.l.b16 %v232
      %v1843 = vunpack.c.l.b16 %v233
      %v1844 = vunpack.c.h.b16 %v233
      %v1845 = vunpack.c.l.b16 %v234
      %v1846 = vunpack.c.l.b16 %v235
      %v1847 = vunpack.c.h.b16 %v235
      %v1848 = vunpack.c.l.b16 %v236
      %v1849 = vunpack.c.l.b16 %v237
      %v1850 = vunpack.c.h.b16 %v237
      %v1851 = vunpack.c.l.b16 %v238
      %v1852 = vunpack.c.l.b16 %v239
      %v1853 = vunpack.c.h.b16 %v239
      %v1854 = vunpack.c.l.b16 %v240
      %v1855 = vunpack.c.l.b16 %v241
      %v1856 = vunpack.c.h.b16 %v241
      %v1857 = vunpack.c.l.b16 %v242
      %v1858 = vunpack.c.l.b16 %v243
      %v1859 = vunpack.c.h.b16 %v243
      %v1860 = vunpack.c.l.b16 %v244
      %v1861 = vunpack.c.l.b16 %v245
      %v1862 = vunpack.c.h.b16 %v245
      %v1863 = vunpack.c.l.b16 %v246
      %v1864 = vunpack.c.l.b16 %v247
      %v1865 = vunpack.c.h.b16 %v247
      %v1866 = vunpack.c.l.b16 %v248
      %v1867 = vunpack.c.l.b16 %v249
      %v1868 = vunpack.c.h.b16 %v249
      %v1869 = vunpack.c.l.b16 %v250
      %v1870 = vunpack.c.l.b16 %v251
      %v1871 = vunpack.c.h.b16 %v251
      %v1872 = vunpack.c.l.b16 %v252
      %v1873 = vunpack.c.l.b16 %v253
      %v1874 = vunpack.c.h.b16 %v253
      %v1875 = vunpack.c.l.b16 %v254
      %v1876 = vunpack.c.l.b16 %v255
      %v1877 = vunpack.c.h.b16 %v255
      %v1878 = vunpack.c.l.b16 %v256
      %v1879 = vunpack.c.l.b16 %v257
      %v1880 = vunpack.c.h.b16 %v257
      %v1881 = vunpack.c.l.b16 %v258
      %v1882 = vunpack.c.l.b16 %v259
      %v1883 = vunpack.c.h.b16 %v259
      %v1884 = vunpack.c.l.b16 %v260
      %v1885 = vunpack.c.l.b16 %v261
      %v1886 = vunpack.c.h.b16 %v261
      %v1887 = vunpack.c.l.b16 %v262
      %v1888 = vunpack.c.l.b16 %v263
      %v1889 = vunpack.c.h.b16 %v263
      %v1890 = vunpack.c.l.b16 %v264
      %v1891 = vunpack.c.l.b16 %v265
      %v1892 = vunpack.c.h.b16 %v265
      %v1893 = vunpack.c.l.b16 %v266
      %v1894 = vunpack.c.l.b16 %v267
      %v1895 = vunpack.c.h.b16 %v267
      %v1896 = vunpack.c.l.b16 %v268
      %v1897 = vunpack.c.l.b16 %v269
      %v1898 = vunpack.c.h.b16 %v269
      %v1899 = vunpack.c.l.b16 %v270
      %v1900 = vunpack.c.l.b16 %v271
      %v1901 = vunpack.c.h.b16 %v271
      %v1902 = vunpack.c.l.b16 %v272
      %v1903 = vunpack.c.l.b16 %v273
      %v1904 = vunpack.c.h.b16 %v273
      %v1905 = vunpack.c.l.b16 %v274
      %v1906 = vunpack.c.l.b16 %v275
      %v1907 = vunpack.c.h.b16 %v275
      %v1908 = vunpack.c.l.b16 %v276
      %v1909 = vunpack.c.l.b16 %v277
      %v1910 = vunpack.c.h.b16 %v277
      %v1911 = vunpack.c.l.b16 %v278
      %v1912 = vunpack.c.l.b16 %v279
      %v1913 = vunpack.c.h.b16 %v279
      %v1914 = vunpack.c.l.b16 %v280
      %v1915 = vunpack.c.l.b16 %v281
      %v1916 = vunpack.c.h.b16 %v281
      %v1917 = vunpack.c.l.b16 %v282
      %v1918 = vunpack.c.l.b16 %v283
      %v1919 = vunpack.c.h.b16 %v283
      %v1920 = vunpack.c.l.b16 %v284
      %v1921 = vunpack.c.l.b16 %v285
      %v1922 = vunpack.c.h.b16 %v285
      %v1923 = vunpack.c.l.b16 %v286
      %v1924 = vunpack.c.l.b16 %v287
      %v1925 = vunpack.c.h.b16 %v287
      %v1926 = vunpack.c.l.b16 %v288
      %v1927 = vunpack.c.l.b16 %v289
      %v1928 = vunpack.c.h.b16 %v289
      %v1929 = vunpack.c.l.b16 %v290
      %v1930 = vunpack.c.l.b16 %v291
      %v1931 = vunpack.c.h.b16 %v291
      %v1932 = vunpack.c.l.b16 %v292
      %v1933 = vunpack.c.l.b16 %v293
      %v1934 = vunpack.c.h.b16 %v293
      %v1935 = vunpack.c.l.b16 %v294
      %v1936 = vunpack.c.l.b16 %v295
      %v1937 = vunpack.c.h.b16 %v295
      %v1938 = vunpack.c.l.b16 %v296
      %v1939 = vunpack.c.l.b16 %v297
      %v1940 = vunpack.c.h.b16 %v297
      %v1941 = vunpack.c.l.b16 %v298
      %v1942 = vunpack.c.l.b16 %v299
      %v1943 = vunpack.c.h.b16 %v299
      %v1944 = vunpack.c.l.b16 %v300
      %v1945 = vunpack.c.l.b16 %v301
      %v1946 = vunpack.c.h.b16 %v301
      %v1947 = vunpack.c.l.b16 %v302
      %v1948 = vunpack.c.l.b16 %v303
      %v1949 = vunpack.c.h.b16 %v303
      %v1950 = vunpack.c.l.b16 %v304
      %v1951 = vunpack.c.l.b16 %v305
      %v1952 = vunpack.c.h.b16 %v305
      %v1953 = vunpack.c.l.b16 %v306
      %v1954 = vunpack.c.l.b16 %v307
      %v1955 = vunpack.c.h.b16 %v307
      %v1956 = vunpack.c.l.b16 %v308
      %v1957 = vunpack.c.l.b16 %v309
      %v1958 = vunpack.c.h.b16 %v309
      %v1959 = vunpack.c.l.b16 %v310
      %v1960 = vunpack.c.l.b16 %v311
      %v1961 = vunpack.c.h.b16 %v311
      %v1962 = vunpack.c.l.b16 %v312
      %v1963 = vunpack.c.l.b16 %v313
      %v1964 = vunpack.c.h.b16 %v313
      %v1965 = vunpack.c.l.b16 %v314
      %v1966 = vunpack.c.l.b16 %v315
      %v1967 = vunpack.c.h.b16 %v315
      %v1968 = vunpack.c.l.b16 %v316
      %v1969 = vunpack.c.l.b16 %v317
      %v1970 = vunpack.c.h.b16 %v317
      %v1971 = vunpack.c.l.b16 %v318
      %v1972 = vunpack.c.l.b16 %v319
      %v1973 = vunpack.c.h.b16 %v319
      %v1974 = vunpack.c.l.b16 %v320
      %v1975 = vunpack.c.l.b16 %v321
      %v1976 = vunpack.c.h.b16 %v321
      %v1977 = vunpack.c.l.b16 %v322
      %v1978 = vunpack.c.l.b16 %v323
      %v1979 = vunpack.c.h.b16 %v323
      %v1980 = vunpack.c.l.b16 %v324
      %v1981 = vunpack.c.l.b16 %v325
      %v1982 = vunpack.c.h.b16 %v325
      %v1983 = vunpack.c.l.b16 %v326
      %v1984 = vunpack.c.l.b16 %v327
      %v1985 = vunpack.c.h.b16 %v327
      %v1986 = vunpack.c.l.b16 %v328
      %v1987 = vunpack.c.l.b16 %v329
      %v1988 = vunpack.c.h.b16 %v329
      %v1989 = vunpack.c.l.b16 %v330
      %v1990 = vunpack.c.l.b16 %v331
      %v1991 = vunpack.c.h.b16 %v331
      %v1992 = vunpack.c.l.b16 %v332
      %v1993 = vunpack.c.l.b16 %v333
      %v1994 = vunpack.c.h.b16 %v333
      %v1995 = vunpack.c.l.b16 %v334
      %v1996 = vunpack.c.l.b16 %v335
      %v1997 = vunpack.c.h.b16 %v335
      %v1998 = vunpack.c.l.b16 %v336
      %v1999 = vunpack.c.l.b16 %v337
      %v2000 = vunpack.c.h.b16 %v337
      %v2001 = vunpack.c.l.b16 %v338
      %v2002 = vunpack.c.l.b16 %v339
      %v2003 = vunpack.c.h.b16 %v339
      %v2004 = vunpack.c.l.b16 %v340
      %v2005 = vunpack.c.l.b16 %v341
      %v2006 = vunpack.c.h.b16 %v341
      %v2007 = vunpack.c.l.b16 %v342
      %v2008 = vunpack.c.l.b16 %v343
      %v2009 = vunpack.c.h.b16 %v343
      %v2010 = vunpack.c.l.b16 %v344
      %v2011 = vunpack.c.l.b16 %v345
      %v2012 = vunpack.c.h.b16 %v345
      %v2013 = vunpack.c.l.b16 %v346
      %v2014 = vunpack.c.l.b16 %v347
      %v2015 = vunpack.c.h.b16 %v347
      %v2016 = vunpack.c.l.b16 %v348
      %v2017 = vunpack.c.l.b16 %v349
      %v2018 = vunpack.c.h.b16 %v349
      %v2019 = vunpack.c.l.b16 %v350
      %v2020 = vunpack.c.l.b16 %v351
      %v2021 = vunpack.c.h.b16 %v351
      %v2022 = vunpack.c.l.b16 %v352
      %v2023 = vunpack.c.l.b16 %v353
      %v2024 = vunpack.c.h.b16 %v353
      %v2025 = vunpack.c.l.b16 %v354
      %v2026 = vpack.c.b16 %v1765, %v1762
      %v2027 = vpack.c.b16 %v1766, %v1763
      %v2028 = vpack.c.b16 %v1767, %v1764
      %v2029 = vpack.c.b16 %v1771, %v1768
      %v2030 = vpack.c.b16 %v1772, %v1769
      %v2031 = vpack.c.b16 %v1773, %v1770
      %v2032 = vpack.c.b16 %v1777, %v1774
      %v2033 = vpack.c.b16 %v1778, %v1775
      %v2034 = vpack.c.b16 %v1779, %v1776
      %v2035 = vpack.c.b16 %v1783, %v1780
      %v2036 = vpack.c.b16 %v1784, %v1781
      %v2037 = vpack.c.b16 %v1785, %v1782
      %v2038 = vpack.c.b16 %v1789, %v1786
      %v2039 = vpack.c.b16 %v1790, %v1787
      %v2040 = vpack.c.b16 %v1791, %v1788
      %v2041 = vpack.c.b16 %v1795, %v1792
      %v2042 = vpack.c.b16 %v1796, %v1793
      %v2043 = vpack.c.b16 %v1797, %v1794
      %v2044 = vpack.c.b16 %v1801, %v1798
      %v2045 = vpack.c.b16 %v1802, %v1799
      %v2046 = vpack.c.b16 %v1803, %v1800
      %v2047 = vpack.c.b16 %v1807, %v1804
      %v2048 = vpack.c.b16 %v1808, %v1805
      %v2049 = vpack.c.b16 %v1809, %v1806
      %v2050 = vpack.c.b16 %v1813, %v1810
      %v2051 = vpack.c.b16 %v1814, %v1811
      %v2052 = vpack.c.b16 %v1815, %v1812
      %v2053 = vpack.c.b16 %v1819, %v1816
      %v2054 = vpack.c.b16 %v1820, %v1817
      %v2055 = vpack.c.b16 %v1821, %v1818
      %v2056 = vpack.c.b16 %v1825, %v1822
      %v2057 = vpack.c.b16 %v1826, %v1823
      %v2058 = vpack.c.b16 %v1827, %v1824
      %v2059 = vpack.c.b16 %v1831, %v1828
      %v2060 = vpack.c.b16 %v1832, %v1829
      %v2061 = vpack.c.b16 %v1833, %v1830
      %v2062 = vpack.c.b16 %v1837, %v1834
      %v2063 = vpack.c.b16 %v1838, %v1835
      %v2064 = vpack.c.b16 %v1839, %v1836
      %v2065 = vpack.c.b16 %v1843, %v1840
      %v2066 = vpack.c.b16 %v1844, %v1841
      %v2067 = vpack.c.b16 %v1845, %v1842
      %v2068 = vpack.c.b16 %v1849, %v1846
      %v2069 = vpack.c.b16 %v1850, %v1847
      %v2070 = vpack.c.b16 %v1851, %v1848
      %v2071 = vpack.c.b16 %v1855, %v1852
      %v2072 = vpack.c.b16 %v1856, %v1853
      %v2073 = vpack.c.b16 %v1857, %v1854
      %v2074 = vpack.c.b16 %v1861, %v1858
      %v2075 = vpack.c.b16 %v1862, %v1859
      %v2076 = vpack.c.b16 %v1863, %v1860
      %v2077 = vpack.c.b16 %v1867, %v1864
      %v2078 = vpack.c.b16 %v1868, %v1865
      %v2079 = vpack.c.b16 %v1869, %v1866
      %v2080 = vpack.c.b16 %v1873, %v1870
      %v2081 = vpack.c.b16 %v1874, %v1871
      %v2082 = vpack.c.b16 %v1875, %v1872
      %v2083 = vpack.c.b16 %v1879, %v1876
      %v2084 = vpack.c.b16 %v1880, %v1877
      %v2085 = vpack.c.b16 %v1881, %v1878
      %v2086 = vpack.c.b16 %v1885, %v1882
      %v2087 = vpack.c.b16 %v1886, %v1883
      %v2088 = vpack.c.b16 %v1887, %v1884
      %v2089 = vpack.c.b16 %v1891, %v1888
      %v2090 = vpack.c.b16 %v1892, %v1889
      %v2091 = vpack.c.b16 %v1893, %v1890
      %v2092 = vpack.c.b16 %v1897, %v1894
      %v2093 = vpack.c.b16 %v1898, %v1895
      %v2094 = vpack.c.b16 %v1899, %v1896
      %v2095 = vpack.c.b16 %v1903, %v1900
      %v2096 = vpack.c.b16 %v1904, %v1901
      %v2097 = vpack.c.b16 %v1905, %v1902
      %v2098 = vpack.c.b16 %v1909, %v1906
      %v2099 = vpack.c.b16 %v1910, %v1907
      %v2100 = vpack.c.b16 %v1911, %v1908
      %v2101 = vpack.c.b16 %v1915, %v1912
      %v2102 = vpack.c.b16 %v1916, %v1913
      %v2103 = vpack.c.b16 %v1917, %v1914
      %v2104 = vpack.c.b16 %v1921, %v1918
      %v2105 = vpack.c.b16 %v1922, %v1919
      %v2106 = vpack.c.b16 %v1923, %v1920
      %v2107 = vpack.c.b16 %v1927, %v1924
      %v2108 = vpack.c.b16 %v1928, %v1925
      %v2109 = vpack.c.b16 %v1929, %v1926
      %v2110 = vpack.c.b16 %v1933, %v1930
      %v2111 = vpack.c.b16 %v1934, %v1931
      %v2112 = vpack.c.b16 %v1935, %v1932
      %v2113 = vpack.c.b16 %v1939, %v1936
      %v2114 = vpack.c.b16 %v1940, %v1937
      %v2115 = vpack.c.b16 %v1941, %v1938
      %v2116 = vpack.c.b16 %v1945, %v1942
      %v2117 = vpack.c.b16 %v1946, %v1943
      %v2118 = vpack.c.b16 %v1947, %v1944
      %v2119 = vpack.c.b16 %v1951, %v1948
      %v2120 = vpack.c.b16 %v1952, %v1949
      %v2121 = vpack.c.b16 %v1953, %v1950
      %v2122 = vpack.c.b16 %v1957, %v1954
      %v2123 = vpack.c.b16 %v1958, %v1955
      %v2124 = vpack.c.b16 %v1959, %v1956
      %v2125 = vpack.c.b16 %v1963, %v1960
      %v2126 = vpack.c.b16 %v1964, %v1961
      %v2127 = vpack.c.b16 %v1965, %v1962
      %v2128 = vpack.c.b16 %v1969, %v1966
      %v2129 = vpack.c.b16 %v1970, %v1967
      %v2130 = vpack.c.b16 %v1971, %v1968
      %v2131 = vpack.c.b16 %v1975, %v1972
      %v2132 = vpack.c.b16 %v1976, %v1973
      %v2133 = vpack.c.b16 %v1977, %v1974
      %v2134 = vpack.c.b16 %v1981, %v1978
      %v2135 = vpack.c.b16 %v1982, %v1979
      %v2136 = vpack.c.b16 %v1983, %v1980
      %v2137 = vpack.c.b16 %v1987, %v1984
      %v2138 = vpack.c.b16 %v1988, %v1985
      %v2139 = vpack.c.b16 %v1989, %v1986
      %v2140 = vpack.c.b16 %v1993, %v1990
      %v2141 = vpack.c.b16 %v1994, %v1991
      %v2142 = vpack.c.b16 %v1995, %v1992
      %v2143 = vpack.c.b16 %v1999, %v1996
      %v2144 = vpack.c.b16 %v2000, %v1997
      %v2145 = vpack.c.b16 %v2001, %v1998
      %v2146 = vpack.c.b16 %v2005, %v2002
      %v2147 = vpack.c.b16 %v2006, %v2003
      %v2148 = vpack.c.b16 %v2007, %v2004
      %v2149 = vpack.c.b16 %v2011, %v2008
      %v2150 = vpack.c.b16 %v2012, %v2009
      %v2151 = vpack.c.b16 %v2013, %v2010
      %v2152 = vpack.c.b16 %v2017, %v2014
      %v2153 = vpack.c.b16 %v2018, %v2015
      %v2154 = vpack.c.b16 %v2019, %v2016
      %v2155 = vpack.c.b16 %v2023, %v2020
      %v2156 = vpack.c.b16 %v2024, %v2021
      %v2157 = vpack.c.b16 %v2025, %v2022
      %v2291 = vsel %vm1310, %v1580, 0
      %2293 = vmatprep.subr.bf16.mxu0 %v2027
      %2294 = vmatpush1.bf16.msra.mxu0 %v2026
      %2295 = vmatprep.subr.bf16.mxu0 %v2030
      %2296 = vmatpush1.bf16.msra.mxu0 %v2029
      %2297 = vmatprep.subr.bf16.mxu0 %v2033
      %2298 = vmatpush1.bf16.msra.mxu0 %v2032
      %2299 = vmatprep.subr.bf16.mxu0 %v2036
      %2300 = vmatpush1.bf16.msra.mxu0 %v2035
      %2301 = vmatprep.subr.bf16.mxu0 %v2039
      %2302 = vmatpush1.bf16.msra.mxu0 %v2038
      %2303 = vmatprep.subr.bf16.mxu0 %v2042
      %2304 = vmatpush1.bf16.msra.mxu0 %v2041
      %2305 = vmatprep.subr.bf16.mxu0 %v2045
      %2306 = vmatpush1.bf16.msra.mxu0 %v2044
      %2307 = vmatprep.subr.bf16.mxu0 %v2048
      %2308 = vmatpush1.bf16.msra.mxu0 %v2047
      %2309 = vmatprep.subr.bf16.mxu0 %v2051
      %2310 = vmatpush1.bf16.msra.mxu0 %v2050
      %2311 = vmatprep.subr.bf16.mxu0 %v2054
      %2312 = vmatpush1.bf16.msra.mxu0 %v2053
      %2313 = vmatprep.subr.bf16.mxu0 %v2057
      %2314 = vmatpush1.bf16.msra.mxu0 %v2056
      %2315 = vmatprep.subr.bf16.mxu0 %v2060
      %2316 = vmatpush1.bf16.msra.mxu0 %v2059
      %2317 = vmatprep.subr.bf16.mxu0 %v2063
      %2318 = vmatpush1.bf16.msra.mxu0 %v2062
      %2319 = vmatprep.subr.bf16.mxu0 %v2066
      %2320 = vmatpush1.bf16.msra.mxu0 %v2065
      %2321 = vmatprep.subr.bf16.mxu0 %v2069
      %2322 = vmatpush1.bf16.msra.mxu0 %v2068
      %2323 = vmatprep.subr.bf16.mxu0 %v2072
      %2324 = vmatpush1.bf16.msra.mxu0 %v2071
      %2325 = vmatprep.mubr.bf16.mxu0 %v1576
      %2326 = vmatmul.mubr.bf16.gmra.mrb[0].mxu0 %v1575
      %v2327 = vpop.f32.mrb[0].mxu0
      %v2328 = vadd.f32 %v1435, %v2327
      %v2329 = vpop.f32.mrb[0].mxu0
      %v2330 = vadd.f32 %v1437, %v2329
      %v2331 = vpop.f32.mrb[0].mxu0
      %v2332 = vadd.f32 %v1439, %v2331
      %v2333 = vpop.f32.mrb[0].mxu0
      %v2334 = vadd.f32 %v1441, %v2333
      %2335 = vdwg.mxu0
      %2336 = vmatprep.subr.bf16.mxu0 %v2075
      %2337 = vmatpush1.bf16.msra.mxu0 %v2074
      %2338 = vmatprep.subr.bf16.mxu0 %v2078
      %2339 = vmatpush1.bf16.msra.mxu0 %v2077
      %2340 = vmatprep.subr.bf16.mxu0 %v2081
      %2341 = vmatpush1.bf16.msra.mxu0 %v2080
      %2342 = vmatprep.subr.bf16.mxu0 %v2084
      %2343 = vmatpush1.bf16.msra.mxu0 %v2083
      %2344 = vmatprep.subr.bf16.mxu0 %v2087
      %2345 = vmatpush1.bf16.msra.mxu0 %v2086
      %2346 = vmatprep.subr.bf16.mxu0 %v2090
      %2347 = vmatpush1.bf16.msra.mxu0 %v2089
      %2348 = vmatprep.subr.bf16.mxu0 %v2093
      %2349 = vmatpush1.bf16.msra.mxu0 %v2092
      %2350 = vmatprep.subr.bf16.mxu0 %v2096
      %2351 = vmatpush1.bf16.msra.mxu0 %v2095
      %2352 = vmatprep.subr.bf16.mxu0 %v2099
      %2353 = vmatpush1.bf16.msra.mxu0 %v2098
      %2354 = vmatprep.subr.bf16.mxu0 %v2102
      %2355 = vmatpush1.bf16.msra.mxu0 %v2101
      %2356 = vmatprep.subr.bf16.mxu0 %v2105
      %2357 = vmatpush1.bf16.msra.mxu0 %v2104
      %2358 = vmatprep.subr.bf16.mxu0 %v2108
      %2359 = vmatpush1.bf16.msra.mxu0 %v2107
      %2360 = vmatprep.subr.bf16.mxu0 %v2111
      %2361 = vmatpush1.bf16.msra.mxu0 %v2110
      %2362 = vmatprep.subr.bf16.mxu0 %v2114
      %2363 = vmatpush1.bf16.msra.mxu0 %v2113
      %2364 = vmatprep.subr.bf16.mxu0 %v2117
      %2365 = vmatpush1.bf16.msra.mxu0 %v2116
      %2366 = vmatprep.subr.bf16.mxu0 %v2120
      %2367 = vmatpush1.bf16.msra.mxu0 %v2119
      %2368 = vmatprep.mubr.bf16.mxu0 %v1578
      %2369 = vmatmul.mubr.bf16.gmra.mrb[0].mxu0 %v1577
      %v2370 = vpop.f32.mrb[0].mxu0
      %v2371 = vadd.f32 %v2328, %v2370
      %v2372 = vpop.f32.mrb[0].mxu0
      %v2373 = vadd.f32 %v2330, %v2372
      %v2374 = vpop.f32.mrb[0].mxu0
      %v2375 = vadd.f32 %v2332, %v2374
      %v2376 = vpop.f32.mrb[0].mxu0
      %v2377 = vadd.f32 %v2334, %v2376
      %2378 = vdwg.mxu0
      %2379 = vmatprep.subr.bf16.mxu0 %v2123
      %2380 = vmatpush1.bf16.msra.mxu0 %v2122
      %2381 = vmatprep.subr.bf16.mxu0 %v2126
      %2382 = vmatpush1.bf16.msra.mxu0 %v2125
      %2383 = vmatprep.subr.bf16.mxu0 %v2129
      %2384 = vmatpush1.bf16.msra.mxu0 %v2128
      %2385 = vmatprep.subr.bf16.mxu0 %v2132
      %2386 = vmatpush1.bf16.msra.mxu0 %v2131
      %2387 = vmatprep.subr.bf16.mxu0 %v2135
      %2388 = vmatpush1.bf16.msra.mxu0 %v2134
      %2389 = vmatprep.subr.bf16.mxu0 %v2138
      %2390 = vmatpush1.bf16.msra.mxu0 %v2137
      %2391 = vmatprep.subr.bf16.mxu0 %v2141
      %2392 = vmatpush1.bf16.msra.mxu0 %v2140
      %2393 = vmatprep.subr.bf16.mxu0 %v2144
      %2394 = vmatpush1.bf16.msra.mxu0 %v2143
      %2395 = vmatprep.subr.bf16.mxu0 %v2147
      %2396 = vmatpush1.bf16.msra.mxu0 %v2146
      %2397 = vmatprep.subr.bf16.mxu0 %v2150
      %2398 = vmatpush1.bf16.msra.mxu0 %v2149
      %2399 = vmatprep.subr.bf16.mxu0 %v2153
      %2400 = vmatpush1.bf16.msra.mxu0 %v2152
      %2401 = vmatprep.subr.bf16.mxu0 %v2156
      %2402 = vmatpush1.bf16.msra.mxu0 %v2155
      %2403 = vmatprep.subr.bf16.mxu0 0
      %2404 = vmatpush1.bf16.msra.mxu0 0
      %2405 = vmatprep.subr.bf16.mxu0 0
      %2406 = vmatpush1.bf16.msra.mxu0 0
      %2407 = vmatprep.subr.bf16.mxu0 0
      %2408 = vmatpush1.bf16.msra.mxu0 0
      %2409 = vmatprep.subr.bf16.mxu0 0
      %2410 = vmatpush1.bf16.msra.mxu0 0
      %2411 = vmatprep.mubr.bf16.mxu0 %v2291
      %2412 = vmatmul.mubr.bf16.gmra.mrb[0].mxu0 %v1579
      %v2413 = vpop.f32.mrb[0].mxu0
      %v2414 = vadd.f32 %v2371, %v2413
      %v2415 = vpop.f32.mrb[0].mxu0
      %v2416 = vadd.f32 %v2373, %v2415
      %v2417 = vpop.f32.mrb[0].mxu0
      %v2418 = vadd.f32 %v2375, %v2417
      %v2419 = vpop.f32.mrb[0].mxu0
      %v2420 = vadd.f32 %v2377, %v2419
      %2421 = vdwg.mxu0
      %2422 = vmatprep.subr.bf16.mxu0 0
      %2423 = vmatpush1.bf16.msra.mxu0 %v2028
      %2424 = vmatprep.subr.bf16.mxu0 0
      %2425 = vmatpush1.bf16.msra.mxu0 %v2031
      %2426 = vmatprep.subr.bf16.mxu0 0
      %2427 = vmatpush1.bf16.msra.mxu0 %v2034
      %2428 = vmatprep.subr.bf16.mxu0 0
      %2429 = vmatpush1.bf16.msra.mxu0 %v2037
      %2430 = vmatprep.subr.bf16.mxu0 0
      %2431 = vmatpush1.bf16.msra.mxu0 %v2040
      %2432 = vmatprep.subr.bf16.mxu0 0
      %2433 = vmatpush1.bf16.msra.mxu0 %v2043
      %2434 = vmatprep.subr.bf16.mxu0 0
      %2435 = vmatpush1.bf16.msra.mxu0 %v2046
      %2436 = vmatprep.subr.bf16.mxu0 0
      %2437 = vmatpush1.bf16.msra.mxu0 %v2049
      %2438 = vmatprep.subr.bf16.mxu0 0
      %2439 = vmatpush1.bf16.msra.mxu0 %v2052
      %2440 = vmatprep.subr.bf16.mxu0 0
      %2441 = vmatpush1.bf16.msra.mxu0 %v2055
      %2442 = vmatprep.subr.bf16.mxu0 0
      %2443 = vmatpush1.bf16.msra.mxu0 %v2058
      %2444 = vmatprep.subr.bf16.mxu0 0
      %2445 = vmatpush1.bf16.msra.mxu0 %v2061
      %2446 = vmatprep.subr.bf16.mxu0 0
      %2447 = vmatpush1.bf16.msra.mxu0 %v2064
      %2448 = vmatprep.subr.bf16.mxu0 0
      %2449 = vmatpush1.bf16.msra.mxu0 %v2067
      %2450 = vmatprep.subr.bf16.mxu0 0
      %2451 = vmatpush1.bf16.msra.mxu0 %v2070
      %2452 = vmatprep.subr.bf16.mxu0 0
      %2453 = vmatpush1.bf16.msra.mxu0 %v2073
      %2454 = vmatprep.mubr.bf16.mxu0 %v1576
      %2455 = vmatmul.mubr.bf16.gmra.mrb[0].mxu0 %v1575
      %v2456 = vpop.f32.mrb[0].mxu0
      %v2457 = vadd.f32 %v1560, %v2456
      %v2458 = vpop.f32.mrb[0].mxu0
      %v2459 = vpop.f32.mrb[0].mxu0
      %v2460 = vadd.f32 %v1563, %v2459
      %v2461 = vpop.f32.mrb[0].mxu0
      %2462 = vdwg.mxu0
      %2463 = vmatprep.subr.bf16.mxu0 0
      %2464 = vmatpush1.bf16.msra.mxu0 %v2076
      %2465 = vmatprep.subr.bf16.mxu0 0
      %2466 = vmatpush1.bf16.msra.mxu0 %v2079
      %2467 = vmatprep.subr.bf16.mxu0 0
      %2468 = vmatpush1.bf16.msra.mxu0 %v2082
      %2469 = vmatprep.subr.bf16.mxu0 0
      %2470 = vmatpush1.bf16.msra.mxu0 %v2085
      %2471 = vmatprep.subr.bf16.mxu0 0
      %2472 = vmatpush1.bf16.msra.mxu0 %v2088
      %2473 = vmatprep.subr.bf16.mxu0 0
      %2474 = vmatpush1.bf16.msra.mxu0 %v2091
      %2475 = vmatprep.subr.bf16.mxu0 0
      %2476 = vmatpush1.bf16.msra.mxu0 %v2094
      %2477 = vmatprep.subr.bf16.mxu0 0
      %2478 = vmatpush1.bf16.msra.mxu0 %v2097
      %2479 = vmatprep.subr.bf16.mxu0 0
      %2480 = vmatpush1.bf16.msra.mxu0 %v2100
      %2481 = vmatprep.subr.bf16.mxu0 0
      %2482 = vmatpush1.bf16.msra.mxu0 %v2103
      %2483 = vmatprep.subr.bf16.mxu0 0
      %2484 = vmatpush1.bf16.msra.mxu0 %v2106
      %2485 = vmatprep.subr.bf16.mxu0 0
      %2486 = vmatpush1.bf16.msra.mxu0 %v2109
      %2487 = vmatprep.subr.bf16.mxu0 0
      %2488 = vmatpush1.bf16.msra.mxu0 %v2112
      %2489 = vmatprep.subr.bf16.mxu0 0
      %2490 = vmatpush1.bf16.msra.mxu0 %v2115
      %2491 = vmatprep.subr.bf16.mxu0 0
      %2492 = vmatpush1.bf16.msra.mxu0 %v2118
      %2493 = vmatprep.subr.bf16.mxu0 0
      %2494 = vmatpush1.bf16.msra.mxu0 %v2121
      %2495 = vmatprep.mubr.bf16.mxu0 %v1578
      %2496 = vmatmul.mubr.bf16.gmra.mrb[0].mxu0 %v1577
      %v2497 = vpop.f32.mrb[0].mxu0
      %v2498 = vadd.f32 %v2457, %v2497
      %v2499 = vpop.f32.mrb[0].mxu0
      %v2500 = vpop.f32.mrb[0].mxu0
      %v2501 = vadd.f32 %v2460, %v2500
      %v2502 = vpop.f32.mrb[0].mxu0
      %2503 = vdwg.mxu0
      %2504 = vmatprep.subr.bf16.mxu0 0
      %2505 = vmatpush1.bf16.msra.mxu0 %v2124
      %2506 = vmatprep.subr.bf16.mxu0 0
      %2507 = vmatpush1.bf16.msra.mxu0 %v2127
      %2508 = vmatprep.subr.bf16.mxu0 0
      %2509 = vmatpush1.bf16.msra.mxu0 %v2130
      %2510 = vmatprep.subr.bf16.mxu0 0
      %2511 = vmatpush1.bf16.msra.mxu0 %v2133
      %2512 = vmatprep.subr.bf16.mxu0 0
      %2513 = vmatpush1.bf16.msra.mxu0 %v2136
      %2514 = vmatprep.subr.bf16.mxu0 0
      %2515 = vmatpush1.bf16.msra.mxu0 %v2139
      %2516 = vmatprep.subr.bf16.mxu0 0
      %2517 = vmatpush1.bf16.msra.mxu0 %v2142
      %2518 = vmatprep.subr.bf16.mxu0 0
      %2519 = vmatpush1.bf16.msra.mxu0 %v2145
      %2520 = vmatprep.subr.bf16.mxu0 0
      %2521 = vmatpush1.bf16.msra.mxu0 %v2148
      %2522 = vmatprep.subr.bf16.mxu0 0
      %2523 = vmatpush1.bf16.msra.mxu0 %v2151
      %2524 = vmatprep.subr.bf16.mxu0 0
      %2525 = vmatpush1.bf16.msra.mxu0 %v2154
      %2526 = vmatprep.subr.bf16.mxu0 0
      %2527 = vmatpush1.bf16.msra.mxu0 %v2157
      %2528 = vmatprep.subr.bf16.mxu0 0
      %2529 = vmatpush1.bf16.msra.mxu0 0
      %2530 = vmatprep.subr.bf16.mxu0 0
      %2531 = vmatpush1.bf16.msra.mxu0 0
      %2532 = vmatprep.subr.bf16.mxu0 0
      %2533 = vmatpush1.bf16.msra.mxu0 0
      %2534 = vmatprep.subr.bf16.mxu0 0
      %2535 = vmatpush1.bf16.msra.mxu0 0
      %2536 = vmatprep.mubr.bf16.mxu0 %v2291
      %2537 = vmatmul.mubr.bf16.gmra.mrb[0].mxu0 %v1579
      %v2538 = vpop.f32.mrb[0].mxu0
      %v2539 = vadd.f32 %v2498, %v2538
      %v2540 = vpop.f32.mrb[0].mxu0
      %v2541 = vpop.f32.mrb[0].mxu0
      %v2542 = vadd.f32 %v2501, %v2541
      %v2543 = vpop.f32.mrb[0].mxu0
      %2544 = vdwg.mxu0
      %v2546 = vlaneseq
      %v2547 = vshrl.u32 %v2546, 7
      %v2548 = vsub.s32 0, %v2547
      %v2549 = vrot.slane %v172, %v2548
      %v2550 = vlaneseq
      %v2551 = vshrl.u32 %v2550, 7
      %v2552 = vsub.s32 1, %v2551
      %v2553 = vrot.slane %v172, %v2552
      %v2554 = vlaneseq
      %v2555 = vshrl.u32 %v2554, 7
      %v2556 = vsub.s32 2, %v2555
      %v2557 = vrot.slane %v172, %v2556
      %v2561 = vadd.f32 %v2414, %v2549
      %v2562 = vadd.f32 %v2416, %v2553
      %v2563 = vadd.f32 %v2539, %v2557
      %v2564 = vadd.f32 %v2418, %v2549
      %v2565 = vadd.f32 %v2420, %v2553
      %v2566 = vadd.f32 %v2542, %v2557
      %v2567 = vmax.f32 %v2561, 0.0
      %v2568 = vmax.f32 %v2562, 0.0
      %v2569 = vmax.f32 %v2563, 0.0
      %v2570 = vmax.f32 %v2564, 0.0
      %v2571 = vmax.f32 %v2565, 0.0
      %v2572 = vmax.f32 %v2566, 0.0
      %v2573 = vpack.c.bf16 %v2570, %v2567
      %v2574 = vpack.c.bf16 %v2571, %v2568
      %v2575 = vpack.c.bf16 %v2572, %v2569
      %v2579 = vunpack.c.l.b16 %v2573
      %v2580 = vunpack.c.l.b16 %v2574
      %v2581 = vunpack.c.l.b16 %v2575
      %v2582 = vunpack.c.h.b16 %v2573
      %v2583 = vunpack.c.h.b16 %v2574
      %v2584 = vunpack.c.h.b16 %v2575
      %v2585 = vpack.c.b16 %v2580, %v2579
      %v2586 = vpack.c.b16 %v2581, %v2581
      %v2587 = vpack.c.b16 %v2583, %v2582
      %v2588 = vpack.c.b16 %v2584, %v2584
      %2593 = vst [vmem:[%s170] sm:$0xff] %v2585
      %vm2594 = vcmask 519168
      %2595 = vst.msk [vmem:[%s170 + $0x8] sm:$0xf] %vm2594, %v2586
      %2596 = vst [vmem:[%s170 + $0xc] sm:$0x11] %v2587
      %vm2597 = vcmask 516096
      %2598 = vst.msk [vmem:[%s170 + $0x14] sm:$0x1] %vm2597, %v2588
      %p2599 = scmp.lt.s32.totalorder %s14, 1
      %s2600 = scalar_select %p2599, %s14, 1
      %s2601 = smul.addr %s2600, 6
      %s2602 = smul.addr %s2601, 4
      %s2603 = scalar_lea.vmem %s3, %s2602
      // Predicated region
      $region33: #{_lambda_.4} parent=31 // pred_check
        %p2604 = pneg %p100
      $region34: #{_lambda_.4} parent=31 // pred_check_branch
        %2606 = sbr.rel (%p2604) target = $region36
      $region35: #{_lambda_.4} parent=31 // pred_region
        _
      $region36: #{_lambda_.4} parent=31 // pred_fallthru
        _
    $region32: #{_lambda_.4} parent=5 // pred_fallthru
      _
    %p2607 = scmp.le.s32.totalorder 2, %s9
    // Predicated region
    $region37: #{_lambda_.4} parent=5 // pred_check
      %p2608 = pneg %p2607
    $region38: #{_lambda_.4} parent=5 // pred_check_branch
      %2610 = sbr.rel (%p2608) target = $region40
    $region39: #{_lambda_.4} parent=5 // pred_region
      %s2611 = ssub.s32 %s9, 2
      // Predicated region
      $region41: #{_lambda_.4} parent=39 // pred_check
        %p2612 = pneg %p106
      $region42: #{_lambda_.4} parent=39 // pred_check_branch
        %2614 = sbr.rel (%p2612) target = $region44
      $region43: #{_lambda_.4} parent=39 // pred_region
        %p2615 = scmp.lt.s32.totalorder %s15, 1
        %s2616 = scalar_select %p2615, %s15, 1
        %s2617 = smul.addr %s2616, 6
        %s2618 = smul.addr %s2617, 4
        %s2619 = scalar_lea.vmem %s3, %s2618
      $region44: #{_lambda_.4} parent=39 // pred_fallthru
        _
    $region40: #{_lambda_.4} parent=5 // pred_fallthru
      _
  $region6: #{_lambda_.4} parent=0 // loop_footer
    %s13 = sadd.s32 1, %s9
  $region7: #{_lambda_.4} parent=0 // loop_footer_branch
    %8 = sbr.rel target = $region3
  $region8: #{_lambda_.4} parent=0 // loop_exit
    _

// kernel: _lambda_.6
$region0: #{_lambda_.6}
  #allocation0 [shape = 'u32[]', space=smem, size = 0x4, offset = 0x4, fixed_abs, tag = 'smem constant byte address 0x4 - core index']
  #allocation1 [shape = 'u32[144,128]{1,0:T(1,128)}', space=vmem, size = 0x12000, scoped, tag = 'internal scratch']
  %s0 = inlined_call_operand.vmem [shape: bf16[2,4,256], index: 0, kind: input, shape index: {}]
  %s1 = inlined_call_operand.vmem [shape: bf16[3,256,128], index: 1, kind: input, shape index: {}]
  %s2 = inlined_call_operand.vmem [shape: f32[1,128], index: 2, kind: input, shape index: {}]
  %s3 = inlined_call_operand.vmem [shape: bf16[2,2,128], index: 3, kind: output, shape index: {}]
  %s4 = sld [smem:[#allocation0]]
  $region45: #{_lambda_.6} parent=0
    _
  %s6 = ssub.s32 1, %s4
  %s7 = scalar_select 0, %s6, %s4
  loop: start=0, step=1, limit=4
  $region2: #{_lambda_.6} parent=0 // loop_pre_header
    _
  $region3: #{_lambda_.6} parent=0 // loop_header
    %s9 = sphi 0, %s13
    %p10 = scmp.ge.s32.totalorder %s9, 4
    %s19 = sphi 0, %s21
    %s22 = sphi 0, %s19
    %s23 = sphi 0, %s22
    %s39 = sphi 0, %s23
    %s43 = sphi 0, %s43
    %s45 = sphi 0, %s43
    %s46 = sphi 0, %s45
    %s60 = sphi 0, %s46
    %s64 = sphi 0, %s64
    %s66 = sphi 0, %s64
    %s67 = sphi 0, %s66
    %s81 = sphi 0, %s67
    %s87 = sphi 0, %s89
    %s90 = sphi 0, %s87
    %s91 = sphi 0, %s90
    %s107 = sphi 0, %s91
  $region4: #{_lambda_.6} parent=0 // loop_header_branch
    %12 = sbr.rel (%p10) target = $region8
  $region5: #{_lambda_.6} parent=0 // loop_body
    %s14 = ssub.s32 %s9, 1
    %s15 = ssub.s32 %s9, 2
    %s16 = sadd.s32 %s9, 1
    %s17 = ssub.s32 %s9, %s16
    %p18 = scmp.eq.s32.totalorder %s17, 0
    %s20 = sadd.s32 %s19, 1
    %s21 = scalar_select %p18, %s19, %s20
    %p24 = pneg %p18
    %p25 = scmp.eq.s32.totalorder %s9, 1
    %p26 = por %p24, %p25
    %p27 = scmp.ne.s32.totalorder %s19, %s22
    %p28 = scmp.eq.s32.totalorder %s9, 0
    %p29 = por %p27, %p28
    %p30 = scmp.ne.s32.totalorder %s19, %s22
    %p31 = scmp.eq.s32.totalorder %s14, 1
    %p32 = por %p30, %p31
    %p33 = scmp.ne.s32.totalorder %s22, %s23
    %p34 = scmp.eq.s32.totalorder %s14, 0
    %p35 = por %p33, %p34
    %p36 = scmp.ne.s32.totalorder %s22, %s23
    %p37 = scmp.eq.s32.totalorder %s15, 1
    %p38 = por %p36, %p37
    %p40 = scmp.ne.s32.totalorder %s23, %s39
    %p41 = scmp.eq.s32.totalorder %s15, 0
    %p42 = por %p40, %p41
    %s44 = sadd.s32 %s43, 1
    %p47 = scmp.eq.s32.totalorder %s9, 1
    %p48 = scmp.ne.s32.totalorder %s43, %s45
    %p49 = scmp.eq.s32.totalorder %s9, 0
    %p50 = por %p48, %p49
    %p51 = scmp.ne.s32.totalorder %s43, %s45
    %p52 = scmp.eq.s32.totalorder %s14, 1
    %p53 = por %p51, %p52
    %p54 = scmp.ne.s32.totalorder %s45, %s46
    %p55 = scmp.eq.s32.totalorder %s14, 0
    %p56 = por %p54, %p55
    %p57 = scmp.ne.s32.totalorder %s45, %s46
    %p58 = scmp.eq.s32.totalorder %s15, 1
    %p59 = por %p57, %p58
    %p61 = scmp.ne.s32.totalorder %s46, %s60
    %p62 = scmp.eq.s32.totalorder %s15, 0
    %p63 = por %p61, %p62
    %s65 = sadd.s32 %s64, 1
    %p68 = scmp.eq.s32.totalorder %s9, 1
    %p69 = scmp.ne.s32.totalorder %s64, %s66
    %p70 = scmp.eq.s32.totalorder %s9, 0
    %p71 = por %p69, %p70
    %p72 = scmp.ne.s32.totalorder %s64, %s66
    %p73 = scmp.eq.s32.totalorder %s14, 1
    %p74 = por %p72, %p73
    %p75 = scmp.ne.s32.totalorder %s66, %s67
    %p76 = scmp.eq.s32.totalorder %s14, 0
    %p77 = por %p75, %p76
    %p78 = scmp.ne.s32.totalorder %s66, %s67
    %p79 = scmp.eq.s32.totalorder %s15, 1
    %p80 = por %p78, %p79
    %p82 = scmp.ne.s32.totalorder %s67, %s81
    %p83 = scmp.eq.s32.totalorder %s15, 0
    %p84 = por %p82, %p83
    %s85 = ssub.s32 %s9, %s16
    %p86 = scmp.eq.s32.totalorder %s85, 0
    %s88 = sadd.s32 %s87, 1
    %s89 = scalar_select %p86, %s87, %s88
    %p92 = pneg %p86
    %p93 = scmp.eq.s32.totalorder %s9, 1
    %p94 = por %p92, %p93
    %p95 = scmp.ne.s32.totalorder %s87, %s90
    %p96 = scmp.eq.s32.totalorder %s9, 0
    %p97 = por %p95, %p96
    %p98 = scmp.ne.s32.totalorder %s87, %s90
    %p99 = scmp.eq.s32.totalorder %s14, 1
    %p100 = por %p98, %p99
    %p101 = scmp.ne.s32.totalorder %s90, %s91
    %p102 = scmp.eq.s32.totalorder %s14, 0
    %p103 = por %p101, %p102
    %p104 = scmp.ne.s32.totalorder %s90, %s91
    %p105 = scmp.eq.s32.totalorder %s15, 1
    %p106 = por %p104, %p105
    %p108 = scmp.ne.s32.totalorder %s91, %s107
    %p109 = scmp.eq.s32.totalorder %s15, 0
    %p110 = por %p108, %p109
    %p111 = scmp.le.s32.totalorder 1, %s9
    %p112 = scmp.lt.s32.totalorder %s9, 3
    %p113 = pnand %p111, %p112
    %p114 = pneg %p113
    // Predicated region
    $region9: #{_lambda_.6} parent=5 // pred_check
      _
    $region10: #{_lambda_.6} parent=5 // pred_check_branch
      %116 = sbr.rel (%p113) target = $region12
    $region11: #{_lambda_.6} parent=5 // pred_region
      %s117 = ssub.s32 %s9, 1
      // Predicated region
      $region13: #{_lambda_.6} parent=11 // pred_check
        %p118 = pneg %p56
      $region14: #{_lambda_.6} parent=11 // pred_check_branch
        %120 = sbr.rel (%p118) target = $region16
      $region15: #{_lambda_.6} parent=11 // pred_region
        _
      $region16: #{_lambda_.6} parent=11 // pred_fallthru
        _
      // Predicated region
      $region17: #{_lambda_.6} parent=11 // pred_check
        %p121 = pneg %p77
      $region18: #{_lambda_.6} parent=11 // pred_check_branch
        %123 = sbr.rel (%p121) target = $region20
      $region19: #{_lambda_.6} parent=11 // pred_region
        _
      $region20: #{_lambda_.6} parent=11 // pred_fallthru
        _
    $region12: #{_lambda_.6} parent=5 // pred_fallthru
      _
    %p124 = scmp.lt.s32.totalorder %s9, 2
    // Predicated region
    $region21: #{_lambda_.6} parent=5 // pred_check
      %p125 = pneg %p124
    $region22: #{_lambda_.6} parent=5 // pred_check_branch
      %127 = sbr.rel (%p125) target = $region24
    $region23: #{_lambda_.6} parent=5 // pred_region
      // Predicated region
      $region25: #{_lambda_.6} parent=23 // pred_check
        %p128 = pneg %p29
      $region26: #{_lambda_.6} parent=23 // pred_check_branch
        %130 = sbr.rel (%p128) target = $region28
      $region27: #{_lambda_.6} parent=23 // pred_region
        %p131 = scmp.lt.s32.totalorder %s9, 1
        %s132 = scalar_select %p131, %s9, 1
        %s133 = smul.addr %s132, 2
        %s134 = smul.addr %s133, 2
        %s135 = scalar_lea.vmem %s0, %s134
      $region28: #{_lambda_.6} parent=23 // pred_fallthru
        _
    $region24: #{_lambda_.6} parent=5 // pred_fallthru
      _
    %p136 = scmp.le.s32.totalorder 1, %s9
    %p137 = scmp.lt.s32.totalorder %s9, 3
    %p138 = pnand %p136, %p137
    %p139 = pneg %p138
    // Predicated region
    $region29: #{_lambda_.6} parent=5 // pred_check
      _
    $region30: #{_lambda_.6} parent=5 // pred_check_branch
      %141 = sbr.rel (%p138) target = $region32
    $region31: #{_lambda_.6} parent=5 // pred_region
      %s142 = ssub.s32 %s9, 1
      %p143 = scmp.lt.s32.totalorder %s14, 1
      %s144 = scalar_select %p143, %s14, 1
      %s145 = smul.addr %s144, 2
      %s146 = smul.addr %s145, 2
      %s147 = scalar_lea.vmem %s0, %s146
      %p148 = pneg %p35
      %p149 = pneg %p32
      %p150 = pneg %p56
      %p151 = pneg %p53
      %p152 = pneg %p77
      %p153 = pneg %p74
      %p154 = pneg %p103
      %p155 = pneg %p100
      %p156 = scmp.lt.s32.totalorder %s14, 1
      %s157 = scalar_select %p156, %s14, 1
      %s158 = scalar_lea.vmem %s3, %s157
      %p159 = scmp.lt.s32.totalorder %s14, 1
      %s160 = scalar_select %p159, %s14, 1
      %s161 = smul.addr %s160, 2
      %s162 = smul.addr %s161, 2
      %s163 = scalar_lea.vmem %s0, %s162
      %p164 = scmp.lt.s32.totalorder %s14, 1
      %s165 = scalar_select %p164, %s14, 1
      %s166 = scalar_lea.vmem %s3, %s165
      %v168 = vld [vmem:[%s2] sm:$0x1]
      %v169 = vld [vmem:[%s163] sm:$0x5]
      %v170 = vld [vmem:[%s1] sm:$0xf]
      %v171 = vld [vmem:[%s1 + $0x4] sm:$0xf]
      %v172 = vld [vmem:[%s1 + $0x8] sm:$0xf]
      %v173 = vld [vmem:[%s1 + $0xc] sm:$0xf]
      %v174 = vld [vmem:[%s1 + $0x10] sm:$0xf]
      %v175 = vld [vmem:[%s1 + $0x14] sm:$0xf]
      %v176 = vld [vmem:[%s1 + $0x18] sm:$0xf]
      %v177 = vld [vmem:[%s1 + $0x1c] sm:$0xf]
      %v178 = vld [vmem:[%s1 + $0x20] sm:$0xf]
      %v179 = vld [vmem:[%s1 + $0x24] sm:$0xf]
      %v180 = vld [vmem:[%s1 + $0x28] sm:$0xf]
      %v181 = vld [vmem:[%s1 + $0x2c] sm:$0xf]
      %v182 = vld [vmem:[%s1 + $0x30] sm:$0xf]
      %v183 = vld [vmem:[%s1 + $0x34] sm:$0xf]
      %v184 = vld [vmem:[%s1 + $0x38] sm:$0xf]
      %v185 = vld [vmem:[%s1 + $0x3c] sm:$0xf]
      %v186 = vld [vmem:[%s1 + $0x40] sm:$0xf]
      %v187 = vld [vmem:[%s1 + $0x44] sm:$0xf]
      %v188 = vld [vmem:[%s1 + $0x48] sm:$0xf]
      %v189 = vld [vmem:[%s1 + $0x4c] sm:$0xf]
      %v190 = vld [vmem:[%s1 + $0x50] sm:$0xf]
      %v191 = vld [vmem:[%s1 + $0x54] sm:$0xf]
      %v192 = vld [vmem:[%s1 + $0x58] sm:$0xf]
      %v193 = vld [vmem:[%s1 + $0x5c] sm:$0xf]
      %v194 = vld [vmem:[%s1 + $0x60] sm:$0xf]
      %v195 = vld [vmem:[%s1 + $0x64] sm:$0xf]
      %v196 = vld [vmem:[%s1 + $0x68] sm:$0xf]
      %v197 = vld [vmem:[%s1 + $0x6c] sm:$0xf]
      %v198 = vld [vmem:[%s1 + $0x70] sm:$0xf]
      %v199 = vld [vmem:[%s1 + $0x74] sm:$0xf]
      %v200 = vld [vmem:[%s1 + $0x78] sm:$0xf]
      %v201 = vld [vmem:[%s1 + $0x7c] sm:$0xf]
      %v202 = vld [vmem:[%s163] sm:$0xf]
      %s203 = scalar_lea.vmem %s1, 128
      %v204 = vld [vmem:[%s203] sm:$0xf]
      %v205 = vld [vmem:[%s203 + $0x4] sm:$0xf]
      %v206 = vld [vmem:[%s203 + $0x8] sm:$0xf]
      %v207 = vld [vmem:[%s203 + $0xc] sm:$0xf]
      %v208 = vld [vmem:[%s203 + $0x10] sm:$0xf]
      %v209 = vld [vmem:[%s203 + $0x14] sm:$0xf]
      %v210 = vld [vmem:[%s203 + $0x18] sm:$0xf]
      %v211 = vld [vmem:[%s203 + $0x1c] sm:$0xf]
      %v212 = vld [vmem:[%s203 + $0x20] sm:$0xf]
      %v213 = vld [vmem:[%s203 + $0x24] sm:$0xf]
      %v214 = vld [vmem:[%s203 + $0x28] sm:$0xf]
      %v215 = vld [vmem:[%s203 + $0x2c] sm:$0xf]
      %v216 = vld [vmem:[%s203 + $0x30] sm:$0xf]
      %v217 = vld [vmem:[%s203 + $0x34] sm:$0xf]
      %v218 = vld [vmem:[%s203 + $0x38] sm:$0xf]
      %v219 = vld [vmem:[%s203 + $0x3c] sm:$0xf]
      %v220 = vld [vmem:[%s203 + $0x40] sm:$0xf]
      %v221 = vld [vmem:[%s203 + $0x44] sm:$0xf]
      %v222 = vld [vmem:[%s203 + $0x48] sm:$0xf]
      %v223 = vld [vmem:[%s203 + $0x4c] sm:$0xf]
      %v224 = vld [vmem:[%s203 + $0x50] sm:$0xf]
      %v225 = vld [vmem:[%s203 + $0x54] sm:$0xf]
      %v226 = vld [vmem:[%s203 + $0x58] sm:$0xf]
      %v227 = vld [vmem:[%s203 + $0x5c] sm:$0xf]
      %v228 = vld [vmem:[%s203 + $0x60] sm:$0xf]
      %v229 = vld [vmem:[%s203 + $0x64] sm:$0xf]
      %v230 = vld [vmem:[%s203 + $0x68] sm:$0xf]
      %v231 = vld [vmem:[%s203 + $0x6c] sm:$0xf]
      %v232 = vld [vmem:[%s203 + $0x70] sm:$0xf]
      %v233 = vld [vmem:[%s203 + $0x74] sm:$0xf]
      %v234 = vld [vmem:[%s203 + $0x78] sm:$0xf]
      %v235 = vld [vmem:[%s203 + $0x7c] sm:$0xf]
      %v238 = vunpack.c.l.s4 1983009808
      %v239 = vunpack.c.0.s8 %v238
      %v240 = vlaneseq
      %v241 = vshrl.u32 %v240, 7
      %v242 = vsub.s32 %v239, %v241
      %v243 = vrot.slane %v202, %v242
      %v244 = vcombine.high %v243, %v243
      %v246 = vshrl.u32 %v243, 16
      %v248 = vshll.u32 %v243, 16
      %v250 = vrot.slane %v248, 1
      %v251 = vor.u32 %v246, %v250
      %v253 = vshrl.u32 %v244, 16
      %v255 = vshll.u32 %v244, 16
      %v257 = vrot.slane %v255, 1
      %v258 = vor.u32 %v253, %v257
      %v293 = vunpack.c.l.b16 %v204
      %v294 = vunpack.c.l.b16 %v205
      %v295 = vunpack.c.l.b16 %v206
      %v296 = vunpack.c.l.b16 %v207
      %v297 = vunpack.c.l.b16 %v208
      %v298 = vunpack.c.l.b16 %v209
      %v299 = vunpack.c.l.b16 %v210
      %v300 = vunpack.c.l.b16 %v211
      %v301 = vunpack.c.l.b16 %v212
      %v302 = vunpack.c.l.b16 %v213
      %v303 = vunpack.c.l.b16 %v214
      %v304 = vunpack.c.l.b16 %v215
      %v305 = vunpack.c.l.b16 %v216
      %v306 = vunpack.c.l.b16 %v217
      %v307 = vunpack.c.l.b16 %v218
      %v308 = vunpack.c.l.b16 %v219
      %v309 = vunpack.c.l.b16 %v220
      %v310 = vunpack.c.l.b16 %v221
      %v311 = vunpack.c.l.b16 %v222
      %v312 = vunpack.c.l.b16 %v223
      %v313 = vunpack.c.l.b16 %v224
      %v314 = vunpack.c.l.b16 %v225
      %v315 = vunpack.c.l.b16 %v226
      %v316 = vunpack.c.l.b16 %v227
      %v317 = vunpack.c.l.b16 %v228
      %v318 = vunpack.c.l.b16 %v229
      %v319 = vunpack.c.l.b16 %v230
      %v320 = vunpack.c.l.b16 %v231
      %v321 = vunpack.c.l.b16 %v232
      %v322 = vunpack.c.l.b16 %v233
      %v323 = vunpack.c.l.b16 %v234
      %v324 = vunpack.c.l.b16 %v235
      %v325 = vpack.c.b16 %v294, %v293
      %v326 = vpack.c.b16 %v296, %v295
      %v327 = vpack.c.b16 %v298, %v297
      %v328 = vpack.c.b16 %v300, %v299
      %v329 = vpack.c.b16 %v302, %v301
      %v330 = vpack.c.b16 %v304, %v303
      %v331 = vpack.c.b16 %v306, %v305
      %v332 = vpack.c.b16 %v308, %v307
      %v333 = vpack.c.b16 %v310, %v309
      %v334 = vpack.c.b16 %v312, %v311
      %v335 = vpack.c.b16 %v314, %v313
      %v336 = vpack.c.b16 %v316, %v315
      %v337 = vpack.c.b16 %v318, %v317
      %v338 = vpack.c.b16 %v320, %v319
      %v339 = vpack.c.b16 %v322, %v321
      %v340 = vpack.c.b16 %v324, %v323
      %357 = vmatprep.subr.bf16.mxu0 0
      %358 = vmatpush1.bf16.msra.mxu0 %v325
      %359 = vmatprep.subr.bf16.mxu0 0
      %360 = vmatpush1.bf16.msra.mxu0 %v326
      %361 = vmatprep.subr.bf16.mxu0 0
      %362 = vmatpush1.bf16.msra.mxu0 %v327
      %363 = vmatprep.subr.bf16.mxu0 0
      %364 = vmatpush1.bf16.msra.mxu0 %v328
      %365 = vmatprep.subr.bf16.mxu0 0
      %366 = vmatpush1.bf16.msra.mxu0 %v329
      %367 = vmatprep.subr.bf16.mxu0 0
      %368 = vmatpush1.bf16.msra.mxu0 %v330
      %369 = vmatprep.subr.bf16.mxu0 0
      %370 = vmatpush1.bf16.msra.mxu0 %v331
      %371 = vmatprep.subr.bf16.mxu0 0
      %372 = vmatpush1.bf16.msra.mxu0 %v332
      %373 = vmatprep.subr.bf16.mxu0 0
      %374 = vmatpush1.bf16.msra.mxu0 %v333
      %375 = vmatprep.subr.bf16.mxu0 0
      %376 = vmatpush1.bf16.msra.mxu0 %v334
      %377 = vmatprep.subr.bf16.mxu0 0
      %378 = vmatpush1.bf16.msra.mxu0 %v335
      %379 = vmatprep.subr.bf16.mxu0 0
      %380 = vmatpush1.bf16.msra.mxu0 %v336
      %381 = vmatprep.subr.bf16.mxu0 0
      %382 = vmatpush1.bf16.msra.mxu0 %v337
      %383 = vmatprep.subr.bf16.mxu0 0
      %384 = vmatpush1.bf16.msra.mxu0 %v338
      %385 = vmatprep.subr.bf16.mxu0 0
      %386 = vmatpush1.bf16.msra.mxu0 %v339
      %387 = vmatprep.subr.bf16.mxu0 0
      %388 = vmatpush1.bf16.msra.mxu0 %v340
      %389 = vmatprep.mubr.bf16.mxu0 %v258
      %390 = vmatmul.mubr.bf16.gmra.mrb[0].mxu0 %v251
      %v391 = vpop.f32.mrb[0].mxu0
      %v392 = vadd.f32 0.0, %v391
      %v393 = vpop.f32.mrb[0].mxu0
      %v394 = vpop.f32.mrb[0].mxu0
      %v395 = vpop.f32.mrb[0].mxu0
      %396 = vdwg.mxu0
      %v399 = vunpack.c.l.s4 1983009808
      %v400 = vunpack.c.0.s8 %v399
      %v401 = vlaneseq
      %v402 = vshrl.u32 %v401, 7
      %v403 = vsub.s32 %v400, %v402
      %v404 = vrot.slane %v169, %v403
      %v405 = vcombine.high %v404, %v404
      %v440 = vunpack.c.l.b16 %v170
      %v441 = vunpack.c.l.b16 %v171
      %v442 = vunpack.c.l.b16 %v172
      %v443 = vunpack.c.l.b16 %v173
      %v444 = vunpack.c.l.b16 %v174
      %v445 = vunpack.c.l.b16 %v175
      %v446 = vunpack.c.l.b16 %v176
      %v447 = vunpack.c.l.b16 %v177
      %v448 = vunpack.c.l.b16 %v178
      %v449 = vunpack.c.l.b16 %v179
      %v450 = vunpack.c.l.b16 %v180
      %v451 = vunpack.c.l.b16 %v181
      %v452 = vunpack.c.l.b16 %v182
      %v453 = vunpack.c.l.b16 %v183
      %v454 = vunpack.c.l.b16 %v184
      %v455 = vunpack.c.l.b16 %v185
      %v456 = vunpack.c.l.b16 %v186
      %v457 = vunpack.c.l.b16 %v187
      %v458 = vunpack.c.l.b16 %v188
      %v459 = vunpack.c.l.b16 %v189
      %v460 = vunpack.c.l.b16 %v190
      %v461 = vunpack.c.l.b16 %v191
      %v462 = vunpack.c.l.b16 %v192
      %v463 = vunpack.c.l.b16 %v193
      %v464 = vunpack.c.l.b16 %v194
      %v465 = vunpack.c.l.b16 %v195
      %v466 = vunpack.c.l.b16 %v196
      %v467 = vunpack.c.l.b16 %v197
      %v468 = vunpack.c.l.b16 %v198
      %v469 = vunpack.c.l.b16 %v199
      %v470 = vunpack.c.l.b16 %v200
      %v471 = vunpack.c.l.b16 %v201
      %v472 = vpack.c.b16 %v441, %v440
      %v473 = vpack.c.b16 %v443, %v442
      %v474 = vpack.c.b16 %v445, %v444
      %v475 = vpack.c.b16 %v447, %v446
      %v476 = vpack.c.b16 %v449, %v448
      %v477 = vpack.c.b16 %v451, %v450
      %v478 = vpack.c.b16 %v453, %v452
      %v479 = vpack.c.b16 %v455, %v454
      %v480 = vpack.c.b16 %v457, %v456
      %v481 = vpack.c.b16 %v459, %v458
      %v482 = vpack.c.b16 %v461, %v460
      %v483 = vpack.c.b16 %v463, %v462
      %v484 = vpack.c.b16 %v465, %v464
      %v485 = vpack.c.b16 %v467, %v466
      %v486 = vpack.c.b16 %v469, %v468
      %v487 = vpack.c.b16 %v471, %v470
      %504 = vmatprep.subr.bf16.mxu0 0
      %505 = vmatpush1.bf16.msra.mxu0 %v472
      %506 = vmatprep.subr.bf16.mxu0 0
      %507 = vmatpush1.bf16.msra.mxu0 %v473
      %508 = vmatprep.subr.bf16.mxu0 0
      %509 = vmatpush1.bf16.msra.mxu0 %v474
      %510 = vmatprep.subr.bf16.mxu0 0
      %511 = vmatpush1.bf16.msra.mxu0 %v475
      %512 = vmatprep.subr.bf16.mxu0 0
      %513 = vmatpush1.bf16.msra.mxu0 %v476
      %514 = vmatprep.subr.bf16.mxu0 0
      %515 = vmatpush1.bf16.msra.mxu0 %v477
      %516 = vmatprep.subr.bf16.mxu0 0
      %517 = vmatpush1.bf16.msra.mxu0 %v478
      %518 = vmatprep.subr.bf16.mxu0 0
      %519 = vmatpush1.bf16.msra.mxu0 %v479
      %520 = vmatprep.subr.bf16.mxu0 0
      %521 = vmatpush1.bf16.msra.mxu0 %v480
      %522 = vmatprep.subr.bf16.mxu0 0
      %523 = vmatpush1.bf16.msra.mxu0 %v481
      %524 = vmatprep.subr.bf16.mxu0 0
      %525 = vmatpush1.bf16.msra.mxu0 %v482
      %526 = vmatprep.subr.bf16.mxu0 0
      %527 = vmatpush1.bf16.msra.mxu0 %v483
      %528 = vmatprep.subr.bf16.mxu0 0
      %529 = vmatpush1.bf16.msra.mxu0 %v484
      %530 = vmatprep.subr.bf16.mxu0 0
      %531 = vmatpush1.bf16.msra.mxu0 %v485
      %532 = vmatprep.subr.bf16.mxu0 0
      %533 = vmatpush1.bf16.msra.mxu0 %v486
      %534 = vmatprep.subr.bf16.mxu0 0
      %535 = vmatpush1.bf16.msra.mxu0 %v487
      %536 = vmatprep.mubr.bf16.mxu0 %v405
      %537 = vmatmul.mubr.bf16.gmra.mrb[0].mxu0 %v404
      %v538 = vpop.f32.mrb[0].mxu0
      %v539 = vadd.f32 %v392, %v538
      %v540 = vpop.f32.mrb[0].mxu0
      %v541 = vpop.f32.mrb[0].mxu0
      %v542 = vpop.f32.mrb[0].mxu0
      %543 = vdwg.mxu0
      %v544 = vld [vmem:[%s163] sm:$0xa]
      %s545 = scalar_lea.vmem %s1, 256
      %v546 = vld [vmem:[%s545] sm:$0xf]
      %v547 = vld [vmem:[%s545 + $0x4] sm:$0xf]
      %v548 = vld [vmem:[%s545 + $0x8] sm:$0xf]
      %v549 = vld [vmem:[%s545 + $0xc] sm:$0xf]
      %v550 = vld [vmem:[%s545 + $0x10] sm:$0xf]
      %v551 = vld [vmem:[%s545 + $0x14] sm:$0xf]
      %v552 = vld [vmem:[%s545 + $0x18] sm:$0xf]
      %v553 = vld [vmem:[%s545 + $0x1c] sm:$0xf]
      %v554 = vld [vmem:[%s545 + $0x20] sm:$0xf]
      %v555 = vld [vmem:[%s545 + $0x24] sm:$0xf]
      %v556 = vld [vmem:[%s545 + $0x28] sm:$0xf]
      %v557 = vld [vmem:[%s545 + $0x2c] sm:$0xf]
      %v558 = vld [vmem:[%s545 + $0x30] sm:$0xf]
      %v559 = vld [vmem:[%s545 + $0x34] sm:$0xf]
      %v560 = vld [vmem:[%s545 + $0x38] sm:$0xf]
      %v561 = vld [vmem:[%s545 + $0x3c] sm:$0xf]
      %v562 = vld [vmem:[%s545 + $0x40] sm:$0xf]
      %v563 = vld [vmem:[%s545 + $0x44] sm:$0xf]
      %v564 = vld [vmem:[%s545 + $0x48] sm:$0xf]
      %v565 = vld [vmem:[%s545 + $0x4c] sm:$0xf]
      %v566 = vld [vmem:[%s545 + $0x50] sm:$0xf]
      %v567 = vld [vmem:[%s545 + $0x54] sm:$0xf]
      %v568 = vld [vmem:[%s545 + $0x58] sm:$0xf]
      %v569 = vld [vmem:[%s545 + $0x5c] sm:$0xf]
      %v570 = vld [vmem:[%s545 + $0x60] sm:$0xf]
      %v571 = vld [vmem:[%s545 + $0x64] sm:$0xf]
      %v572 = vld [vmem:[%s545 + $0x68] sm:$0xf]
      %v573 = vld [vmem:[%s545 + $0x6c] sm:$0xf]
      %v574 = vld [vmem:[%s545 + $0x70] sm:$0xf]
      %v575 = vld [vmem:[%s545 + $0x74] sm:$0xf]
      %v576 = vld [vmem:[%s545 + $0x78] sm:$0xf]
      %v577 = vld [vmem:[%s545 + $0x7c] sm:$0xf]
      %v580 = vunpack.c.l.s4 1983009808
      %v581 = vunpack.c.0.s8 %v580
      %v582 = vlaneseq
      %v583 = vshrl.u32 %v582, 7
      %v584 = vsub.s32 %v581, %v583
      %v585 = vrot.slane %v544, %v584
      %v586 = vcombine.high %v585, %v585
      %v587 = vrot.slane %v585, 1
      %v588 = vrot.slane %v586, 1
      %v623 = vunpack.c.l.b16 %v546
      %v624 = vunpack.c.l.b16 %v547
      %v625 = vunpack.c.l.b16 %v548
      %v626 = vunpack.c.l.b16 %v549
      %v627 = vunpack.c.l.b16 %v550
      %v628 = vunpack.c.l.b16 %v551
      %v629 = vunpack.c.l.b16 %v552
      %v630 = vunpack.c.l.b16 %v553
      %v631 = vunpack.c.l.b16 %v554
      %v632 = vunpack.c.l.b16 %v555
      %v633 = vunpack.c.l.b16 %v556
      %v634 = vunpack.c.l.b16 %v557
      %v635 = vunpack.c.l.b16 %v558
      %v636 = vunpack.c.l.b16 %v559
      %v637 = vunpack.c.l.b16 %v560
      %v638 = vunpack.c.l.b16 %v561
      %v639 = vunpack.c.l.b16 %v562
      %v640 = vunpack.c.l.b16 %v563
      %v641 = vunpack.c.l.b16 %v564
      %v642 = vunpack.c.l.b16 %v565
      %v643 = vunpack.c.l.b16 %v566
      %v644 = vunpack.c.l.b16 %v567
      %v645 = vunpack.c.l.b16 %v568
      %v646 = vunpack.c.l.b16 %v569
      %v647 = vunpack.c.l.b16 %v570
      %v648 = vunpack.c.l.b16 %v571
      %v649 = vunpack.c.l.b16 %v572
      %v650 = vunpack.c.l.b16 %v573
      %v651 = vunpack.c.l.b16 %v574
      %v652 = vunpack.c.l.b16 %v575
      %v653 = vunpack.c.l.b16 %v576
      %v654 = vunpack.c.l.b16 %v577
      %v655 = vpack.c.b16 %v624, %v623
      %v656 = vpack.c.b16 %v626, %v625
      %v657 = vpack.c.b16 %v628, %v627
      %v658 = vpack.c.b16 %v630, %v629
      %v659 = vpack.c.b16 %v632, %v631
      %v660 = vpack.c.b16 %v634, %v633
      %v661 = vpack.c.b16 %v636, %v635
      %v662 = vpack.c.b16 %v638, %v637
      %v663 = vpack.c.b16 %v640, %v639
      %v664 = vpack.c.b16 %v642, %v641
      %v665 = vpack.c.b16 %v644, %v643
      %v666 = vpack.c.b16 %v646, %v645
      %v667 = vpack.c.b16 %v648, %v647
      %v668 = vpack.c.b16 %v650, %v649
      %v669 = vpack.c.b16 %v652, %v651
      %v670 = vpack.c.b16 %v654, %v653
      %687 = vmatprep.subr.bf16.mxu0 0
      %688 = vmatpush1.bf16.msra.mxu0 %v655
      %689 = vmatprep.subr.bf16.mxu0 0
      %690 = vmatpush1.bf16.msra.mxu0 %v656
      %691 = vmatprep.subr.bf16.mxu0 0
      %692 = vmatpush1.bf16.msra.mxu0 %v657
      %693 = vmatprep.subr.bf16.mxu0 0
      %694 = vmatpush1.bf16.msra.mxu0 %v658
      %695 = vmatprep.subr.bf16.mxu0 0
      %696 = vmatpush1.bf16.msra.mxu0 %v659
      %697 = vmatprep.subr.bf16.mxu0 0
      %698 = vmatpush1.bf16.msra.mxu0 %v660
      %699 = vmatprep.subr.bf16.mxu0 0
      %700 = vmatpush1.bf16.msra.mxu0 %v661
      %701 = vmatprep.subr.bf16.mxu0 0
      %702 = vmatpush1.bf16.msra.mxu0 %v662
      %703 = vmatprep.subr.bf16.mxu0 0
      %704 = vmatpush1.bf16.msra.mxu0 %v663
      %705 = vmatprep.subr.bf16.mxu0 0
      %706 = vmatpush1.bf16.msra.mxu0 %v664
      %707 = vmatprep.subr.bf16.mxu0 0
      %708 = vmatpush1.bf16.msra.mxu0 %v665
      %709 = vmatprep.subr.bf16.mxu0 0
      %710 = vmatpush1.bf16.msra.mxu0 %v666
      %711 = vmatprep.subr.bf16.mxu0 0
      %712 = vmatpush1.bf16.msra.mxu0 %v667
      %713 = vmatprep.subr.bf16.mxu0 0
      %714 = vmatpush1.bf16.msra.mxu0 %v668
      %715 = vmatprep.subr.bf16.mxu0 0
      %716 = vmatpush1.bf16.msra.mxu0 %v669
      %717 = vmatprep.subr.bf16.mxu0 0
      %718 = vmatpush1.bf16.msra.mxu0 %v670
      %719 = vmatprep.mubr.bf16.mxu0 %v588
      %720 = vmatmul.mubr.bf16.gmra.mrb[0].mxu0 %v587
      %v721 = vpop.f32.mrb[0].mxu0
      %v722 = vadd.f32 0.0, %v721
      %v723 = vpop.f32.mrb[0].mxu0
      %v724 = vpop.f32.mrb[0].mxu0
      %v725 = vpop.f32.mrb[0].mxu0
      %726 = vdwg.mxu0
      %v727 = vadd.f32 %v539, %v722
      %v729 = vlaneseq
      %v730 = vshrl.u32 %v729, 7
      %v731 = vsub.s32 0, %v730
      %v732 = vrot.slane %v168, %v731
      %v734 = vadd.f32 %v727, %v732
      %v735 = vmax.f32 %v734, 0.0
      %v736 = vpack.c.bf16 %v735, %v735
      %737 = vst [vmem:[%s166] sm:$0x1] %v736
      %p738 = scmp.lt.s32.totalorder %s14, 1
      %s739 = scalar_select %p738, %s14, 1
      %s740 = scalar_lea.vmem %s3, %s739
      // Predicated region
      $region33: #{_lambda_.6} parent=31 // pred_check
        %p741 = pneg %p100
      $region34: #{_lambda_.6} parent=31 // pred_check_branch
        %743 = sbr.rel (%p741) target = $region36
      $region35: #{_lambda_.6} parent=31 // pred_region
        _
      $region36: #{_lambda_.6} parent=31 // pred_fallthru
        _
    $region32: #{_lambda_.6} parent=5 // pred_fallthru
      _
    %p744 = scmp.le.s32.totalorder 2, %s9
    // Predicated region
    $region37: #{_lambda_.6} parent=5 // pred_check
      %p745 = pneg %p744
    $region38: #{_lambda_.6} parent=5 // pred_check_branch
      %747 = sbr.rel (%p745) target = $region40
    $region39: #{_lambda_.6} parent=5 // pred_region
      %s748 = ssub.s32 %s9, 2
      // Predicated region
      $region41: #{_lambda_.6} parent=39 // pred_check
        %p749 = pneg %p106
      $region42: #{_lambda_.6} parent=39 // pred_check_branch
        %751 = sbr.rel (%p749) target = $region44
      $region43: #{_lambda_.6} parent=39 // pred_region
        %p752 = scmp.lt.s32.totalorder %s15, 1
        %s753 = scalar_select %p752, %s15, 1
        %s754 = scalar_lea.vmem %s3, %s753
      $region44: #{_lambda_.6} parent=39 // pred_fallthru
        _
    $region40: #{_lambda_.6} parent=5 // pred_fallthru
      _
  $region6: #{_lambda_.6} parent=0 // loop_footer
    %s13 = sadd.s32 1, %s9
  $region7: #{_lambda_.6} parent=0 // loop_footer_branch
    %8 = sbr.rel target = $region3
  $region8: #{_lambda_.6} parent=0 // loop_exit
    _

// kernel: _lambda_.5
$region0: #{_lambda_.5}
  #allocation0 [shape = 'u32[]', space=smem, size = 0x4, offset = 0x4, fixed_abs, tag = 'smem constant byte address 0x4 - core index']
  #allocation1 [shape = 'u32[144,128]{1,0:T(1,128)}', space=vmem, size = 0x12000, scoped, tag = 'internal scratch']
  %s0 = inlined_call_operand.vmem [shape: bf16[2,5,640], index: 0, kind: input, shape index: {}]
  %s1 = inlined_call_operand.vmem [shape: bf16[2,640,256], index: 1, kind: input, shape index: {}]
  %s2 = inlined_call_operand.vmem [shape: f32[1,256], index: 2, kind: input, shape index: {}]
  %s3 = inlined_call_operand.vmem [shape: bf16[2,4,256], index: 3, kind: output, shape index: {}]
  %s4 = sld [smem:[#allocation0]]
  $region45: #{_lambda_.5} parent=0
    _
  %s6 = ssub.s32 1, %s4
  %s7 = scalar_select 0, %s6, %s4
  loop: start=0, step=1, limit=4
  $region2: #{_lambda_.5} parent=0 // loop_pre_header
    _
  $region3: #{_lambda_.5} parent=0 // loop_header
    %s9 = sphi 0, %s13
    %p10 = scmp.ge.s32.totalorder %s9, 4
    %s19 = sphi 0, %s21
    %s22 = sphi 0, %s19
    %s23 = sphi 0, %s22
    %s39 = sphi 0, %s23
    %s43 = sphi 0, %s43
    %s45 = sphi 0, %s43
    %s46 = sphi 0, %s45
    %s60 = sphi 0, %s46
    %s64 = sphi 0, %s64
    %s66 = sphi 0, %s64
    %s67 = sphi 0, %s66
    %s81 = sphi 0, %s67
    %s87 = sphi 0, %s89
    %s90 = sphi 0, %s87
    %s91 = sphi 0, %s90
    %s107 = sphi 0, %s91
  $region4: #{_lambda_.5} parent=0 // loop_header_branch
    %12 = sbr.rel (%p10) target = $region8
  $region5: #{_lambda_.5} parent=0 // loop_body
    %s14 = ssub.s32 %s9, 1
    %s15 = ssub.s32 %s9, 2
    %s16 = sadd.s32 %s9, 1
    %s17 = ssub.s32 %s9, %s16
    %p18 = scmp.eq.s32.totalorder %s17, 0
    %s20 = sadd.s32 %s19, 1
    %s21 = scalar_select %p18, %s19, %s20
    %p24 = pneg %p18
    %p25 = scmp.eq.s32.totalorder %s9, 1
    %p26 = por %p24, %p25
    %p27 = scmp.ne.s32.totalorder %s19, %s22
    %p28 = scmp.eq.s32.totalorder %s9, 0
    %p29 = por %p27, %p28
    %p30 = scmp.ne.s32.totalorder %s19, %s22
    %p31 = scmp.eq.s32.totalorder %s14, 1
    %p32 = por %p30, %p31
    %p33 = scmp.ne.s32.totalorder %s22, %s23
    %p34 = scmp.eq.s32.totalorder %s14, 0
    %p35 = por %p33, %p34
    %p36 = scmp.ne.s32.totalorder %s22, %s23
    %p37 = scmp.eq.s32.totalorder %s15, 1
    %p38 = por %p36, %p37
    %p40 = scmp.ne.s32.totalorder %s23, %s39
    %p41 = scmp.eq.s32.totalorder %s15, 0
    %p42 = por %p40, %p41
    %s44 = sadd.s32 %s43, 1
    %p47 = scmp.eq.s32.totalorder %s9, 1
    %p48 = scmp.ne.s32.totalorder %s43, %s45
    %p49 = scmp.eq.s32.totalorder %s9, 0
    %p50 = por %p48, %p49
    %p51 = scmp.ne.s32.totalorder %s43, %s45
    %p52 = scmp.eq.s32.totalorder %s14, 1
    %p53 = por %p51, %p52
    %p54 = scmp.ne.s32.totalorder %s45, %s46
    %p55 = scmp.eq.s32.totalorder %s14, 0
    %p56 = por %p54, %p55
    %p57 = scmp.ne.s32.totalorder %s45, %s46
    %p58 = scmp.eq.s32.totalorder %s15, 1
    %p59 = por %p57, %p58
    %p61 = scmp.ne.s32.totalorder %s46, %s60
    %p62 = scmp.eq.s32.totalorder %s15, 0
    %p63 = por %p61, %p62
    %s65 = sadd.s32 %s64, 1
    %p68 = scmp.eq.s32.totalorder %s9, 1
    %p69 = scmp.ne.s32.totalorder %s64, %s66
    %p70 = scmp.eq.s32.totalorder %s9, 0
    %p71 = por %p69, %p70
    %p72 = scmp.ne.s32.totalorder %s64, %s66
    %p73 = scmp.eq.s32.totalorder %s14, 1
    %p74 = por %p72, %p73
    %p75 = scmp.ne.s32.totalorder %s66, %s67
    %p76 = scmp.eq.s32.totalorder %s14, 0
    %p77 = por %p75, %p76
    %p78 = scmp.ne.s32.totalorder %s66, %s67
    %p79 = scmp.eq.s32.totalorder %s15, 1
    %p80 = por %p78, %p79
    %p82 = scmp.ne.s32.totalorder %s67, %s81
    %p83 = scmp.eq.s32.totalorder %s15, 0
    %p84 = por %p82, %p83
    %s85 = ssub.s32 %s9, %s16
    %p86 = scmp.eq.s32.totalorder %s85, 0
    %s88 = sadd.s32 %s87, 1
    %s89 = scalar_select %p86, %s87, %s88
    %p92 = pneg %p86
    %p93 = scmp.eq.s32.totalorder %s9, 1
    %p94 = por %p92, %p93
    %p95 = scmp.ne.s32.totalorder %s87, %s90
    %p96 = scmp.eq.s32.totalorder %s9, 0
    %p97 = por %p95, %p96
    %p98 = scmp.ne.s32.totalorder %s87, %s90
    %p99 = scmp.eq.s32.totalorder %s14, 1
    %p100 = por %p98, %p99
    %p101 = scmp.ne.s32.totalorder %s90, %s91
    %p102 = scmp.eq.s32.totalorder %s14, 0
    %p103 = por %p101, %p102
    %p104 = scmp.ne.s32.totalorder %s90, %s91
    %p105 = scmp.eq.s32.totalorder %s15, 1
    %p106 = por %p104, %p105
    %p108 = scmp.ne.s32.totalorder %s91, %s107
    %p109 = scmp.eq.s32.totalorder %s15, 0
    %p110 = por %p108, %p109
    %p111 = scmp.le.s32.totalorder 1, %s9
    %p112 = scmp.lt.s32.totalorder %s9, 3
    %p113 = pnand %p111, %p112
    %p114 = pneg %p113
    // Predicated region
    $region9: #{_lambda_.5} parent=5 // pred_check
      _
    $region10: #{_lambda_.5} parent=5 // pred_check_branch
      %116 = sbr.rel (%p113) target = $region12
    $region11: #{_lambda_.5} parent=5 // pred_region
      %s117 = ssub.s32 %s9, 1
      // Predicated region
      $region13: #{_lambda_.5} parent=11 // pred_check
        %p118 = pneg %p56
      $region14: #{_lambda_.5} parent=11 // pred_check_branch
        %120 = sbr.rel (%p118) target = $region16
      $region15: #{_lambda_.5} parent=11 // pred_region
        _
      $region16: #{_lambda_.5} parent=11 // pred_fallthru
        _
      // Predicated region
      $region17: #{_lambda_.5} parent=11 // pred_check
        %p121 = pneg %p77
      $region18: #{_lambda_.5} parent=11 // pred_check_branch
        %123 = sbr.rel (%p121) target = $region20
      $region19: #{_lambda_.5} parent=11 // pred_region
        _
      $region20: #{_lambda_.5} parent=11 // pred_fallthru
        _
    $region12: #{_lambda_.5} parent=5 // pred_fallthru
      _
    %p124 = scmp.lt.s32.totalorder %s9, 2
    // Predicated region
    $region21: #{_lambda_.5} parent=5 // pred_check
      %p125 = pneg %p124
    $region22: #{_lambda_.5} parent=5 // pred_check_branch
      %127 = sbr.rel (%p125) target = $region24
    $region23: #{_lambda_.5} parent=5 // pred_region
      // Predicated region
      $region25: #{_lambda_.5} parent=23 // pred_check
        %p128 = pneg %p29
      $region26: #{_lambda_.5} parent=23 // pred_check_branch
        %130 = sbr.rel (%p128) target = $region28
      $region27: #{_lambda_.5} parent=23 // pred_region
        %p131 = scmp.lt.s32.totalorder %s9, 1
        %s132 = scalar_select %p131, %s9, 1
        %s133 = smul.addr %s132, 5
        %s134 = smul.addr %s133, 4
        %s135 = scalar_lea.vmem %s0, %s134
      $region28: #{_lambda_.5} parent=23 // pred_fallthru
        _
    $region24: #{_lambda_.5} parent=5 // pred_fallthru
      _
    %p136 = scmp.le.s32.totalorder 1, %s9
    %p137 = scmp.lt.s32.totalorder %s9, 3
    %p138 = pnand %p136, %p137
    %p139 = pneg %p138
    // Predicated region
    $region29: #{_lambda_.5} parent=5 // pred_check
      _
    $region30: #{_lambda_.5} parent=5 // pred_check_branch
      %141 = sbr.rel (%p138) target = $region32
    $region31: #{_lambda_.5} parent=5 // pred_region
      %s142 = ssub.s32 %s9, 1
      %p143 = scmp.lt.s32.totalorder %s14, 1
      %s144 = scalar_select %p143, %s14, 1
      %s145 = smul.addr %s144, 5
      %s146 = smul.addr %s145, 4
      %s147 = scalar_lea.vmem %s0, %s146
      %p148 = pneg %p35
      %p149 = pneg %p32
      %p150 = pneg %p56
      %p151 = pneg %p53
      %p152 = pneg %p77
      %p153 = pneg %p74
      %p154 = pneg %p103
      %p155 = pneg %p100
      %p156 = scmp.lt.s32.totalorder %s14, 1
      %s157 = scalar_select %p156, %s14, 1
      %s158 = smul.addr %s157, 2
      %s159 = smul.addr %s158, 2
      %s160 = scalar_lea.vmem %s3, %s159
      %p161 = scmp.lt.s32.totalorder %s14, 1
      %s162 = scalar_select %p161, %s14, 1
      %s163 = smul.addr %s162, 5
      %s164 = smul.addr %s163, 4
      %s165 = scalar_lea.vmem %s0, %s164
      %p166 = scmp.lt.s32.totalorder %s14, 1
      %s167 = scalar_select %p166, %s14, 1
      %s168 = smul.addr %s167, 2
      %s169 = smul.addr %s168, 2
      %s170 = scalar_lea.vmem %s3, %s169
      %v172 = vld [vmem:[%s2] sm:$0x3]
      %v173 = vld [vmem:[%s165] sm:$0x33]
      %v174 = vld [vmem:[%s165 + $0x8] sm:$0x33]
      %v175 = vld [vmem:[%s165 + $0x10] sm:$0x3]
      %v176 = vld [vmem:[%s1] sm:$0xff]
      %v177 = vld [vmem:[%s1 + $0x8] sm:$0xff]
      %v178 = vld [vmem:[%s1 + $0x10] sm:$0xff]
      %v179 = vld [vmem:[%s1 + $0x18] sm:$0xff]
      %v180 = vld [vmem:[%s1 + $0x20] sm:$0xff]
      %v181 = vld [vmem:[%s1 + $0x28] sm:$0xff]
      %v182 = vld [vmem:[%s1 + $0x30] sm:$0xff]
      %v183 = vld [vmem:[%s1 + $0x38] sm:$0xff]
      %v184 = vld [vmem:[%s1 + $0x40] sm:$0xff]
      %v185 = vld [vmem:[%s1 + $0x48] sm:$0xff]
      %v186 = vld [vmem:[%s1 + $0x50] sm:$0xff]
      %v187 = vld [vmem:[%s1 + $0x58] sm:$0xff]
      %v188 = vld [vmem:[%s1 + $0x60] sm:$0xff]
      %v189 = vld [vmem:[%s1 + $0x68] sm:$0xff]
      %v190 = vld [vmem:[%s1 + $0x70] sm:$0xff]
      %v191 = vld [vmem:[%s1 + $0x78] sm:$0xff]
      %v192 = vld [vmem:[%s1 + $0x80] sm:$0xff]
      %v193 = vld [vmem:[%s1 + $0x88] sm:$0xff]
      %v194 = vld [vmem:[%s1 + $0x90] sm:$0xff]
      %v195 = vld [vmem:[%s1 + $0x98] sm:$0xff]
      %v196 = vld [vmem:[%s1 + $0xa0] sm:$0xff]
      %v197 = vld [vmem:[%s1 + $0xa8] sm:$0xff]
      %v198 = vld [vmem:[%s1 + $0xb0] sm:$0xff]
      %v199 = vld [vmem:[%s1 + $0xb8] sm:$0xff]
      %v200 = vld [vmem:[%s1 + $0xc0] sm:$0xff]
      %v201 = vld [vmem:[%s1 + $0xc8] sm:$0xff]
      %v202 = vld [vmem:[%s1 + $0xd0] sm:$0xff]
      %v203 = vld [vmem:[%s1 + $0xd8] sm:$0xff]
      %v204 = vld [vmem:[%s1 + $0xe0] sm:$0xff]
      %v205 = vld [vmem:[%s1 + $0xe8] sm:$0xff]
      %v206 = vld [vmem:[%s1 + $0xf0] sm:$0xff]
      %v207 = vld [vmem:[%s1 + $0xf8] sm:$0xff]
      %v208 = vld [vmem:[%s1 + $0x100] sm:$0xff]
      %v209 = vld [vmem:[%s1 + $0x108] sm:$0xff]
      %v210 = vld [vmem:[%s1 + $0x110] sm:$0xff]
      %v211 = vld [vmem:[%s1 + $0x118] sm:$0xff]
      %v212 = vld [vmem:[%s1 + $0x120] sm:$0xff]
      %v213 = vld [vmem:[%s1 + $0x128] sm:$0xff]
      %v214 = vld [vmem:[%s1 + $0x130] sm:$0xff]
      %v215 = vld [vmem:[%s1 + $0x138] sm:$0xff]
      %v216 = vld [vmem:[%s1 + $0x140] sm:$0xff]
      %v217 = vld [vmem:[%s1 + $0x148] sm:$0xff]
      %v218 = vld [vmem:[%s1 + $0x150] sm:$0xff]
      %v219 = vld [vmem:[%s1 + $0x158] sm:$0xff]
      %v220 = vld [vmem:[%s1 + $0x160] sm:$0xff]
      %v221 = vld [vmem:[%s1 + $0x168] sm:$0xff]
      %v222 = vld [vmem:[%s1 + $0x170] sm:$0xff]
      %v223 = vld [vmem:[%s1 + $0x178] sm:$0xff]
      %v224 = vld [vmem:[%s1 + $0x180] sm:$0xff]
      %v225 = vld [vmem:[%s1 + $0x188] sm:$0xff]
      %v226 = vld [vmem:[%s1 + $0x190] sm:$0xff]
      %v227 = vld [vmem:[%s1 + $0x198] sm:$0xff]
      %v228 = vld [vmem:[%s1 + $0x1a0] sm:$0xff]
      %v229 = vld [vmem:[%s1 + $0x1a8] sm:$0xff]
      %v230 = vld [vmem:[%s1 + $0x1b0] sm:$0xff]
      %v231 = vld [vmem:[%s1 + $0x1b8] sm:$0xff]
      %v232 = vld [vmem:[%s1 + $0x1c0] sm:$0xff]
      %v233 = vld [vmem:[%s1 + $0x1c8] sm:$0xff]
      %v234 = vld [vmem:[%s1 + $0x1d0] sm:$0xff]
      %v235 = vld [vmem:[%s1 + $0x1d8] sm:$0xff]
      %v236 = vld [vmem:[%s1 + $0x1e0] sm:$0xff]
      %v237 = vld [vmem:[%s1 + $0x1e8] sm:$0xff]
      %v238 = vld [vmem:[%s1 + $0x1f0] sm:$0xff]
      %v239 = vld [vmem:[%s1 + $0x1f8] sm:$0xff]
      %v240 = vld [vmem:[%s1 + $0x200] sm:$0xff]
      %v241 = vld [vmem:[%s1 + $0x208] sm:$0xff]
      %v242 = vld [vmem:[%s1 + $0x210] sm:$0xff]
      %v243 = vld [vmem:[%s1 + $0x218] sm:$0xff]
      %v244 = vld [vmem:[%s1 + $0x220] sm:$0xff]
      %v245 = vld [vmem:[%s1 + $0x228] sm:$0xff]
      %v246 = vld [vmem:[%s1 + $0x230] sm:$0xff]
      %v247 = vld [vmem:[%s1 + $0x238] sm:$0xff]
      %v248 = vld [vmem:[%s1 + $0x240] sm:$0xff]
      %v249 = vld [vmem:[%s1 + $0x248] sm:$0xff]
      %v250 = vld [vmem:[%s1 + $0x250] sm:$0xff]
      %v251 = vld [vmem:[%s1 + $0x258] sm:$0xff]
      %v252 = vld [vmem:[%s1 + $0x260] sm:$0xff]
      %v253 = vld [vmem:[%s1 + $0x268] sm:$0xff]
      %v254 = vld [vmem:[%s1 + $0x270] sm:$0xff]
      %v255 = vld [vmem:[%s1 + $0x278] sm:$0xff]
      %v256 = vld [vmem:[%s165] sm:$0x77]
      %v257 = vld [vmem:[%s165 + $0x8] sm:$0x77]
      %v258 = vld [vmem:[%s165 + $0x10] sm:$0x7]
      %s259 = scalar_lea.vmem %s1, 640
      %v260 = vld [vmem:[%s259] sm:$0xff]
      %v261 = vld [vmem:[%s259 + $0x8] sm:$0xff]
      %v262 = vld [vmem:[%s259 + $0x10] sm:$0xff]
      %v263 = vld [vmem:[%s259 + $0x18] sm:$0xff]
      %v264 = vld [vmem:[%s259 + $0x20] sm:$0xff]
      %v265 = vld [vmem:[%s259 + $0x28] sm:$0xff]
      %v266 = vld [vmem:[%s259 + $0x30] sm:$0xff]
      %v267 = vld [vmem:[%s259 + $0x38] sm:$0xff]
      %v268 = vld [vmem:[%s259 + $0x40] sm:$0xff]
      %v269 = vld [vmem:[%s259 + $0x48] sm:$0xff]
      %v270 = vld [vmem:[%s259 + $0x50] sm:$0xff]
      %v271 = vld [vmem:[%s259 + $0x58] sm:$0xff]
      %v272 = vld [vmem:[%s259 + $0x60] sm:$0xff]
      %v273 = vld [vmem:[%s259 + $0x68] sm:$0xff]
      %v274 = vld [vmem:[%s259 + $0x70] sm:$0xff]
      %v275 = vld [vmem:[%s259 + $0x78] sm:$0xff]
      %v276 = vld [vmem:[%s259 + $0x80] sm:$0xff]
      %v277 = vld [vmem:[%s259 + $0x88] sm:$0xff]
      %v278 = vld [vmem:[%s259 + $0x90] sm:$0xff]
      %v279 = vld [vmem:[%s259 + $0x98] sm:$0xff]
      %v280 = vld [vmem:[%s259 + $0xa0] sm:$0xff]
      %v281 = vld [vmem:[%s259 + $0xa8] sm:$0xff]
      %v282 = vld [vmem:[%s259 + $0xb0] sm:$0xff]
      %v283 = vld [vmem:[%s259 + $0xb8] sm:$0xff]
      %v284 = vld [vmem:[%s259 + $0xc0] sm:$0xff]
      %v285 = vld [vmem:[%s259 + $0xc8] sm:$0xff]
      %v286 = vld [vmem:[%s259 + $0xd0] sm:$0xff]
      %v287 = vld [vmem:[%s259 + $0xd8] sm:$0xff]
      %v288 = vld [vmem:[%s259 + $0xe0] sm:$0xff]
      %v289 = vld [vmem:[%s259 + $0xe8] sm:$0xff]
      %v290 = vld [vmem:[%s259 + $0xf0] sm:$0xff]
      %v291 = vld [vmem:[%s259 + $0xf8] sm:$0xff]
      %v292 = vld [vmem:[%s259 + $0x100] sm:$0xff]
      %v293 = vld [vmem:[%s259 + $0x108] sm:$0xff]
      %v294 = vld [vmem:[%s259 + $0x110] sm:$0xff]
      %v295 = vld [vmem:[%s259 + $0x118] sm:$0xff]
      %v296 = vld [vmem:[%s259 + $0x120] sm:$0xff]
      %v297 = vld [vmem:[%s259 + $0x128] sm:$0xff]
      %v298 = vld [vmem:[%s259 + $0x130] sm:$0xff]
      %v299 = vld [vmem:[%s259 + $0x138] sm:$0xff]
      %v300 = vld [vmem:[%s259 + $0x140] sm:$0xff]
      %v301 = vld [vmem:[%s259 + $0x148] sm:$0xff]
      %v302 = vld [vmem:[%s259 + $0x150] sm:$0xff]
      %v303 = vld [vmem:[%s259 + $0x158] sm:$0xff]
      %v304 = vld [vmem:[%s259 + $0x160] sm:$0xff]
      %v305 = vld [vmem:[%s259 + $0x168] sm:$0xff]
      %v306 = vld [vmem:[%s259 + $0x170] sm:$0xff]
      %v307 = vld [vmem:[%s259 + $0x178] sm:$0xff]
      %v308 = vld [vmem:[%s259 + $0x180] sm:$0xff]
      %v309 = vld [vmem:[%s259 + $0x188] sm:$0xff]
      %v310 = vld [vmem:[%s259 + $0x190] sm:$0xff]
      %v311 = vld [vmem:[%s259 + $0x198] sm:$0xff]
      %v312 = vld [vmem:[%s259 + $0x1a0] sm:$0xff]
      %v313 = vld [vmem:[%s259 + $0x1a8] sm:$0xff]
      %v314 = vld [vmem:[%s259 + $0x1b0] sm:$0xff]
      %v315 = vld [vmem:[%s259 + $0x1b8] sm:$0xff]
      %v316 = vld [vmem:[%s259 + $0x1c0] sm:$0xff]
      %v317 = vld [vmem:[%s259 + $0x1c8] sm:$0xff]
      %v318 = vld [vmem:[%s259 + $0x1d0] sm:$0xff]
      %v319 = vld [vmem:[%s259 + $0x1d8] sm:$0xff]
      %v320 = vld [vmem:[%s259 + $0x1e0] sm:$0xff]
      %v321 = vld [vmem:[%s259 + $0x1e8] sm:$0xff]
      %v322 = vld [vmem:[%s259 + $0x1f0] sm:$0xff]
      %v323 = vld [vmem:[%s259 + $0x1f8] sm:$0xff]
      %v324 = vld [vmem:[%s259 + $0x200] sm:$0xff]
      %v325 = vld [vmem:[%s259 + $0x208] sm:$0xff]
      %v326 = vld [vmem:[%s259 + $0x210] sm:$0xff]
      %v327 = vld [vmem:[%s259 + $0x218] sm:$0xff]
      %v328 = vld [vmem:[%s259 + $0x220] sm:$0xff]
      %v329 = vld [vmem:[%s259 + $0x228] sm:$0xff]
      %v330 = vld [vmem:[%s259 + $0x230] sm:$0xff]
      %v331 = vld [vmem:[%s259 + $0x238] sm:$0xff]
      %v332 = vld [vmem:[%s259 + $0x240] sm:$0xff]
      %v333 = vld [vmem:[%s259 + $0x248] sm:$0xff]
      %v334 = vld [vmem:[%s259 + $0x250] sm:$0xff]
      %v335 = vld [vmem:[%s259 + $0x258] sm:$0xff]
      %v336 = vld [vmem:[%s259 + $0x260] sm:$0xff]
      %v337 = vld [vmem:[%s259 + $0x268] sm:$0xff]
      %v338 = vld [vmem:[%s259 + $0x270] sm:$0xff]
      %v339 = vld [vmem:[%s259 + $0x278] sm:$0xff]
      %v343 = vunpack.c.l.b16 %v256
      %v344 = vunpack.c.h.b16 %v256
      %v345 = vunpack.c.l.b16 %v257
      %v346 = vunpack.c.h.b16 %v257
      %v347 = vunpack.c.l.b16 %v258
      %v348 = vpack.c.b16 %v343, %v343
      %v349 = vpack.c.b16 %v344, %v344
      %v350 = vpack.c.b16 %v345, %v345
      %v351 = vpack.c.b16 %v346, %v346
      %v352 = vpack.c.b16 %v347, %v347
      %v354 = vshrl.u32 %v348, 16
      %v356 = vshll.u32 %v348, 16
      %v358 = vrot.slane %v356, 1
      %v359 = vor.u32 %v354, %v358
      %v361 = vshrl.u32 %v349, 16
      %v363 = vshll.u32 %v349, 16
      %v365 = vrot.slane %v363, 1
      %v366 = vor.u32 %v361, %v365
      %v368 = vshrl.u32 %v350, 16
      %v370 = vshll.u32 %v350, 16
      %v372 = vrot.slane %v370, 1
      %v373 = vor.u32 %v368, %v372
      %v375 = vshrl.u32 %v351, 16
      %v377 = vshll.u32 %v351, 16
      %v379 = vrot.slane %v377, 1
      %v380 = vor.u32 %v375, %v379
      %v382 = vshrl.u32 %v352, 16
      %v384 = vshll.u32 %v352, 16
      %v386 = vrot.slane %v384, 1
      %v387 = vor.u32 %v382, %v386
      %v473 = vunpack.c.l.b16 %v260
      %v474 = vunpack.c.h.b16 %v260
      %v475 = vunpack.c.l.b16 %v261
      %v476 = vunpack.c.h.b16 %v261
      %v477 = vunpack.c.l.b16 %v262
      %v478 = vunpack.c.h.b16 %v262
      %v479 = vunpack.c.l.b16 %v263
      %v480 = vunpack.c.h.b16 %v263
      %v481 = vunpack.c.l.b16 %v264
      %v482 = vunpack.c.h.b16 %v264
      %v483 = vunpack.c.l.b16 %v265
      %v484 = vunpack.c.h.b16 %v265
      %v485 = vunpack.c.l.b16 %v266
      %v486 = vunpack.c.h.b16 %v266
      %v487 = vunpack.c.l.b16 %v267
      %v488 = vunpack.c.h.b16 %v267
      %v489 = vunpack.c.l.b16 %v268
      %v490 = vunpack.c.h.b16 %v268
      %v491 = vunpack.c.l.b16 %v269
      %v492 = vunpack.c.h.b16 %v269
      %v493 = vunpack.c.l.b16 %v270
      %v494 = vunpack.c.h.b16 %v270
      %v495 = vunpack.c.l.b16 %v271
      %v496 = vunpack.c.h.b16 %v271
      %v497 = vunpack.c.l.b16 %v272
      %v498 = vunpack.c.h.b16 %v272
      %v499 = vunpack.c.l.b16 %v273
      %v500 = vunpack.c.h.b16 %v273
      %v501 = vunpack.c.l.b16 %v274
      %v502 = vunpack.c.h.b16 %v274
      %v503 = vunpack.c.l.b16 %v275
      %v504 = vunpack.c.h.b16 %v275
      %v505 = vunpack.c.l.b16 %v276
      %v506 = vunpack.c.h.b16 %v276
      %v507 = vunpack.c.l.b16 %v277
      %v508 = vunpack.c.h.b16 %v277
      %v509 = vunpack.c.l.b16 %v278
      %v510 = vunpack.c.h.b16 %v278
      %v511 = vunpack.c.l.b16 %v279
      %v512 = vunpack.c.h.b16 %v279
      %v513 = vunpack.c.l.b16 %v280
      %v514 = vunpack.c.h.b16 %v280
      %v515 = vunpack.c.l.b16 %v281
      %v516 = vunpack.c.h.b16 %v281
      %v517 = vunpack.c.l.b16 %v282
      %v518 = vunpack.c.h.b16 %v282
      %v519 = vunpack.c.l.b16 %v283
      %v520 = vunpack.c.h.b16 %v283
      %v521 = vunpack.c.l.b16 %v284
      %v522 = vunpack.c.h.b16 %v284
      %v523 = vunpack.c.l.b16 %v285
      %v524 = vunpack.c.h.b16 %v285
      %v525 = vunpack.c.l.b16 %v286
      %v526 = vunpack.c.h.b16 %v286
      %v527 = vunpack.c.l.b16 %v287
      %v528 = vunpack.c.h.b16 %v287
      %v529 = vunpack.c.l.b16 %v288
      %v530 = vunpack.c.h.b16 %v288
      %v531 = vunpack.c.l.b16 %v289
      %v532 = vunpack.c.h.b16 %v289
      %v533 = vunpack.c.l.b16 %v290
      %v534 = vunpack.c.h.b16 %v290
      %v535 = vunpack.c.l.b16 %v291
      %v536 = vunpack.c.h.b16 %v291
      %v537 = vunpack.c.l.b16 %v292
      %v538 = vunpack.c.h.b16 %v292
      %v539 = vunpack.c.l.b16 %v293
      %v540 = vunpack.c.h.b16 %v293
      %v541 = vunpack.c.l.b16 %v294
      %v542 = vunpack.c.h.b16 %v294
      %v543 = vunpack.c.l.b16 %v295
      %v544 = vunpack.c.h.b16 %v295
      %v545 = vunpack.c.l.b16 %v296
      %v546 = vunpack.c.h.b16 %v296
      %v547 = vunpack.c.l.b16 %v297
      %v548 = vunpack.c.h.b16 %v297
      %v549 = vunpack.c.l.b16 %v298
      %v550 = vunpack.c.h.b16 %v298
      %v551 = vunpack.c.l.b16 %v299
      %v552 = vunpack.c.h.b16 %v299
      %v553 = vunpack.c.l.b16 %v300
      %v554 = vunpack.c.h.b16 %v300
      %v555 = vunpack.c.l.b16 %v301
      %v556 = vunpack.c.h.b16 %v301
      %v557 = vunpack.c.l.b16 %v302
      %v558 = vunpack.c.h.b16 %v302
      %v559 = vunpack.c.l.b16 %v303
      %v560 = vunpack.c.h.b16 %v303
      %v561 = vunpack.c.l.b16 %v304
      %v562 = vunpack.c.h.b16 %v304
      %v563 = vunpack.c.l.b16 %v305
      %v564 = vunpack.c.h.b16 %v305
      %v565 = vunpack.c.l.b16 %v306
      %v566 = vunpack.c.h.b16 %v306
      %v567 = vunpack.c.l.b16 %v307
      %v568 = vunpack.c.h.b16 %v307
      %v569 = vunpack.c.l.b16 %v308
      %v570 = vunpack.c.h.b16 %v308
      %v571 = vunpack.c.l.b16 %v309
      %v572 = vunpack.c.h.b16 %v309
      %v573 = vunpack.c.l.b16 %v310
      %v574 = vunpack.c.h.b16 %v310
      %v575 = vunpack.c.l.b16 %v311
      %v576 = vunpack.c.h.b16 %v311
      %v577 = vunpack.c.l.b16 %v312
      %v578 = vunpack.c.h.b16 %v312
      %v579 = vunpack.c.l.b16 %v313
      %v580 = vunpack.c.h.b16 %v313
      %v581 = vunpack.c.l.b16 %v314
      %v582 = vunpack.c.h.b16 %v314
      %v583 = vunpack.c.l.b16 %v315
      %v584 = vunpack.c.h.b16 %v315
      %v585 = vunpack.c.l.b16 %v316
      %v586 = vunpack.c.h.b16 %v316
      %v587 = vunpack.c.l.b16 %v317
      %v588 = vunpack.c.h.b16 %v317
      %v589 = vunpack.c.l.b16 %v318
      %v590 = vunpack.c.h.b16 %v318
      %v591 = vunpack.c.l.b16 %v319
      %v592 = vunpack.c.h.b16 %v319
      %v593 = vunpack.c.l.b16 %v320
      %v594 = vunpack.c.h.b16 %v320
      %v595 = vunpack.c.l.b16 %v321
      %v596 = vunpack.c.h.b16 %v321
      %v597 = vunpack.c.l.b16 %v322
      %v598 = vunpack.c.h.b16 %v322
      %v599 = vunpack.c.l.b16 %v323
      %v600 = vunpack.c.h.b16 %v323
      %v601 = vunpack.c.l.b16 %v324
      %v602 = vunpack.c.h.b16 %v324
      %v603 = vunpack.c.l.b16 %v325
      %v604 = vunpack.c.h.b16 %v325
      %v605 = vunpack.c.l.b16 %v326
      %v606 = vunpack.c.h.b16 %v326
      %v607 = vunpack.c.l.b16 %v327
      %v608 = vunpack.c.h.b16 %v327
      %v609 = vunpack.c.l.b16 %v328
      %v610 = vunpack.c.h.b16 %v328
      %v611 = vunpack.c.l.b16 %v329
      %v612 = vunpack.c.h.b16 %v329
      %v613 = vunpack.c.l.b16 %v330
      %v614 = vunpack.c.h.b16 %v330
      %v615 = vunpack.c.l.b16 %v331
      %v616 = vunpack.c.h.b16 %v331
      %v617 = vunpack.c.l.b16 %v332
      %v618 = vunpack.c.h.b16 %v332
      %v619 = vunpack.c.l.b16 %v333
      %v620 = vunpack.c.h.b16 %v333
      %v621 = vunpack.c.l.b16 %v334
      %v622 = vunpack.c.h.b16 %v334
      %v623 = vunpack.c.l.b16 %v335
      %v624 = vunpack.c.h.b16 %v335
      %v625 = vunpack.c.l.b16 %v336
      %v626 = vunpack.c.h.b16 %v336
      %v627 = vunpack.c.l.b16 %v337
      %v628 = vunpack.c.h.b16 %v337
      %v629 = vunpack.c.l.b16 %v338
      %v630 = vunpack.c.h.b16 %v338
      %v631 = vunpack.c.l.b16 %v339
      %v632 = vunpack.c.h.b16 %v339
      %v633 = vpack.c.b16 %v475, %v473
      %v634 = vpack.c.b16 %v476, %v474
      %v635 = vpack.c.b16 %v479, %v477
      %v636 = vpack.c.b16 %v480, %v478
      %v637 = vpack.c.b16 %v483, %v481
      %v638 = vpack.c.b16 %v484, %v482
      %v639 = vpack.c.b16 %v487, %v485
      %v640 = vpack.c.b16 %v488, %v486
      %v641 = vpack.c.b16 %v491, %v489
      %v642 = vpack.c.b16 %v492, %v490
      %v643 = vpack.c.b16 %v495, %v493
      %v644 = vpack.c.b16 %v496, %v494
      %v645 = vpack.c.b16 %v499, %v497
      %v646 = vpack.c.b16 %v500, %v498
      %v647 = vpack.c.b16 %v503, %v501
      %v648 = vpack.c.b16 %v504, %v502
      %v649 = vpack.c.b16 %v507, %v505
      %v650 = vpack.c.b16 %v508, %v506
      %v651 = vpack.c.b16 %v511, %v509
      %v652 = vpack.c.b16 %v512, %v510
      %v653 = vpack.c.b16 %v515, %v513
      %v654 = vpack.c.b16 %v516, %v514
      %v655 = vpack.c.b16 %v519, %v517
      %v656 = vpack.c.b16 %v520, %v518
      %v657 = vpack.c.b16 %v523, %v521
      %v658 = vpack.c.b16 %v524, %v522
      %v659 = vpack.c.b16 %v527, %v525
      %v660 = vpack.c.b16 %v528, %v526
      %v661 = vpack.c.b16 %v531, %v529
      %v662 = vpack.c.b16 %v532, %v530
      %v663 = vpack.c.b16 %v535, %v533
      %v664 = vpack.c.b16 %v536, %v534
      %v665 = vpack.c.b16 %v539, %v537
      %v666 = vpack.c.b16 %v540, %v538
      %v667 = vpack.c.b16 %v543, %v541
      %v668 = vpack.c.b16 %v544, %v542
      %v669 = vpack.c.b16 %v547, %v545
      %v670 = vpack.c.b16 %v548, %v546
      %v671 = vpack.c.b16 %v551, %v549
      %v672 = vpack.c.b16 %v552, %v550
      %v673 = vpack.c.b16 %v555, %v553
      %v674 = vpack.c.b16 %v556, %v554
      %v675 = vpack.c.b16 %v559, %v557
      %v676 = vpack.c.b16 %v560, %v558
      %v677 = vpack.c.b16 %v563, %v561
      %v678 = vpack.c.b16 %v564, %v562
      %v679 = vpack.c.b16 %v567, %v565
      %v680 = vpack.c.b16 %v568, %v566
      %v681 = vpack.c.b16 %v571, %v569
      %v682 = vpack.c.b16 %v572, %v570
      %v683 = vpack.c.b16 %v575, %v573
      %v684 = vpack.c.b16 %v576, %v574
      %v685 = vpack.c.b16 %v579, %v577
      %v686 = vpack.c.b16 %v580, %v578
      %v687 = vpack.c.b16 %v583, %v581
      %v688 = vpack.c.b16 %v584, %v582
      %v689 = vpack.c.b16 %v587, %v585
      %v690 = vpack.c.b16 %v588, %v586
      %v691 = vpack.c.b16 %v591, %v589
      %v692 = vpack.c.b16 %v592, %v590
      %v693 = vpack.c.b16 %v595, %v593
      %v694 = vpack.c.b16 %v596, %v594
      %v695 = vpack.c.b16 %v599, %v597
      %v696 = vpack.c.b16 %v600, %v598
      %v697 = vpack.c.b16 %v603, %v601
      %v698 = vpack.c.b16 %v604, %v602
      %v699 = vpack.c.b16 %v607, %v605
      %v700 = vpack.c.b16 %v608, %v606
      %v701 = vpack.c.b16 %v611, %v609
      %v702 = vpack.c.b16 %v612, %v610
      %v703 = vpack.c.b16 %v615, %v613
      %v704 = vpack.c.b16 %v616, %v614
      %v705 = vpack.c.b16 %v619, %v617
      %v706 = vpack.c.b16 %v620, %v618
      %v707 = vpack.c.b16 %v623, %v621
      %v708 = vpack.c.b16 %v624, %v622
      %v709 = vpack.c.b16 %v627, %v625
      %v710 = vpack.c.b16 %v628, %v626
      %v711 = vpack.c.b16 %v631, %v629
      %v712 = vpack.c.b16 %v632, %v630
      %793 = vmatprep.subr.bf16.mxu0 %v634
      %794 = vmatpush1.bf16.msra.mxu0 %v633
      %795 = vmatprep.subr.bf16.mxu0 %v636
      %796 = vmatpush1.bf16.msra.mxu0 %v635
      %797 = vmatprep.subr.bf16.mxu0 %v638
      %798 = vmatpush1.bf16.msra.mxu0 %v637
      %799 = vmatprep.subr.bf16.mxu0 %v640
      %800 = vmatpush1.bf16.msra.mxu0 %v639
      %801 = vmatprep.subr.bf16.mxu0 %v642
      %802 = vmatpush1.bf16.msra.mxu0 %v641
      %803 = vmatprep.subr.bf16.mxu0 %v644
      %804 = vmatpush1.bf16.msra.mxu0 %v643
      %805 = vmatprep.subr.bf16.mxu0 %v646
      %806 = vmatpush1.bf16.msra.mxu0 %v645
      %807 = vmatprep.subr.bf16.mxu0 %v648
      %808 = vmatpush1.bf16.msra.mxu0 %v647
      %809 = vmatprep.subr.bf16.mxu0 %v650
      %810 = vmatpush1.bf16.msra.mxu0 %v649
      %811 = vmatprep.subr.bf16.mxu0 %v652
      %812 = vmatpush1.bf16.msra.mxu0 %v651
      %813 = vmatprep.subr.bf16.mxu0 %v654
      %814 = vmatpush1.bf16.msra.mxu0 %v653
      %815 = vmatprep.subr.bf16.mxu0 %v656
      %816 = vmatpush1.bf16.msra.mxu0 %v655
      %817 = vmatprep.subr.bf16.mxu0 %v658
      %818 = vmatpush1.bf16.msra.mxu0 %v657
      %819 = vmatprep.subr.bf16.mxu0 %v660
      %820 = vmatpush1.bf16.msra.mxu0 %v659
      %821 = vmatprep.subr.bf16.mxu0 %v662
      %822 = vmatpush1.bf16.msra.mxu0 %v661
      %823 = vmatprep.subr.bf16.mxu0 %v664
      %824 = vmatpush1.bf16.msra.mxu0 %v663
      %825 = vmatprep.mubr.bf16.mxu0 %v366
      %826 = vmatmul.mubr.bf16.gmra.mrb[0].mxu0 %v359
      %v827 = vpop.f32.mrb[0].mxu0
      %v828 = vadd.f32 0.0, %v827
      %v829 = vpop.f32.mrb[0].mxu0
      %v830 = vadd.f32 0.0, %v829
      %v831 = vpop.f32.mrb[0].mxu0
      %v832 = vpop.f32.mrb[0].mxu0
      %833 = vdwg.mxu0
      %834 = vmatprep.subr.bf16.mxu0 %v666
      %835 = vmatpush1.bf16.msra.mxu0 %v665
      %836 = vmatprep.subr.bf16.mxu0 %v668
      %837 = vmatpush1.bf16.msra.mxu0 %v667
      %838 = vmatprep.subr.bf16.mxu0 %v670
      %839 = vmatpush1.bf16.msra.mxu0 %v669
      %840 = vmatprep.subr.bf16.mxu0 %v672
      %841 = vmatpush1.bf16.msra.mxu0 %v671
      %842 = vmatprep.subr.bf16.mxu0 %v674
      %843 = vmatpush1.bf16.msra.mxu0 %v673
      %844 = vmatprep.subr.bf16.mxu0 %v676
      %845 = vmatpush1.bf16.msra.mxu0 %v675
      %846 = vmatprep.subr.bf16.mxu0 %v678
      %847 = vmatpush1.bf16.msra.mxu0 %v677
      %848 = vmatprep.subr.bf16.mxu0 %v680
      %849 = vmatpush1.bf16.msra.mxu0 %v679
      %850 = vmatprep.subr.bf16.mxu0 %v682
      %851 = vmatpush1.bf16.msra.mxu0 %v681
      %852 = vmatprep.subr.bf16.mxu0 %v684
      %853 = vmatpush1.bf16.msra.mxu0 %v683
      %854 = vmatprep.subr.bf16.mxu0 %v686
      %855 = vmatpush1.bf16.msra.mxu0 %v685
      %856 = vmatprep.subr.bf16.mxu0 %v688
      %857 = vmatpush1.bf16.msra.mxu0 %v687
      %858 = vmatprep.subr.bf16.mxu0 %v690
      %859 = vmatpush1.bf16.msra.mxu0 %v689
      %860 = vmatprep.subr.bf16.mxu0 %v692
      %861 = vmatpush1.bf16.msra.mxu0 %v691
      %862 = vmatprep.subr.bf16.mxu0 %v694
      %863 = vmatpush1.bf16.msra.mxu0 %v693
      %864 = vmatprep.subr.bf16.mxu0 %v696
      %865 = vmatpush1.bf16.msra.mxu0 %v695
      %866 = vmatprep.mubr.bf16.mxu0 %v380
      %867 = vmatmul.mubr.bf16.gmra.mrb[0].mxu0 %v373
      %v868 = vpop.f32.mrb[0].mxu0
      %v869 = vadd.f32 %v828, %v868
      %v870 = vpop.f32.mrb[0].mxu0
      %v871 = vadd.f32 %v830, %v870
      %v872 = vpop.f32.mrb[0].mxu0
      %v873 = vpop.f32.mrb[0].mxu0
      %874 = vdwg.mxu0
      %875 = vmatprep.subr.bf16.mxu0 %v698
      %876 = vmatpush1.bf16.msra.mxu0 %v697
      %877 = vmatprep.subr.bf16.mxu0 %v700
      %878 = vmatpush1.bf16.msra.mxu0 %v699
      %879 = vmatprep.subr.bf16.mxu0 %v702
      %880 = vmatpush1.bf16.msra.mxu0 %v701
      %881 = vmatprep.subr.bf16.mxu0 %v704
      %882 = vmatpush1.bf16.msra.mxu0 %v703
      %883 = vmatprep.subr.bf16.mxu0 %v706
      %884 = vmatpush1.bf16.msra.mxu0 %v705
      %885 = vmatprep.subr.bf16.mxu0 %v708
      %886 = vmatpush1.bf16.msra.mxu0 %v707
      %887 = vmatprep.subr.bf16.mxu0 %v710
      %888 = vmatpush1.bf16.msra.mxu0 %v709
      %889 = vmatprep.subr.bf16.mxu0 %v712
      %890 = vmatpush1.bf16.msra.mxu0 %v711
      %891 = vmatprep.subr.bf16.mxu0 0
      %892 = vmatpush1.bf16.msra.mxu0 0
      %893 = vmatprep.subr.bf16.mxu0 0
      %894 = vmatpush1.bf16.msra.mxu0 0
      %895 = vmatprep.subr.bf16.mxu0 0
      %896 = vmatpush1.bf16.msra.mxu0 0
      %897 = vmatprep.subr.bf16.mxu0 0
      %898 = vmatpush1.bf16.msra.mxu0 0
      %899 = vmatprep.subr.bf16.mxu0 0
      %900 = vmatpush1.bf16.msra.mxu0 0
      %901 = vmatprep.subr.bf16.mxu0 0
      %902 = vmatpush1.bf16.msra.mxu0 0
      %903 = vmatprep.subr.bf16.mxu0 0
      %904 = vmatpush1.bf16.msra.mxu0 0
      %905 = vmatprep.subr.bf16.mxu0 0
      %906 = vmatpush1.bf16.msra.mxu0 0
      %907 = vmatprep.mubr.bf16.mxu0 0
      %908 = vmatmul.mubr.bf16.gmra.mrb[0].mxu0 %v387
      %v909 = vpop.f32.mrb[0].mxu0
      %v910 = vadd.f32 %v869, %v909
      %v911 = vpop.f32.mrb[0].mxu0
      %v912 = vadd.f32 %v871, %v911
      %v913 = vpop.f32.mrb[0].mxu0
      %v914 = vpop.f32.mrb[0].mxu0
      %915 = vdwg.mxu0
      %v919 = vunpack.c.l.b16 %v173
      %v920 = vunpack.c.h.b16 %v173
      %v921 = vunpack.c.l.b16 %v174
      %v922 = vunpack.c.h.b16 %v174
      %v923 = vunpack.c.l.b16 %v175
      %v924 = vpack.c.b16 %v919, %v919
      %v925 = vpack.c.b16 %v920, %v920
      %v926 = vpack.c.b16 %v921, %v921
      %v927 = vpack.c.b16 %v922, %v922
      %v928 = vpack.c.b16 %v923, %v923
      %v1014 = vunpack.c.l.b16 %v176
      %v1015 = vunpack.c.h.b16 %v176
      %v1016 = vunpack.c.l.b16 %v177
      %v1017 = vunpack.c.h.b16 %v177
      %v1018 = vunpack.c.l.b16 %v178
      %v1019 = vunpack.c.h.b16 %v178
      %v1020 = vunpack.c.l.b16 %v179
      %v1021 = vunpack.c.h.b16 %v179
      %v1022 = vunpack.c.l.b16 %v180
      %v1023 = vunpack.c.h.b16 %v180
      %v1024 = vunpack.c.l.b16 %v181
      %v1025 = vunpack.c.h.b16 %v181
      %v1026 = vunpack.c.l.b16 %v182
      %v1027 = vunpack.c.h.b16 %v182
      %v1028 = vunpack.c.l.b16 %v183
      %v1029 = vunpack.c.h.b16 %v183
      %v1030 = vunpack.c.l.b16 %v184
      %v1031 = vunpack.c.h.b16 %v184
      %v1032 = vunpack.c.l.b16 %v185
      %v1033 = vunpack.c.h.b16 %v185
      %v1034 = vunpack.c.l.b16 %v186
      %v1035 = vunpack.c.h.b16 %v186
      %v1036 = vunpack.c.l.b16 %v187
      %v1037 = vunpack.c.h.b16 %v187
      %v1038 = vunpack.c.l.b16 %v188
      %v1039 = vunpack.c.h.b16 %v188
      %v1040 = vunpack.c.l.b16 %v189
      %v1041 = vunpack.c.h.b16 %v189
      %v1042 = vunpack.c.l.b16 %v190
      %v1043 = vunpack.c.h.b16 %v190
      %v1044 = vunpack.c.l.b16 %v191
      %v1045 = vunpack.c.h.b16 %v191
      %v1046 = vunpack.c.l.b16 %v192
      %v1047 = vunpack.c.h.b16 %v192
      %v1048 = vunpack.c.l.b16 %v193
      %v1049 = vunpack.c.h.b16 %v193
      %v1050 = vunpack.c.l.b16 %v194
      %v1051 = vunpack.c.h.b16 %v194
      %v1052 = vunpack.c.l.b16 %v195
      %v1053 = vunpack.c.h.b16 %v195
      %v1054 = vunpack.c.l.b16 %v196
      %v1055 = vunpack.c.h.b16 %v196
      %v1056 = vunpack.c.l.b16 %v197
      %v1057 = vunpack.c.h.b16 %v197
      %v1058 = vunpack.c.l.b16 %v198
      %v1059 = vunpack.c.h.b16 %v198
      %v1060 = vunpack.c.l.b16 %v199
      %v1061 = vunpack.c.h.b16 %v199
      %v1062 = vunpack.c.l.b16 %v200
      %v1063 = vunpack.c.h.b16 %v200
      %v1064 = vunpack.c.l.b16 %v201
      %v1065 = vunpack.c.h.b16 %v201
      %v1066 = vunpack.c.l.b16 %v202
      %v1067 = vunpack.c.h.b16 %v202
      %v1068 = vunpack.c.l.b16 %v203
      %v1069 = vunpack.c.h.b16 %v203
      %v1070 = vunpack.c.l.b16 %v204
      %v1071 = vunpack.c.h.b16 %v204
      %v1072 = vunpack.c.l.b16 %v205
      %v1073 = vunpack.c.h.b16 %v205
      %v1074 = vunpack.c.l.b16 %v206
      %v1075 = vunpack.c.h.b16 %v206
      %v1076 = vunpack.c.l.b16 %v207
      %v1077 = vunpack.c.h.b16 %v207
      %v1078 = vunpack.c.l.b16 %v208
      %v1079 = vunpack.c.h.b16 %v208
      %v1080 = vunpack.c.l.b16 %v209
      %v1081 = vunpack.c.h.b16 %v209
      %v1082 = vunpack.c.l.b16 %v210
      %v1083 = vunpack.c.h.b16 %v210
      %v1084 = vunpack.c.l.b16 %v211
      %v1085 = vunpack.c.h.b16 %v211
      %v1086 = vunpack.c.l.b16 %v212
      %v1087 = vunpack.c.h.b16 %v212
      %v1088 = vunpack.c.l.b16 %v213
      %v1089 = vunpack.c.h.b16 %v213
      %v1090 = vunpack.c.l.b16 %v214
      %v1091 = vunpack.c.h.b16 %v214
      %v1092 = vunpack.c.l.b16 %v215
      %v1093 = vunpack.c.h.b16 %v215
      %v1094 = vunpack.c.l.b16 %v216
      %v1095 = vunpack.c.h.b16 %v216
      %v1096 = vunpack.c.l.b16 %v217
      %v1097 = vunpack.c.h.b16 %v217
      %v1098 = vunpack.c.l.b16 %v218
      %v1099 = vunpack.c.h.b16 %v218
      %v1100 = vunpack.c.l.b16 %v219
      %v1101 = vunpack.c.h.b16 %v219
      %v1102 = vunpack.c.l.b16 %v220
      %v1103 = vunpack.c.h.b16 %v220
      %v1104 = vunpack.c.l.b16 %v221
      %v1105 = vunpack.c.h.b16 %v221
      %v1106 = vunpack.c.l.b16 %v222
      %v1107 = vunpack.c.h.b16 %v222
      %v1108 = vunpack.c.l.b16 %v223
      %v1109 = vunpack.c.h.b16 %v223
      %v1110 = vunpack.c.l.b16 %v224
      %v1111 = vunpack.c.h.b16 %v224
      %v1112 = vunpack.c.l.b16 %v225
      %v1113 = vunpack.c.h.b16 %v225
      %v1114 = vunpack.c.l.b16 %v226
      %v1115 = vunpack.c.h.b16 %v226
      %v1116 = vunpack.c.l.b16 %v227
      %v1117 = vunpack.c.h.b16 %v227
      %v1118 = vunpack.c.l.b16 %v228
      %v1119 = vunpack.c.h.b16 %v228
      %v1120 = vunpack.c.l.b16 %v229
      %v1121 = vunpack.c.h.b16 %v229
      %v1122 = vunpack.c.l.b16 %v230
      %v1123 = vunpack.c.h.b16 %v230
      %v1124 = vunpack.c.l.b16 %v231
      %v1125 = vunpack.c.h.b16 %v231
      %v1126 = vunpack.c.l.b16 %v232
      %v1127 = vunpack.c.h.b16 %v232
      %v1128 = vunpack.c.l.b16 %v233
      %v1129 = vunpack.c.h.b16 %v233
      %v1130 = vunpack.c.l.b16 %v234
      %v1131 = vunpack.c.h.b16 %v234
      %v1132 = vunpack.c.l.b16 %v235
      %v1133 = vunpack.c.h.b16 %v235
      %v1134 = vunpack.c.l.b16 %v236
      %v1135 = vunpack.c.h.b16 %v236
      %v1136 = vunpack.c.l.b16 %v237
      %v1137 = vunpack.c.h.b16 %v237
      %v1138 = vunpack.c.l.b16 %v238
      %v1139 = vunpack.c.h.b16 %v238
      %v1140 = vunpack.c.l.b16 %v239
      %v1141 = vunpack.c.h.b16 %v239
      %v1142 = vunpack.c.l.b16 %v240
      %v1143 = vunpack.c.h.b16 %v240
      %v1144 = vunpack.c.l.b16 %v241
      %v1145 = vunpack.c.h.b16 %v241
      %v1146 = vunpack.c.l.b16 %v242
      %v1147 = vunpack.c.h.b16 %v242
      %v1148 = vunpack.c.l.b16 %v243
      %v1149 = vunpack.c.h.b16 %v243
      %v1150 = vunpack.c.l.b16 %v244
      %v1151 = vunpack.c.h.b16 %v244
      %v1152 = vunpack.c.l.b16 %v245
      %v1153 = vunpack.c.h.b16 %v245
      %v1154 = vunpack.c.l.b16 %v246
      %v1155 = vunpack.c.h.b16 %v246
      %v1156 = vunpack.c.l.b16 %v247
      %v1157 = vunpack.c.h.b16 %v247
      %v1158 = vunpack.c.l.b16 %v248
      %v1159 = vunpack.c.h.b16 %v248
      %v1160 = vunpack.c.l.b16 %v249
      %v1161 = vunpack.c.h.b16 %v249
      %v1162 = vunpack.c.l.b16 %v250
      %v1163 = vunpack.c.h.b16 %v250
      %v1164 = vunpack.c.l.b16 %v251
      %v1165 = vunpack.c.h.b16 %v251
      %v1166 = vunpack.c.l.b16 %v252
      %v1167 = vunpack.c.h.b16 %v252
      %v1168 = vunpack.c.l.b16 %v253
      %v1169 = vunpack.c.h.b16 %v253
      %v1170 = vunpack.c.l.b16 %v254
      %v1171 = vunpack.c.h.b16 %v254
      %v1172 = vunpack.c.l.b16 %v255
      %v1173 = vunpack.c.h.b16 %v255
      %v1174 = vpack.c.b16 %v1016, %v1014
      %v1175 = vpack.c.b16 %v1017, %v1015
      %v1176 = vpack.c.b16 %v1020, %v1018
      %v1177 = vpack.c.b16 %v1021, %v1019
      %v1178 = vpack.c.b16 %v1024, %v1022
      %v1179 = vpack.c.b16 %v1025, %v1023
      %v1180 = vpack.c.b16 %v1028, %v1026
      %v1181 = vpack.c.b16 %v1029, %v1027
      %v1182 = vpack.c.b16 %v1032, %v1030
      %v1183 = vpack.c.b16 %v1033, %v1031
      %v1184 = vpack.c.b16 %v1036, %v1034
      %v1185 = vpack.c.b16 %v1037, %v1035
      %v1186 = vpack.c.b16 %v1040, %v1038
      %v1187 = vpack.c.b16 %v1041, %v1039
      %v1188 = vpack.c.b16 %v1044, %v1042
      %v1189 = vpack.c.b16 %v1045, %v1043
      %v1190 = vpack.c.b16 %v1048, %v1046
      %v1191 = vpack.c.b16 %v1049, %v1047
      %v1192 = vpack.c.b16 %v1052, %v1050
      %v1193 = vpack.c.b16 %v1053, %v1051
      %v1194 = vpack.c.b16 %v1056, %v1054
      %v1195 = vpack.c.b16 %v1057, %v1055
      %v1196 = vpack.c.b16 %v1060, %v1058
      %v1197 = vpack.c.b16 %v1061, %v1059
      %v1198 = vpack.c.b16 %v1064, %v1062
      %v1199 = vpack.c.b16 %v1065, %v1063
      %v1200 = vpack.c.b16 %v1068, %v1066
      %v1201 = vpack.c.b16 %v1069, %v1067
      %v1202 = vpack.c.b16 %v1072, %v1070
      %v1203 = vpack.c.b16 %v1073, %v1071
      %v1204 = vpack.c.b16 %v1076, %v1074
      %v1205 = vpack.c.b16 %v1077, %v1075
      %v1206 = vpack.c.b16 %v1080, %v1078
      %v1207 = vpack.c.b16 %v1081, %v1079
      %v1208 = vpack.c.b16 %v1084, %v1082
      %v1209 = vpack.c.b16 %v1085, %v1083
      %v1210 = vpack.c.b16 %v1088, %v1086
      %v1211 = vpack.c.b16 %v1089, %v1087
      %v1212 = vpack.c.b16 %v1092, %v1090
      %v1213 = vpack.c.b16 %v1093, %v1091
      %v1214 = vpack.c.b16 %v1096, %v1094
      %v1215 = vpack.c.b16 %v1097, %v1095
      %v1216 = vpack.c.b16 %v1100, %v1098
      %v1217 = vpack.c.b16 %v1101, %v1099
      %v1218 = vpack.c.b16 %v1104, %v1102
      %v1219 = vpack.c.b16 %v1105, %v1103
      %v1220 = vpack.c.b16 %v1108, %v1106
      %v1221 = vpack.c.b16 %v1109, %v1107
      %v1222 = vpack.c.b16 %v1112, %v1110
      %v1223 = vpack.c.b16 %v1113, %v1111
      %v1224 = vpack.c.b16 %v1116, %v1114
      %v1225 = vpack.c.b16 %v1117, %v1115
      %v1226 = vpack.c.b16 %v1120, %v1118
      %v1227 = vpack.c.b16 %v1121, %v1119
      %v1228 = vpack.c.b16 %v1124, %v1122
      %v1229 = vpack.c.b16 %v1125, %v1123
      %v1230 = vpack.c.b16 %v1128, %v1126
      %v1231 = vpack.c.b16 %v1129, %v1127
      %v1232 = vpack.c.b16 %v1132, %v1130
      %v1233 = vpack.c.b16 %v1133, %v1131
      %v1234 = vpack.c.b16 %v1136, %v1134
      %v1235 = vpack.c.b16 %v1137, %v1135
      %v1236 = vpack.c.b16 %v1140, %v1138
      %v1237 = vpack.c.b16 %v1141, %v1139
      %v1238 = vpack.c.b16 %v1144, %v1142
      %v1239 = vpack.c.b16 %v1145, %v1143
      %v1240 = vpack.c.b16 %v1148, %v1146
      %v1241 = vpack.c.b16 %v1149, %v1147
      %v1242 = vpack.c.b16 %v1152, %v1150
      %v1243 = vpack.c.b16 %v1153, %v1151
      %v1244 = vpack.c.b16 %v1156, %v1154
      %v1245 = vpack.c.b16 %v1157, %v1155
      %v1246 = vpack.c.b16 %v1160, %v1158
      %v1247 = vpack.c.b16 %v1161, %v1159
      %v1248 = vpack.c.b16 %v1164, %v1162
      %v1249 = vpack.c.b16 %v1165, %v1163
      %v1250 = vpack.c.b16 %v1168, %v1166
      %v1251 = vpack.c.b16 %v1169, %v1167
      %v1252 = vpack.c.b16 %v1172, %v1170
      %v1253 = vpack.c.b16 %v1173, %v1171
      %1334 = vmatprep.subr.bf16.mxu0 %v1175
      %1335 = vmatpush1.bf16.msra.mxu0 %v1174
      %1336 = vmatprep.subr.bf16.mxu0 %v1177
      %1337 = vmatpush1.bf16.msra.mxu0 %v1176
      %1338 = vmatprep.subr.bf16.mxu0 %v1179
      %1339 = vmatpush1.bf16.msra.mxu0 %v1178
      %1340 = vmatprep.subr.bf16.mxu0 %v1181
      %1341 = vmatpush1.bf16.msra.mxu0 %v1180
      %1342 = vmatprep.subr.bf16.mxu0 %v1183
      %1343 = vmatpush1.bf16.msra.mxu0 %v1182
      %1344 = vmatprep.subr.bf16.mxu0 %v1185
      %1345 = vmatpush1.bf16.msra.mxu0 %v1184
      %1346 = vmatprep.subr.bf16.mxu0 %v1187
      %1347 = vmatpush1.bf16.msra.mxu0 %v1186
      %1348 = vmatprep.subr.bf16.mxu0 %v1189
      %1349 = vmatpush1.bf16.msra.mxu0 %v1188
      %1350 = vmatprep.subr.bf16.mxu0 %v1191
      %1351 = vmatpush1.bf16.msra.mxu0 %v1190
      %1352 = vmatprep.subr.bf16.mxu0 %v1193
      %1353 = vmatpush1.bf16.msra.mxu0 %v1192
      %1354 = vmatprep.subr.bf16.mxu0 %v1195
      %1355 = vmatpush1.bf16.msra.mxu0 %v1194
      %1356 = vmatprep.subr.bf16.mxu0 %v1197
      %1357 = vmatpush1.bf16.msra.mxu0 %v1196
      %1358 = vmatprep.subr.bf16.mxu0 %v1199
      %1359 = vmatpush1.bf16.msra.mxu0 %v1198
      %1360 = vmatprep.subr.bf16.mxu0 %v1201
      %1361 = vmatpush1.bf16.msra.mxu0 %v1200
      %1362 = vmatprep.subr.bf16.mxu0 %v1203
      %1363 = vmatpush1.bf16.msra.mxu0 %v1202
      %1364 = vmatprep.subr.bf16.mxu0 %v1205
      %1365 = vmatpush1.bf16.msra.mxu0 %v1204
      %1366 = vmatprep.mubr.bf16.mxu0 %v925
      %1367 = vmatmul.mubr.bf16.gmra.mrb[0].mxu0 %v924
      %v1368 = vpop.f32.mrb[0].mxu0
      %v1369 = vadd.f32 %v910, %v1368
      %v1370 = vpop.f32.mrb[0].mxu0
      %v1371 = vadd.f32 %v912, %v1370
      %v1372 = vpop.f32.mrb[0].mxu0
      %v1373 = vpop.f32.mrb[0].mxu0
      %1374 = vdwg.mxu0
      %1375 = vmatprep.subr.bf16.mxu0 %v1207
      %1376 = vmatpush1.bf16.msra.mxu0 %v1206
      %1377 = vmatprep.subr.bf16.mxu0 %v1209
      %1378 = vmatpush1.bf16.msra.mxu0 %v1208
      %1379 = vmatprep.subr.bf16.mxu0 %v1211
      %1380 = vmatpush1.bf16.msra.mxu0 %v1210
      %1381 = vmatprep.subr.bf16.mxu0 %v1213
      %1382 = vmatpush1.bf16.msra.mxu0 %v1212
      %1383 = vmatprep.subr.bf16.mxu0 %v1215
      %1384 = vmatpush1.bf16.msra.mxu0 %v1214
      %1385 = vmatprep.subr.bf16.mxu0 %v1217
      %1386 = vmatpush1.bf16.msra.mxu0 %v1216
      %1387 = vmatprep.subr.bf16.mxu0 %v1219
      %1388 = vmatpush1.bf16.msra.mxu0 %v1218
      %1389 = vmatprep.subr.bf16.mxu0 %v1221
      %1390 = vmatpush1.bf16.msra.mxu0 %v1220
      %1391 = vmatprep.subr.bf16.mxu0 %v1223
      %1392 = vmatpush1.bf16.msra.mxu0 %v1222
      %1393 = vmatprep.subr.bf16.mxu0 %v1225
      %1394 = vmatpush1.bf16.msra.mxu0 %v1224
      %1395 = vmatprep.subr.bf16.mxu0 %v1227
      %1396 = vmatpush1.bf16.msra.mxu0 %v1226
      %1397 = vmatprep.subr.bf16.mxu0 %v1229
      %1398 = vmatpush1.bf16.msra.mxu0 %v1228
      %1399 = vmatprep.subr.bf16.mxu0 %v1231
      %1400 = vmatpush1.bf16.msra.mxu0 %v1230
      %1401 = vmatprep.subr.bf16.mxu0 %v1233
      %1402 = vmatpush1.bf16.msra.mxu0 %v1232
      %1403 = vmatprep.subr.bf16.mxu0 %v1235
      %1404 = vmatpush1.bf16.msra.mxu0 %v1234
      %1405 = vmatprep.subr.bf16.mxu0 %v1237
      %1406 = vmatpush1.bf16.msra.mxu0 %v1236
      %1407 = vmatprep.mubr.bf16.mxu0 %v927
      %1408 = vmatmul.mubr.bf16.gmra.mrb[0].mxu0 %v926
      %v1409 = vpop.f32.mrb[0].mxu0
      %v1410 = vadd.f32 %v1369, %v1409
      %v1411 = vpop.f32.mrb[0].mxu0
      %v1412 = vadd.f32 %v1371, %v1411
      %v1413 = vpop.f32.mrb[0].mxu0
      %v1414 = vpop.f32.mrb[0].mxu0
      %1415 = vdwg.mxu0
      %1416 = vmatprep.subr.bf16.mxu0 %v1239
      %1417 = vmatpush1.bf16.msra.mxu0 %v1238
      %1418 = vmatprep.subr.bf16.mxu0 %v1241
      %1419 = vmatpush1.bf16.msra.mxu0 %v1240
      %1420 = vmatprep.subr.bf16.mxu0 %v1243
      %1421 = vmatpush1.bf16.msra.mxu0 %v1242
      %1422 = vmatprep.subr.bf16.mxu0 %v1245
      %1423 = vmatpush1.bf16.msra.mxu0 %v1244
      %1424 = vmatprep.subr.bf16.mxu0 %v1247
      %1425 = vmatpush1.bf16.msra.mxu0 %v1246
      %1426 = vmatprep.subr.bf16.mxu0 %v1249
      %1427 = vmatpush1.bf16.msra.mxu0 %v1248
      %1428 = vmatprep.subr.bf16.mxu0 %v1251
      %1429 = vmatpush1.bf16.msra.mxu0 %v1250
      %1430 = vmatprep.subr.bf16.mxu0 %v1253
      %1431 = vmatpush1.bf16.msra.mxu0 %v1252
      %1432 = vmatprep.subr.bf16.mxu0 0
      %1433 = vmatpush1.bf16.msra.mxu0 0
      %1434 = vmatprep.subr.bf16.mxu0 0
      %1435 = vmatpush1.bf16.msra.mxu0 0
      %1436 = vmatprep.subr.bf16.mxu0 0
      %1437 = vmatpush1.bf16.msra.mxu0 0
      %1438 = vmatprep.subr.bf16.mxu0 0
      %1439 = vmatpush1.bf16.msra.mxu0 0
      %1440 = vmatprep.subr.bf16.mxu0 0
      %1441 = vmatpush1.bf16.msra.mxu0 0
      %1442 = vmatprep.subr.bf16.mxu0 0
      %1443 = vmatpush1.bf16.msra.mxu0 0
      %1444 = vmatprep.subr.bf16.mxu0 0
      %1445 = vmatpush1.bf16.msra.mxu0 0
      %1446 = vmatprep.subr.bf16.mxu0 0
      %1447 = vmatpush1.bf16.msra.mxu0 0
      %1448 = vmatprep.mubr.bf16.mxu0 0
      %1449 = vmatmul.mubr.bf16.gmra.mrb[0].mxu0 %v928
      %v1450 = vpop.f32.mrb[0].mxu0
      %v1451 = vadd.f32 %v1410, %v1450
      %v1452 = vpop.f32.mrb[0].mxu0
      %v1453 = vadd.f32 %v1412, %v1452
      %v1454 = vpop.f32.mrb[0].mxu0
      %v1455 = vpop.f32.mrb[0].mxu0
      %1456 = vdwg.mxu0
      %v1458 = vlaneseq
      %v1459 = vshrl.u32 %v1458, 7
      %v1460 = vsub.s32 0, %v1459
      %v1461 = vrot.slane %v172, %v1460
      %v1462 = vlaneseq
      %v1463 = vshrl.u32 %v1462, 7
      %v1464 = vsub.s32 1, %v1463
      %v1465 = vrot.slane %v172, %v1464
      %v1468 = vadd.f32 %v1451, %v1461
      %v1469 = vadd.f32 %v1453, %v1465
      %v1470 = vmax.f32 %v1468, 0.0
      %v1471 = vmax.f32 %v1469, 0.0
      %v1472 = vpack.c.bf16 %v1470, %v1470
      %v1473 = vpack.c.bf16 %v1471, %v1471
      %v1476 = vcombine.low %v1472, %v1473
      %v1478 = vunpack.c.l.s4 1983009808
      %v1479 = vunpack.c.0.s8 %v1478
      %v1480 = vlaneseq
      %v1481 = vshrl.u32 %v1480, 7
      %v1482 = vsub.s32 %v1479, %v1481
      %v1483 = vrot.slane %v1476, %v1482
      %1485 = vst [vmem:[%s170] sm:$0xf] %v1483
      %p1486 = scmp.lt.s32.totalorder %s14, 1
      %s1487 = scalar_select %p1486, %s14, 1
      %s1488 = smul.addr %s1487, 2
      %s1489 = smul.addr %s1488, 2
      %s1490 = scalar_lea.vmem %s3, %s1489
      // Predicated region
      $region33: #{_lambda_.5} parent=31 // pred_check
        %p1491 = pneg %p100
      $region34: #{_lambda_.5} parent=31 // pred_check_branch
        %1493 = sbr.rel (%p1491) target = $region36
      $region35: #{_lambda_.5} parent=31 // pred_region
        _
      $region36: #{_lambda_.5} parent=31 // pred_fallthru
        _
    $region32: #{_lambda_.5} parent=5 // pred_fallthru
      _
    %p1494 = scmp.le.s32.totalorder 2, %s9
    // Predicated region
    $region37: #{_lambda_.5} parent=5 // pred_check
      %p1495 = pneg %p1494
    $region38: #{_lambda_.5} parent=5 // pred_check_branch
      %1497 = sbr.rel (%p1495) target = $region40
    $region39: #{_lambda_.5} parent=5 // pred_region
      %s1498 = ssub.s32 %s9, 2
      // Predicated region
      $region41: #{_lambda_.5} parent=39 // pred_check
        %p1499 = pneg %p106
      $region42: #{_lambda_.5} parent=39 // pred_check_branch
        %1501 = sbr.rel (%p1499) target = $region44
      $region43: #{_lambda_.5} parent=39 // pred_region
        %p1502 = scmp.lt.s32.totalorder %s15, 1
        %s1503 = scalar_select %p1502, %s15, 1
        %s1504 = smul.addr %s1503, 2
        %s1505 = smul.addr %s1504, 2
        %s1506 = scalar_lea.vmem %s3, %s1505
      $region44: #{_lambda_.5} parent=39 // pred_fallthru
        _
    $region40: #{_lambda_.5} parent=5 // pred_fallthru
      _
  $region6: #{_lambda_.5} parent=0 // loop_footer
    %s13 = sadd.s32 1, %s9
  $region7: #{_lambda_.5} parent=0 // loop_footer_branch
    %8 = sbr.rel target = $region3
  $region8: #{_lambda_.5} parent=0 // loop_exit
    _

// kernel: _lambda_.7
$region0: #{_lambda_.7}
  #allocation0 [shape = 'u32[]', space=smem, size = 0x4, offset = 0x4, fixed_abs, tag = 'smem constant byte address 0x4 - core index']
  #allocation1 [shape = 'u32[144,128]{1,0:T(1,128)}', space=vmem, size = 0x12000, scoped, tag = 'internal scratch']
  %s0 = inlined_call_operand.vmem [shape: bf16[2,256], index: 0, kind: input, shape index: {}]
  %s1 = inlined_call_operand.vmem [shape: bf16[256,512], index: 1, kind: input, shape index: {}]
  %s2 = inlined_call_operand.vmem [shape: f32[1,512], index: 2, kind: input, shape index: {}]
  %s3 = inlined_call_operand.vmem [shape: bf16[256,128], index: 3, kind: input, shape index: {}]
  %s4 = inlined_call_operand.vmem [shape: f32[1,128], index: 4, kind: input, shape index: {}]
  %s5 = inlined_call_operand.vmem [shape: bf16[256,384], index: 5, kind: input, shape index: {}]
  %s6 = inlined_call_operand.vmem [shape: f32[1,384], index: 6, kind: input, shape index: {}]
  %s7 = inlined_call_operand.vmem [shape: f32[384,128], index: 7, kind: input, shape index: {}]
  %s8 = inlined_call_operand.vmem [shape: f32[128,384], index: 8, kind: input, shape index: {}]
  %s9 = inlined_call_operand.vmem [shape: f32[2,384], index: 9, kind: output, shape index: {}]
  %s10 = sld [smem:[#allocation0]]
  $region46: #{_lambda_.7} parent=0
    _
  %s12 = ssub.s32 1, %s10
  %s13 = scalar_select 0, %s12, %s10
  // Predicated region
  $region2: #{_lambda_.7} parent=0 // pred_check
    _
  $region3: #{_lambda_.7} parent=0 // pred_check_branch
    %15 = sbr.rel (0) target = $region5
  $region4: #{_lambda_.7} parent=0 // pred_region
    _
  $region5: #{_lambda_.7} parent=0 // pred_fallthru
    _
  // Predicated region
  $region6: #{_lambda_.7} parent=0 // pred_check
    _
  $region7: #{_lambda_.7} parent=0 // pred_check_branch
    %17 = sbr.rel (0) target = $region9
  $region8: #{_lambda_.7} parent=0 // pred_region
    _
  $region9: #{_lambda_.7} parent=0 // pred_fallthru
    _
  // Predicated region
  $region10: #{_lambda_.7} parent=0 // pred_check
    _
  $region11: #{_lambda_.7} parent=0 // pred_check_branch
    %19 = sbr.rel (0) target = $region13
  $region12: #{_lambda_.7} parent=0 // pred_region
    _
  $region13: #{_lambda_.7} parent=0 // pred_fallthru
    _
  // Predicated region
  $region14: #{_lambda_.7} parent=0 // pred_check
    _
  $region15: #{_lambda_.7} parent=0 // pred_check_branch
    %21 = sbr.rel (0) target = $region17
  $region16: #{_lambda_.7} parent=0 // pred_region
    _
  $region17: #{_lambda_.7} parent=0 // pred_fallthru
    _
  // Predicated region
  $region18: #{_lambda_.7} parent=0 // pred_check
    _
  $region19: #{_lambda_.7} parent=0 // pred_check_branch
    %23 = sbr.rel (0) target = $region21
  $region20: #{_lambda_.7} parent=0 // pred_region
    _
  $region21: #{_lambda_.7} parent=0 // pred_fallthru
    _
  // Predicated region
  $region22: #{_lambda_.7} parent=0 // pred_check
    _
  $region23: #{_lambda_.7} parent=0 // pred_check_branch
    %25 = sbr.rel (0) target = $region25
  $region24: #{_lambda_.7} parent=0 // pred_region
    _
  $region25: #{_lambda_.7} parent=0 // pred_fallthru
    _
  // Predicated region
  $region26: #{_lambda_.7} parent=0 // pred_check
    _
  $region27: #{_lambda_.7} parent=0 // pred_check_branch
    %27 = sbr.rel (0) target = $region29
  $region28: #{_lambda_.7} parent=0 // pred_region
    _
  $region29: #{_lambda_.7} parent=0 // pred_fallthru
    _
  // Predicated region
  $region30: #{_lambda_.7} parent=0 // pred_check
    _
  $region31: #{_lambda_.7} parent=0 // pred_check_branch
    %29 = sbr.rel (0) target = $region33
  $region32: #{_lambda_.7} parent=0 // pred_region
    _
  $region33: #{_lambda_.7} parent=0 // pred_fallthru
    _
  // Predicated region
  $region34: #{_lambda_.7} parent=0 // pred_check
    _
  $region35: #{_lambda_.7} parent=0 // pred_check_branch
    %31 = sbr.rel (0) target = $region37
  $region36: #{_lambda_.7} parent=0 // pred_region
    _
  $region37: #{_lambda_.7} parent=0 // pred_fallthru
    _
  %v33 = vld [vmem:[%s0] sm:$0x3]
  %v34 = vld [vmem:[%s1] sm:$0xff]
  %v35 = vld [vmem:[%s1 + $0x8] sm:$0xff]
  %v36 = vld [vmem:[%s1 + $0x10] sm:$0xff]
  %v37 = vld [vmem:[%s1 + $0x18] sm:$0xff]
  %v38 = vld [vmem:[%s1 + $0x20] sm:$0xff]
  %v39 = vld [vmem:[%s1 + $0x28] sm:$0xff]
  %v40 = vld [vmem:[%s1 + $0x30] sm:$0xff]
  %v41 = vld [vmem:[%s1 + $0x38] sm:$0xff]
  %v42 = vld [vmem:[%s1 + $0x40] sm:$0xff]
  %v43 = vld [vmem:[%s1 + $0x48] sm:$0xff]
  %v44 = vld [vmem:[%s1 + $0x50] sm:$0xff]
  %v45 = vld [vmem:[%s1 + $0x58] sm:$0xff]
  %v46 = vld [vmem:[%s1 + $0x60] sm:$0xff]
  %v47 = vld [vmem:[%s1 + $0x68] sm:$0xff]
  %v48 = vld [vmem:[%s1 + $0x70] sm:$0xff]
  %v49 = vld [vmem:[%s1 + $0x78] sm:$0xff]
  %v50 = vld [vmem:[%s1 + $0x80] sm:$0xff]
  %v51 = vld [vmem:[%s1 + $0x88] sm:$0xff]
  %v52 = vld [vmem:[%s1 + $0x90] sm:$0xff]
  %v53 = vld [vmem:[%s1 + $0x98] sm:$0xff]
  %v54 = vld [vmem:[%s1 + $0xa0] sm:$0xff]
  %v55 = vld [vmem:[%s1 + $0xa8] sm:$0xff]
  %v56 = vld [vmem:[%s1 + $0xb0] sm:$0xff]
  %v57 = vld [vmem:[%s1 + $0xb8] sm:$0xff]
  %v58 = vld [vmem:[%s1 + $0xc0] sm:$0xff]
  %v59 = vld [vmem:[%s1 + $0xc8] sm:$0xff]
  %v60 = vld [vmem:[%s1 + $0xd0] sm:$0xff]
  %v61 = vld [vmem:[%s1 + $0xd8] sm:$0xff]
  %v62 = vld [vmem:[%s1 + $0xe0] sm:$0xff]
  %v63 = vld [vmem:[%s1 + $0xe8] sm:$0xff]
  %v64 = vld [vmem:[%s1 + $0xf0] sm:$0xff]
  %v65 = vld [vmem:[%s1 + $0xf8] sm:$0xff]
  %v66 = vld [vmem:[%s1 + $0x100] sm:$0xff]
  %v67 = vld [vmem:[%s1 + $0x108] sm:$0xff]
  %v68 = vld [vmem:[%s1 + $0x110] sm:$0xff]
  %v69 = vld [vmem:[%s1 + $0x118] sm:$0xff]
  %v70 = vld [vmem:[%s1 + $0x120] sm:$0xff]
  %v71 = vld [vmem:[%s1 + $0x128] sm:$0xff]
  %v72 = vld [vmem:[%s1 + $0x130] sm:$0xff]
  %v73 = vld [vmem:[%s1 + $0x138] sm:$0xff]
  %v74 = vld [vmem:[%s1 + $0x140] sm:$0xff]
  %v75 = vld [vmem:[%s1 + $0x148] sm:$0xff]
  %v76 = vld [vmem:[%s1 + $0x150] sm:$0xff]
  %v77 = vld [vmem:[%s1 + $0x158] sm:$0xff]
  %v78 = vld [vmem:[%s1 + $0x160] sm:$0xff]
  %v79 = vld [vmem:[%s1 + $0x168] sm:$0xff]
  %v80 = vld [vmem:[%s1 + $0x170] sm:$0xff]
  %v81 = vld [vmem:[%s1 + $0x178] sm:$0xff]
  %v82 = vld [vmem:[%s1 + $0x180] sm:$0xff]
  %v83 = vld [vmem:[%s1 + $0x188] sm:$0xff]
  %v84 = vld [vmem:[%s1 + $0x190] sm:$0xff]
  %v85 = vld [vmem:[%s1 + $0x198] sm:$0xff]
  %v86 = vld [vmem:[%s1 + $0x1a0] sm:$0xff]
  %v87 = vld [vmem:[%s1 + $0x1a8] sm:$0xff]
  %v88 = vld [vmem:[%s1 + $0x1b0] sm:$0xff]
  %v89 = vld [vmem:[%s1 + $0x1b8] sm:$0xff]
  %v90 = vld [vmem:[%s1 + $0x1c0] sm:$0xff]
  %v91 = vld [vmem:[%s1 + $0x1c8] sm:$0xff]
  %v92 = vld [vmem:[%s1 + $0x1d0] sm:$0xff]
  %v93 = vld [vmem:[%s1 + $0x1d8] sm:$0xff]
  %v94 = vld [vmem:[%s1 + $0x1e0] sm:$0xff]
  %v95 = vld [vmem:[%s1 + $0x1e8] sm:$0xff]
  %v96 = vld [vmem:[%s1 + $0x1f0] sm:$0xff]
  %v97 = vld [vmem:[%s1 + $0x1f8] sm:$0xff]
  %v98 = vld [vmem:[%s2] sm:$0xf]
  %v100 = vlaneseq
  %v101 = vshrl.u32 %v100, 7
  %v102 = vsub.s32 0, %v101
  %v103 = vrot.slane %v98, %v102
  %v104 = vlaneseq
  %v105 = vshrl.u32 %v104, 7
  %v106 = vsub.s32 1, %v105
  %v107 = vrot.slane %v98, %v106
  %v108 = vlaneseq
  %v109 = vshrl.u32 %v108, 7
  %v110 = vsub.s32 2, %v109
  %v111 = vrot.slane %v98, %v110
  %v112 = vlaneseq
  %v113 = vshrl.u32 %v112, 7
  %v114 = vsub.s32 3, %v113
  %v115 = vrot.slane %v98, %v114
  %v122 = vunpack.c.l.s4 1966171168
  %v123 = vunpack.c.0.s8 %v122
  %v124 = vlaneseq
  %v125 = vshrl.u32 %v124, 7
  %v126 = vsub.s32 %v123, %v125
  %v127 = vrot.slane %v33, %v126
  %v128 = vcombine.high %v127, %v127
  %v130 = vunpack.c.l.s4 1966171168
  %v131 = vunpack.c.0.s8 %v130
  %v132 = vlaneseq
  %v133 = vshrl.u32 %v132, 7
  %v134 = vsub.s32 %v131, %v133
  %v135 = vrot.slane %v127, %v134
  %v137 = vunpack.c.l.s4 1966171168
  %v138 = vunpack.c.0.s8 %v137
  %v139 = vlaneseq
  %v140 = vshrl.u32 %v139, 7
  %v141 = vsub.s32 %v138, %v140
  %v142 = vrot.slane %v128, %v141
  %v209 = vunpack.c.l.b16 %v34
  %v210 = vunpack.c.h.b16 %v34
  %v211 = vunpack.c.l.b16 %v35
  %v212 = vunpack.c.h.b16 %v35
  %v213 = vunpack.c.l.b16 %v36
  %v214 = vunpack.c.h.b16 %v36
  %v215 = vunpack.c.l.b16 %v37
  %v216 = vunpack.c.h.b16 %v37
  %v217 = vunpack.c.l.b16 %v38
  %v218 = vunpack.c.h.b16 %v38
  %v219 = vunpack.c.l.b16 %v39
  %v220 = vunpack.c.h.b16 %v39
  %v221 = vunpack.c.l.b16 %v40
  %v222 = vunpack.c.h.b16 %v40
  %v223 = vunpack.c.l.b16 %v41
  %v224 = vunpack.c.h.b16 %v41
  %v225 = vunpack.c.l.b16 %v42
  %v226 = vunpack.c.h.b16 %v42
  %v227 = vunpack.c.l.b16 %v43
  %v228 = vunpack.c.h.b16 %v43
  %v229 = vunpack.c.l.b16 %v44
  %v230 = vunpack.c.h.b16 %v44
  %v231 = vunpack.c.l.b16 %v45
  %v232 = vunpack.c.h.b16 %v45
  %v233 = vunpack.c.l.b16 %v46
  %v234 = vunpack.c.h.b16 %v46
  %v235 = vunpack.c.l.b16 %v47
  %v236 = vunpack.c.h.b16 %v47
  %v237 = vunpack.c.l.b16 %v48
  %v238 = vunpack.c.h.b16 %v48
  %v239 = vunpack.c.l.b16 %v49
  %v240 = vunpack.c.h.b16 %v49
  %v241 = vunpack.c.l.b16 %v50
  %v242 = vunpack.c.h.b16 %v50
  %v243 = vunpack.c.l.b16 %v51
  %v244 = vunpack.c.h.b16 %v51
  %v245 = vunpack.c.l.b16 %v52
  %v246 = vunpack.c.h.b16 %v52
  %v247 = vunpack.c.l.b16 %v53
  %v248 = vunpack.c.h.b16 %v53
  %v249 = vunpack.c.l.b16 %v54
  %v250 = vunpack.c.h.b16 %v54
  %v251 = vunpack.c.l.b16 %v55
  %v252 = vunpack.c.h.b16 %v55
  %v253 = vunpack.c.l.b16 %v56
  %v254 = vunpack.c.h.b16 %v56
  %v255 = vunpack.c.l.b16 %v57
  %v256 = vunpack.c.h.b16 %v57
  %v257 = vunpack.c.l.b16 %v58
  %v258 = vunpack.c.h.b16 %v58
  %v259 = vunpack.c.l.b16 %v59
  %v260 = vunpack.c.h.b16 %v59
  %v261 = vunpack.c.l.b16 %v60
  %v262 = vunpack.c.h.b16 %v60
  %v263 = vunpack.c.l.b16 %v61
  %v264 = vunpack.c.h.b16 %v61
  %v265 = vunpack.c.l.b16 %v62
  %v266 = vunpack.c.h.b16 %v62
  %v267 = vunpack.c.l.b16 %v63
  %v268 = vunpack.c.h.b16 %v63
  %v269 = vunpack.c.l.b16 %v64
  %v270 = vunpack.c.h.b16 %v64
  %v271 = vunpack.c.l.b16 %v65
  %v272 = vunpack.c.h.b16 %v65
  %v273 = vunpack.c.l.b16 %v66
  %v274 = vunpack.c.h.b16 %v66
  %v275 = vunpack.c.l.b16 %v67
  %v276 = vunpack.c.h.b16 %v67
  %v277 = vunpack.c.l.b16 %v68
  %v278 = vunpack.c.h.b16 %v68
  %v279 = vunpack.c.l.b16 %v69
  %v280 = vunpack.c.h.b16 %v69
  %v281 = vunpack.c.l.b16 %v70
  %v282 = vunpack.c.h.b16 %v70
  %v283 = vunpack.c.l.b16 %v71
  %v284 = vunpack.c.h.b16 %v71
  %v285 = vunpack.c.l.b16 %v72
  %v286 = vunpack.c.h.b16 %v72
  %v287 = vunpack.c.l.b16 %v73
  %v288 = vunpack.c.h.b16 %v73
  %v289 = vunpack.c.l.b16 %v74
  %v290 = vunpack.c.h.b16 %v74
  %v291 = vunpack.c.l.b16 %v75
  %v292 = vunpack.c.h.b16 %v75
  %v293 = vunpack.c.l.b16 %v76
  %v294 = vunpack.c.h.b16 %v76
  %v295 = vunpack.c.l.b16 %v77
  %v296 = vunpack.c.h.b16 %v77
  %v297 = vunpack.c.l.b16 %v78
  %v298 = vunpack.c.h.b16 %v78
  %v299 = vunpack.c.l.b16 %v79
  %v300 = vunpack.c.h.b16 %v79
  %v301 = vunpack.c.l.b16 %v80
  %v302 = vunpack.c.h.b16 %v80
  %v303 = vunpack.c.l.b16 %v81
  %v304 = vunpack.c.h.b16 %v81
  %v305 = vunpack.c.l.b16 %v82
  %v306 = vunpack.c.h.b16 %v82
  %v307 = vunpack.c.l.b16 %v83
  %v308 = vunpack.c.h.b16 %v83
  %v309 = vunpack.c.l.b16 %v84
  %v310 = vunpack.c.h.b16 %v84
  %v311 = vunpack.c.l.b16 %v85
  %v312 = vunpack.c.h.b16 %v85
  %v313 = vunpack.c.l.b16 %v86
  %v314 = vunpack.c.h.b16 %v86
  %v315 = vunpack.c.l.b16 %v87
  %v316 = vunpack.c.h.b16 %v87
  %v317 = vunpack.c.l.b16 %v88
  %v318 = vunpack.c.h.b16 %v88
  %v319 = vunpack.c.l.b16 %v89
  %v320 = vunpack.c.h.b16 %v89
  %v321 = vunpack.c.l.b16 %v90
  %v322 = vunpack.c.h.b16 %v90
  %v323 = vunpack.c.l.b16 %v91
  %v324 = vunpack.c.h.b16 %v91
  %v325 = vunpack.c.l.b16 %v92
  %v326 = vunpack.c.h.b16 %v92
  %v327 = vunpack.c.l.b16 %v93
  %v328 = vunpack.c.h.b16 %v93
  %v329 = vunpack.c.l.b16 %v94
  %v330 = vunpack.c.h.b16 %v94
  %v331 = vunpack.c.l.b16 %v95
  %v332 = vunpack.c.h.b16 %v95
  %v333 = vunpack.c.l.b16 %v96
  %v334 = vunpack.c.h.b16 %v96
  %v335 = vunpack.c.l.b16 %v97
  %v336 = vunpack.c.h.b16 %v97
  %v337 = vpack.c.b16 %v213, %v209
  %v338 = vpack.c.b16 %v214, %v210
  %v339 = vpack.c.b16 %v215, %v211
  %v340 = vpack.c.b16 %v216, %v212
  %v341 = vpack.c.b16 %v221, %v217
  %v342 = vpack.c.b16 %v222, %v218
  %v343 = vpack.c.b16 %v223, %v219
  %v344 = vpack.c.b16 %v224, %v220
  %v345 = vpack.c.b16 %v229, %v225
  %v346 = vpack.c.b16 %v230, %v226
  %v347 = vpack.c.b16 %v231, %v227
  %v348 = vpack.c.b16 %v232, %v228
  %v349 = vpack.c.b16 %v237, %v233
  %v350 = vpack.c.b16 %v238, %v234
  %v351 = vpack.c.b16 %v239, %v235
  %v352 = vpack.c.b16 %v240, %v236
  %v353 = vpack.c.b16 %v245, %v241
  %v354 = vpack.c.b16 %v246, %v242
  %v355 = vpack.c.b16 %v247, %v243
  %v356 = vpack.c.b16 %v248, %v244
  %v357 = vpack.c.b16 %v253, %v249
  %v358 = vpack.c.b16 %v254, %v250
  %v359 = vpack.c.b16 %v255, %v251
  %v360 = vpack.c.b16 %v256, %v252
  %v361 = vpack.c.b16 %v261, %v257
  %v362 = vpack.c.b16 %v262, %v258
  %v363 = vpack.c.b16 %v263, %v259
  %v364 = vpack.c.b16 %v264, %v260
  %v365 = vpack.c.b16 %v269, %v265
  %v366 = vpack.c.b16 %v270, %v266
  %v367 = vpack.c.b16 %v271, %v267
  %v368 = vpack.c.b16 %v272, %v268
  %v369 = vpack.c.b16 %v277, %v273
  %v370 = vpack.c.b16 %v278, %v274
  %v371 = vpack.c.b16 %v279, %v275
  %v372 = vpack.c.b16 %v280, %v276
  %v373 = vpack.c.b16 %v285, %v281
  %v374 = vpack.c.b16 %v286, %v282
  %v375 = vpack.c.b16 %v287, %v283
  %v376 = vpack.c.b16 %v288, %v284
  %v377 = vpack.c.b16 %v293, %v289
  %v378 = vpack.c.b16 %v294, %v290
  %v379 = vpack.c.b16 %v295, %v291
  %v380 = vpack.c.b16 %v296, %v292
  %v381 = vpack.c.b16 %v301, %v297
  %v382 = vpack.c.b16 %v302, %v298
  %v383 = vpack.c.b16 %v303, %v299
  %v384 = vpack.c.b16 %v304, %v300
  %v385 = vpack.c.b16 %v309, %v305
  %v386 = vpack.c.b16 %v310, %v306
  %v387 = vpack.c.b16 %v311, %v307
  %v388 = vpack.c.b16 %v312, %v308
  %v389 = vpack.c.b16 %v317, %v313
  %v390 = vpack.c.b16 %v318, %v314
  %v391 = vpack.c.b16 %v319, %v315
  %v392 = vpack.c.b16 %v320, %v316
  %v393 = vpack.c.b16 %v325, %v321
  %v394 = vpack.c.b16 %v326, %v322
  %v395 = vpack.c.b16 %v327, %v323
  %v396 = vpack.c.b16 %v328, %v324
  %v397 = vpack.c.b16 %v333, %v329
  %v398 = vpack.c.b16 %v334, %v330
  %v399 = vpack.c.b16 %v335, %v331
  %v400 = vpack.c.b16 %v336, %v332
  %465 = vmatprep.subr.bf16.mxu0 %v338
  %466 = vmatpush1.bf16.msra.mxu0 %v337
  %467 = vmatprep.subr.bf16.mxu0 %v342
  %468 = vmatpush1.bf16.msra.mxu0 %v341
  %469 = vmatprep.subr.bf16.mxu0 %v346
  %470 = vmatpush1.bf16.msra.mxu0 %v345
  %471 = vmatprep.subr.bf16.mxu0 %v350
  %472 = vmatpush1.bf16.msra.mxu0 %v349
  %473 = vmatprep.subr.bf16.mxu0 %v354
  %474 = vmatpush1.bf16.msra.mxu0 %v353
  %475 = vmatprep.subr.bf16.mxu0 %v358
  %476 = vmatpush1.bf16.msra.mxu0 %v357
  %477 = vmatprep.subr.bf16.mxu0 %v362
  %478 = vmatpush1.bf16.msra.mxu0 %v361
  %479 = vmatprep.subr.bf16.mxu0 %v366
  %480 = vmatpush1.bf16.msra.mxu0 %v365
  %481 = vmatprep.subr.bf16.mxu0 %v370
  %482 = vmatpush1.bf16.msra.mxu0 %v369
  %483 = vmatprep.subr.bf16.mxu0 %v374
  %484 = vmatpush1.bf16.msra.mxu0 %v373
  %485 = vmatprep.subr.bf16.mxu0 %v378
  %486 = vmatpush1.bf16.msra.mxu0 %v377
  %487 = vmatprep.subr.bf16.mxu0 %v382
  %488 = vmatpush1.bf16.msra.mxu0 %v381
  %489 = vmatprep.subr.bf16.mxu0 %v386
  %490 = vmatpush1.bf16.msra.mxu0 %v385
  %491 = vmatprep.subr.bf16.mxu0 %v390
  %492 = vmatpush1.bf16.msra.mxu0 %v389
  %493 = vmatprep.subr.bf16.mxu0 %v394
  %494 = vmatpush1.bf16.msra.mxu0 %v393
  %495 = vmatprep.subr.bf16.mxu0 %v398
  %496 = vmatpush1.bf16.msra.mxu0 %v397
  %497 = vmatprep.mubr.bf16.mxu0 %v142
  %498 = vmatmul.mubr.bf16.gmra.mrb[0].mxu0 %v135
  %v499 = vpop.f32.mrb[0].mxu0
  %v500 = vadd.f32 %v103, %v499
  %v501 = vpop.f32.mrb[0].mxu0
  %v502 = vadd.f32 %v107, %v501
  %v503 = vpop.f32.mrb[0].mxu0
  %v504 = vpop.f32.mrb[0].mxu0
  %505 = vdwg.mxu0
  %506 = vmatprep.subr.bf16.mxu0 %v340
  %507 = vmatpush1.bf16.msra.mxu0 %v339
  %508 = vmatprep.subr.bf16.mxu0 %v344
  %509 = vmatpush1.bf16.msra.mxu0 %v343
  %510 = vmatprep.subr.bf16.mxu0 %v348
  %511 = vmatpush1.bf16.msra.mxu0 %v347
  %512 = vmatprep.subr.bf16.mxu0 %v352
  %513 = vmatpush1.bf16.msra.mxu0 %v351
  %514 = vmatprep.subr.bf16.mxu0 %v356
  %515 = vmatpush1.bf16.msra.mxu0 %v355
  %516 = vmatprep.subr.bf16.mxu0 %v360
  %517 = vmatpush1.bf16.msra.mxu0 %v359
  %518 = vmatprep.subr.bf16.mxu0 %v364
  %519 = vmatpush1.bf16.msra.mxu0 %v363
  %520 = vmatprep.subr.bf16.mxu0 %v368
  %521 = vmatpush1.bf16.msra.mxu0 %v367
  %522 = vmatprep.subr.bf16.mxu0 %v372
  %523 = vmatpush1.bf16.msra.mxu0 %v371
  %524 = vmatprep.subr.bf16.mxu0 %v376
  %525 = vmatpush1.bf16.msra.mxu0 %v375
  %526 = vmatprep.subr.bf16.mxu0 %v380
  %527 = vmatpush1.bf16.msra.mxu0 %v379
  %528 = vmatprep.subr.bf16.mxu0 %v384
  %529 = vmatpush1.bf16.msra.mxu0 %v383
  %530 = vmatprep.subr.bf16.mxu0 %v388
  %531 = vmatpush1.bf16.msra.mxu0 %v387
  %532 = vmatprep.subr.bf16.mxu0 %v392
  %533 = vmatpush1.bf16.msra.mxu0 %v391
  %534 = vmatprep.subr.bf16.mxu0 %v396
  %535 = vmatpush1.bf16.msra.mxu0 %v395
  %536 = vmatprep.subr.bf16.mxu0 %v400
  %537 = vmatpush1.bf16.msra.mxu0 %v399
  %538 = vmatprep.mubr.bf16.mxu0 %v142
  %539 = vmatmul.mubr.bf16.gmra.mrb[0].mxu0 %v135
  %v540 = vpop.f32.mrb[0].mxu0
  %v541 = vadd.f32 %v111, %v540
  %v542 = vpop.f32.mrb[0].mxu0
  %v543 = vadd.f32 %v115, %v542
  %v544 = vpop.f32.mrb[0].mxu0
  %v545 = vpop.f32.mrb[0].mxu0
  %546 = vdwg.mxu0
  %v547 = vmax.f32 %v500, 0.0
  %v548 = vmax.f32 %v502, 0.0
  %v549 = vmax.f32 %v541, 0.0
  %v550 = vmax.f32 %v543, 0.0
  %v551 = vpack.c.bf16 %v547, %v547
  %v552 = vpack.c.bf16 %v548, %v548
  %v553 = vpack.c.bf16 %v549, %v549
  %v554 = vpack.c.bf16 %v550, %v550
  %v555 = vld [vmem:[%s3] sm:$0xf]
  %v556 = vld [vmem:[%s3 + $0x4] sm:$0xf]
  %v557 = vld [vmem:[%s3 + $0x8] sm:$0xf]
  %v558 = vld [vmem:[%s3 + $0xc] sm:$0xf]
  %v559 = vld [vmem:[%s3 + $0x10] sm:$0xf]
  %v560 = vld [vmem:[%s3 + $0x14] sm:$0xf]
  %v561 = vld [vmem:[%s3 + $0x18] sm:$0xf]
  %v562 = vld [vmem:[%s3 + $0x1c] sm:$0xf]
  %v563 = vld [vmem:[%s3 + $0x20] sm:$0xf]
  %v564 = vld [vmem:[%s3 + $0x24] sm:$0xf]
  %v565 = vld [vmem:[%s3 + $0x28] sm:$0xf]
  %v566 = vld [vmem:[%s3 + $0x2c] sm:$0xf]
  %v567 = vld [vmem:[%s3 + $0x30] sm:$0xf]
  %v568 = vld [vmem:[%s3 + $0x34] sm:$0xf]
  %v569 = vld [vmem:[%s3 + $0x38] sm:$0xf]
  %v570 = vld [vmem:[%s3 + $0x3c] sm:$0xf]
  %v571 = vld [vmem:[%s3 + $0x40] sm:$0xf]
  %v572 = vld [vmem:[%s3 + $0x44] sm:$0xf]
  %v573 = vld [vmem:[%s3 + $0x48] sm:$0xf]
  %v574 = vld [vmem:[%s3 + $0x4c] sm:$0xf]
  %v575 = vld [vmem:[%s3 + $0x50] sm:$0xf]
  %v576 = vld [vmem:[%s3 + $0x54] sm:$0xf]
  %v577 = vld [vmem:[%s3 + $0x58] sm:$0xf]
  %v578 = vld [vmem:[%s3 + $0x5c] sm:$0xf]
  %v579 = vld [vmem:[%s3 + $0x60] sm:$0xf]
  %v580 = vld [vmem:[%s3 + $0x64] sm:$0xf]
  %v581 = vld [vmem:[%s3 + $0x68] sm:$0xf]
  %v582 = vld [vmem:[%s3 + $0x6c] sm:$0xf]
  %v583 = vld [vmem:[%s3 + $0x70] sm:$0xf]
  %v584 = vld [vmem:[%s3 + $0x74] sm:$0xf]
  %v585 = vld [vmem:[%s3 + $0x78] sm:$0xf]
  %v586 = vld [vmem:[%s3 + $0x7c] sm:$0xf]
  %v587 = vld [vmem:[%s4] sm:$0x1]
  %v589 = vlaneseq
  %v590 = vshrl.u32 %v589, 7
  %v591 = vsub.s32 0, %v590
  %v592 = vrot.slane %v587, %v591
  %v626 = vunpack.c.l.b16 %v555
  %v627 = vunpack.c.l.b16 %v556
  %v628 = vunpack.c.l.b16 %v557
  %v629 = vunpack.c.l.b16 %v558
  %v630 = vunpack.c.l.b16 %v559
  %v631 = vunpack.c.l.b16 %v560
  %v632 = vunpack.c.l.b16 %v561
  %v633 = vunpack.c.l.b16 %v562
  %v634 = vunpack.c.l.b16 %v563
  %v635 = vunpack.c.l.b16 %v564
  %v636 = vunpack.c.l.b16 %v565
  %v637 = vunpack.c.l.b16 %v566
  %v638 = vunpack.c.l.b16 %v567
  %v639 = vunpack.c.l.b16 %v568
  %v640 = vunpack.c.l.b16 %v569
  %v641 = vunpack.c.l.b16 %v570
  %v642 = vunpack.c.l.b16 %v571
  %v643 = vunpack.c.l.b16 %v572
  %v644 = vunpack.c.l.b16 %v573
  %v645 = vunpack.c.l.b16 %v574
  %v646 = vunpack.c.l.b16 %v575
  %v647 = vunpack.c.l.b16 %v576
  %v648 = vunpack.c.l.b16 %v577
  %v649 = vunpack.c.l.b16 %v578
  %v650 = vunpack.c.l.b16 %v579
  %v651 = vunpack.c.l.b16 %v580
  %v652 = vunpack.c.l.b16 %v581
  %v653 = vunpack.c.l.b16 %v582
  %v654 = vunpack.c.l.b16 %v583
  %v655 = vunpack.c.l.b16 %v584
  %v656 = vunpack.c.l.b16 %v585
  %v657 = vunpack.c.l.b16 %v586
  %v658 = vpack.c.b16 %v627, %v626
  %v659 = vpack.c.b16 %v629, %v628
  %v660 = vpack.c.b16 %v631, %v630
  %v661 = vpack.c.b16 %v633, %v632
  %v662 = vpack.c.b16 %v635, %v634
  %v663 = vpack.c.b16 %v637, %v636
  %v664 = vpack.c.b16 %v639, %v638
  %v665 = vpack.c.b16 %v641, %v640
  %v666 = vpack.c.b16 %v643, %v642
  %v667 = vpack.c.b16 %v645, %v644
  %v668 = vpack.c.b16 %v647, %v646
  %v669 = vpack.c.b16 %v649, %v648
  %v670 = vpack.c.b16 %v651, %v650
  %v671 = vpack.c.b16 %v653, %v652
  %v672 = vpack.c.b16 %v655, %v654
  %v673 = vpack.c.b16 %v657, %v656
  %690 = vmatprep.subr.bf16.mxu0 0
  %691 = vmatpush1.bf16.msra.mxu0 %v658
  %692 = vmatprep.subr.bf16.mxu0 0
  %693 = vmatpush1.bf16.msra.mxu0 %v659
  %694 = vmatprep.subr.bf16.mxu0 0
  %695 = vmatpush1.bf16.msra.mxu0 %v660
  %696 = vmatprep.subr.bf16.mxu0 0
  %697 = vmatpush1.bf16.msra.mxu0 %v661
  %698 = vmatprep.subr.bf16.mxu0 0
  %699 = vmatpush1.bf16.msra.mxu0 %v662
  %700 = vmatprep.subr.bf16.mxu0 0
  %701 = vmatpush1.bf16.msra.mxu0 %v663
  %702 = vmatprep.subr.bf16.mxu0 0
  %703 = vmatpush1.bf16.msra.mxu0 %v664
  %704 = vmatprep.subr.bf16.mxu0 0
  %705 = vmatpush1.bf16.msra.mxu0 %v665
  %706 = vmatprep.subr.bf16.mxu0 0
  %707 = vmatpush1.bf16.msra.mxu0 %v666
  %708 = vmatprep.subr.bf16.mxu0 0
  %709 = vmatpush1.bf16.msra.mxu0 %v667
  %710 = vmatprep.subr.bf16.mxu0 0
  %711 = vmatpush1.bf16.msra.mxu0 %v668
  %712 = vmatprep.subr.bf16.mxu0 0
  %713 = vmatpush1.bf16.msra.mxu0 %v669
  %714 = vmatprep.subr.bf16.mxu0 0
  %715 = vmatpush1.bf16.msra.mxu0 %v670
  %716 = vmatprep.subr.bf16.mxu0 0
  %717 = vmatpush1.bf16.msra.mxu0 %v671
  %718 = vmatprep.subr.bf16.mxu0 0
  %719 = vmatpush1.bf16.msra.mxu0 %v672
  %720 = vmatprep.subr.bf16.mxu0 0
  %721 = vmatpush1.bf16.msra.mxu0 %v673
  %722 = vmatprep.mubr.bf16.mxu0 %v552
  %723 = vmatmul.mubr.bf16.gmra.mrb[0].mxu0 %v551
  %v724 = vpop.f32.mrb[0].mxu0
  %v725 = vadd.f32 %v592, %v724
  %v726 = vpop.f32.mrb[0].mxu0
  %v727 = vpop.f32.mrb[0].mxu0
  %v728 = vpop.f32.mrb[0].mxu0
  %729 = vdwg.mxu0
  %v730 = vld [vmem:[%s5] sm:$0xff]
  %v731 = vld [vmem:[%s5 + $0x8] sm:$0xf]
  %v732 = vld [vmem:[%s5 + $0xc] sm:$0xff]
  %v733 = vld [vmem:[%s5 + $0x14] sm:$0xf]
  %v734 = vld [vmem:[%s5 + $0x18] sm:$0xff]
  %v735 = vld [vmem:[%s5 + $0x20] sm:$0xf]
  %v736 = vld [vmem:[%s5 + $0x24] sm:$0xff]
  %v737 = vld [vmem:[%s5 + $0x2c] sm:$0xf]
  %v738 = vld [vmem:[%s5 + $0x30] sm:$0xff]
  %v739 = vld [vmem:[%s5 + $0x38] sm:$0xf]
  %v740 = vld [vmem:[%s5 + $0x3c] sm:$0xff]
  %v741 = vld [vmem:[%s5 + $0x44] sm:$0xf]
  %v742 = vld [vmem:[%s5 + $0x48] sm:$0xff]
  %v743 = vld [vmem:[%s5 + $0x50] sm:$0xf]
  %v744 = vld [vmem:[%s5 + $0x54] sm:$0xff]
  %v745 = vld [vmem:[%s5 + $0x5c] sm:$0xf]
  %v746 = vld [vmem:[%s5 + $0x60] sm:$0xff]
  %v747 = vld [vmem:[%s5 + $0x68] sm:$0xf]
  %v748 = vld [vmem:[%s5 + $0x6c] sm:$0xff]
  %v749 = vld [vmem:[%s5 + $0x74] sm:$0xf]
  %v750 = vld [vmem:[%s5 + $0x78] sm:$0xff]
  %v751 = vld [vmem:[%s5 + $0x80] sm:$0xf]
  %v752 = vld [vmem:[%s5 + $0x84] sm:$0xff]
  %v753 = vld [vmem:[%s5 + $0x8c] sm:$0xf]
  %v754 = vld [vmem:[%s5 + $0x90] sm:$0xff]
  %v755 = vld [vmem:[%s5 + $0x98] sm:$0xf]
  %v756 = vld [vmem:[%s5 + $0x9c] sm:$0xff]
  %v757 = vld [vmem:[%s5 + $0xa4] sm:$0xf]
  %v758 = vld [vmem:[%s5 + $0xa8] sm:$0xff]
  %v759 = vld [vmem:[%s5 + $0xb0] sm:$0xf]
  %v760 = vld [vmem:[%s5 + $0xb4] sm:$0xff]
  %v761 = vld [vmem:[%s5 + $0xbc] sm:$0xf]
  %v762 = vld [vmem:[%s5 + $0xc0] sm:$0xff]
  %v763 = vld [vmem:[%s5 + $0xc8] sm:$0xf]
  %v764 = vld [vmem:[%s5 + $0xcc] sm:$0xff]
  %v765 = vld [vmem:[%s5 + $0xd4] sm:$0xf]
  %v766 = vld [vmem:[%s5 + $0xd8] sm:$0xff]
  %v767 = vld [vmem:[%s5 + $0xe0] sm:$0xf]
  %v768 = vld [vmem:[%s5 + $0xe4] sm:$0xff]
  %v769 = vld [vmem:[%s5 + $0xec] sm:$0xf]
  %v770 = vld [vmem:[%s5 + $0xf0] sm:$0xff]
  %v771 = vld [vmem:[%s5 + $0xf8] sm:$0xf]
  %v772 = vld [vmem:[%s5 + $0xfc] sm:$0xff]
  %v773 = vld [vmem:[%s5 + $0x104] sm:$0xf]
  %v774 = vld [vmem:[%s5 + $0x108] sm:$0xff]
  %v775 = vld [vmem:[%s5 + $0x110] sm:$0xf]
  %v776 = vld [vmem:[%s5 + $0x114] sm:$0xff]
  %v777 = vld [vmem:[%s5 + $0x11c] sm:$0xf]
  %v778 = vld [vmem:[%s5 + $0x120] sm:$0xff]
  %v779 = vld [vmem:[%s5 + $0x128] sm:$0xf]
  %v780 = vld [vmem:[%s5 + $0x12c] sm:$0xff]
  %v781 = vld [vmem:[%s5 + $0x134] sm:$0xf]
  %v782 = vld [vmem:[%s5 + $0x138] sm:$0xff]
  %v783 = vld [vmem:[%s5 + $0x140] sm:$0xf]
  %v784 = vld [vmem:[%s5 + $0x144] sm:$0xff]
  %v785 = vld [vmem:[%s5 + $0x14c] sm:$0xf]
  %v786 = vld [vmem:[%s5 + $0x150] sm:$0xff]
  %v787 = vld [vmem:[%s5 + $0x158] sm:$0xf]
  %v788 = vld [vmem:[%s5 + $0x15c] sm:$0xff]
  %v789 = vld [vmem:[%s5 + $0x164] sm:$0xf]
  %v790 = vld [vmem:[%s5 + $0x168] sm:$0xff]
  %v791 = vld [vmem:[%s5 + $0x170] sm:$0xf]
  %v792 = vld [vmem:[%s5 + $0x174] sm:$0xff]
  %v793 = vld [vmem:[%s5 + $0x17c] sm:$0xf]
  %v794 = vld [vmem:[%s6] sm:$0x7]
  %v796 = vlaneseq
  %v797 = vshrl.u32 %v796, 7
  %v798 = vsub.s32 0, %v797
  %v799 = vrot.slane %v794, %v798
  %v800 = vlaneseq
  %v801 = vshrl.u32 %v800, 7
  %v802 = vsub.s32 1, %v801
  %v803 = vrot.slane %v794, %v802
  %v804 = vlaneseq
  %v805 = vshrl.u32 %v804, 7
  %v806 = vsub.s32 2, %v805
  %v807 = vrot.slane %v794, %v806
  %v875 = vunpack.c.l.b16 %v730
  %v876 = vunpack.c.h.b16 %v730
  %v877 = vunpack.c.l.b16 %v731
  %v878 = vunpack.c.l.b16 %v732
  %v879 = vunpack.c.h.b16 %v732
  %v880 = vunpack.c.l.b16 %v733
  %v881 = vunpack.c.l.b16 %v734
  %v882 = vunpack.c.h.b16 %v734
  %v883 = vunpack.c.l.b16 %v735
  %v884 = vunpack.c.l.b16 %v736
  %v885 = vunpack.c.h.b16 %v736
  %v886 = vunpack.c.l.b16 %v737
  %v887 = vunpack.c.l.b16 %v738
  %v888 = vunpack.c.h.b16 %v738
  %v889 = vunpack.c.l.b16 %v739
  %v890 = vunpack.c.l.b16 %v740
  %v891 = vunpack.c.h.b16 %v740
  %v892 = vunpack.c.l.b16 %v741
  %v893 = vunpack.c.l.b16 %v742
  %v894 = vunpack.c.h.b16 %v742
  %v895 = vunpack.c.l.b16 %v743
  %v896 = vunpack.c.l.b16 %v744
  %v897 = vunpack.c.h.b16 %v744
  %v898 = vunpack.c.l.b16 %v745
  %v899 = vunpack.c.l.b16 %v746
  %v900 = vunpack.c.h.b16 %v746
  %v901 = vunpack.c.l.b16 %v747
  %v902 = vunpack.c.l.b16 %v748
  %v903 = vunpack.c.h.b16 %v748
  %v904 = vunpack.c.l.b16 %v749
  %v905 = vunpack.c.l.b16 %v750
  %v906 = vunpack.c.h.b16 %v750
  %v907 = vunpack.c.l.b16 %v751
  %v908 = vunpack.c.l.b16 %v752
  %v909 = vunpack.c.h.b16 %v752
  %v910 = vunpack.c.l.b16 %v753
  %v911 = vunpack.c.l.b16 %v754
  %v912 = vunpack.c.h.b16 %v754
  %v913 = vunpack.c.l.b16 %v755
  %v914 = vunpack.c.l.b16 %v756
  %v915 = vunpack.c.h.b16 %v756
  %v916 = vunpack.c.l.b16 %v757
  %v917 = vunpack.c.l.b16 %v758
  %v918 = vunpack.c.h.b16 %v758
  %v919 = vunpack.c.l.b16 %v759
  %v920 = vunpack.c.l.b16 %v760
  %v921 = vunpack.c.h.b16 %v760
  %v922 = vunpack.c.l.b16 %v761
  %v923 = vunpack.c.l.b16 %v762
  %v924 = vunpack.c.h.b16 %v762
  %v925 = vunpack.c.l.b16 %v763
  %v926 = vunpack.c.l.b16 %v764
  %v927 = vunpack.c.h.b16 %v764
  %v928 = vunpack.c.l.b16 %v765
  %v929 = vunpack.c.l.b16 %v766
  %v930 = vunpack.c.h.b16 %v766
  %v931 = vunpack.c.l.b16 %v767
  %v932 = vunpack.c.l.b16 %v768
  %v933 = vunpack.c.h.b16 %v768
  %v934 = vunpack.c.l.b16 %v769
  %v935 = vunpack.c.l.b16 %v770
  %v936 = vunpack.c.h.b16 %v770
  %v937 = vunpack.c.l.b16 %v771
  %v938 = vunpack.c.l.b16 %v772
  %v939 = vunpack.c.h.b16 %v772
  %v940 = vunpack.c.l.b16 %v773
  %v941 = vunpack.c.l.b16 %v774
  %v942 = vunpack.c.h.b16 %v774
  %v943 = vunpack.c.l.b16 %v775
  %v944 = vunpack.c.l.b16 %v776
  %v945 = vunpack.c.h.b16 %v776
  %v946 = vunpack.c.l.b16 %v777
  %v947 = vunpack.c.l.b16 %v778
  %v948 = vunpack.c.h.b16 %v778
  %v949 = vunpack.c.l.b16 %v779
  %v950 = vunpack.c.l.b16 %v780
  %v951 = vunpack.c.h.b16 %v780
  %v952 = vunpack.c.l.b16 %v781
  %v953 = vunpack.c.l.b16 %v782
  %v954 = vunpack.c.h.b16 %v782
  %v955 = vunpack.c.l.b16 %v783
  %v956 = vunpack.c.l.b16 %v784
  %v957 = vunpack.c.h.b16 %v784
  %v958 = vunpack.c.l.b16 %v785
  %v959 = vunpack.c.l.b16 %v786
  %v960 = vunpack.c.h.b16 %v786
  %v961 = vunpack.c.l.b16 %v787
  %v962 = vunpack.c.l.b16 %v788
  %v963 = vunpack.c.h.b16 %v788
  %v964 = vunpack.c.l.b16 %v789
  %v965 = vunpack.c.l.b16 %v790
  %v966 = vunpack.c.h.b16 %v790
  %v967 = vunpack.c.l.b16 %v791
  %v968 = vunpack.c.l.b16 %v792
  %v969 = vunpack.c.h.b16 %v792
  %v970 = vunpack.c.l.b16 %v793
  %v971 = vpack.c.b16 %v878, %v875
  %v972 = vpack.c.b16 %v879, %v876
  %v973 = vpack.c.b16 %v880, %v877
  %v974 = vpack.c.b16 %v884, %v881
  %v975 = vpack.c.b16 %v885, %v882
  %v976 = vpack.c.b16 %v886, %v883
  %v977 = vpack.c.b16 %v890, %v887
  %v978 = vpack.c.b16 %v891, %v888
  %v979 = vpack.c.b16 %v892, %v889
  %v980 = vpack.c.b16 %v896, %v893
  %v981 = vpack.c.b16 %v897, %v894
  %v982 = vpack.c.b16 %v898, %v895
  %v983 = vpack.c.b16 %v902, %v899
  %v984 = vpack.c.b16 %v903, %v900
  %v985 = vpack.c.b16 %v904, %v901
  %v986 = vpack.c.b16 %v908, %v905
  %v987 = vpack.c.b16 %v909, %v906
  %v988 = vpack.c.b16 %v910, %v907
  %v989 = vpack.c.b16 %v914, %v911
  %v990 = vpack.c.b16 %v915, %v912
  %v991 = vpack.c.b16 %v916, %v913
  %v992 = vpack.c.b16 %v920, %v917
  %v993 = vpack.c.b16 %v921, %v918
  %v994 = vpack.c.b16 %v922, %v919
  %v995 = vpack.c.b16 %v926, %v923
  %v996 = vpack.c.b16 %v927, %v924
  %v997 = vpack.c.b16 %v928, %v925
  %v998 = vpack.c.b16 %v932, %v929
  %v999 = vpack.c.b16 %v933, %v930
  %v1000 = vpack.c.b16 %v934, %v931
  %v1001 = vpack.c.b16 %v938, %v935
  %v1002 = vpack.c.b16 %v939, %v936
  %v1003 = vpack.c.b16 %v940, %v937
  %v1004 = vpack.c.b16 %v944, %v941
  %v1005 = vpack.c.b16 %v945, %v942
  %v1006 = vpack.c.b16 %v946, %v943
  %v1007 = vpack.c.b16 %v950, %v947
  %v1008 = vpack.c.b16 %v951, %v948
  %v1009 = vpack.c.b16 %v952, %v949
  %v1010 = vpack.c.b16 %v956, %v953
  %v1011 = vpack.c.b16 %v957, %v954
  %v1012 = vpack.c.b16 %v958, %v955
  %v1013 = vpack.c.b16 %v962, %v959
  %v1014 = vpack.c.b16 %v963, %v960
  %v1015 = vpack.c.b16 %v964, %v961
  %v1016 = vpack.c.b16 %v968, %v965
  %v1017 = vpack.c.b16 %v969, %v966
  %v1018 = vpack.c.b16 %v970, %v967
  %1067 = vmatprep.subr.bf16.mxu0 %v972
  %1068 = vmatpush1.bf16.msra.mxu0 %v971
  %1069 = vmatprep.subr.bf16.mxu0 %v975
  %1070 = vmatpush1.bf16.msra.mxu0 %v974
  %1071 = vmatprep.subr.bf16.mxu0 %v978
  %1072 = vmatpush1.bf16.msra.mxu0 %v977
  %1073 = vmatprep.subr.bf16.mxu0 %v981
  %1074 = vmatpush1.bf16.msra.mxu0 %v980
  %1075 = vmatprep.subr.bf16.mxu0 %v984
  %1076 = vmatpush1.bf16.msra.mxu0 %v983
  %1077 = vmatprep.subr.bf16.mxu0 %v987
  %1078 = vmatpush1.bf16.msra.mxu0 %v986
  %1079 = vmatprep.subr.bf16.mxu0 %v990
  %1080 = vmatpush1.bf16.msra.mxu0 %v989
  %1081 = vmatprep.subr.bf16.mxu0 %v993
  %1082 = vmatpush1.bf16.msra.mxu0 %v992
  %1083 = vmatprep.subr.bf16.mxu0 %v996
  %1084 = vmatpush1.bf16.msra.mxu0 %v995
  %1085 = vmatprep.subr.bf16.mxu0 %v999
  %1086 = vmatpush1.bf16.msra.mxu0 %v998
  %1087 = vmatprep.subr.bf16.mxu0 %v1002
  %1088 = vmatpush1.bf16.msra.mxu0 %v1001
  %1089 = vmatprep.subr.bf16.mxu0 %v1005
  %1090 = vmatpush1.bf16.msra.mxu0 %v1004
  %1091 = vmatprep.subr.bf16.mxu0 %v1008
  %1092 = vmatpush1.bf16.msra.mxu0 %v1007
  %1093 = vmatprep.subr.bf16.mxu0 %v1011
  %1094 = vmatpush1.bf16.msra.mxu0 %v1010
  %1095 = vmatprep.subr.bf16.mxu0 %v1014
  %1096 = vmatpush1.bf16.msra.mxu0 %v1013
  %1097 = vmatprep.subr.bf16.mxu0 %v1017
  %1098 = vmatpush1.bf16.msra.mxu0 %v1016
  %1099 = vmatprep.mubr.bf16.mxu0 %v554
  %1100 = vmatmul.mubr.bf16.gmra.mrb[0].mxu0 %v553
  %v1101 = vpop.f32.mrb[0].mxu0
  %v1102 = vadd.f32 %v799, %v1101
  %v1103 = vpop.f32.mrb[0].mxu0
  %v1104 = vadd.f32 %v803, %v1103
  %v1105 = vpop.f32.mrb[0].mxu0
  %v1106 = vpop.f32.mrb[0].mxu0
  %1107 = vdwg.mxu0
  %1108 = vmatprep.subr.bf16.mxu0 0
  %1109 = vmatpush1.bf16.msra.mxu0 %v973
  %1110 = vmatprep.subr.bf16.mxu0 0
  %1111 = vmatpush1.bf16.msra.mxu0 %v976
  %1112 = vmatprep.subr.bf16.mxu0 0
  %1113 = vmatpush1.bf16.msra.mxu0 %v979
  %1114 = vmatprep.subr.bf16.mxu0 0
  %1115 = vmatpush1.bf16.msra.mxu0 %v982
  %1116 = vmatprep.subr.bf16.mxu0 0
  %1117 = vmatpush1.bf16.msra.mxu0 %v985
  %1118 = vmatprep.subr.bf16.mxu0 0
  %1119 = vmatpush1.bf16.msra.mxu0 %v988
  %1120 = vmatprep.subr.bf16.mxu0 0
  %1121 = vmatpush1.bf16.msra.mxu0 %v991
  %1122 = vmatprep.subr.bf16.mxu0 0
  %1123 = vmatpush1.bf16.msra.mxu0 %v994
  %1124 = vmatprep.subr.bf16.mxu0 0
  %1125 = vmatpush1.bf16.msra.mxu0 %v997
  %1126 = vmatprep.subr.bf16.mxu0 0
  %1127 = vmatpush1.bf16.msra.mxu0 %v1000
  %1128 = vmatprep.subr.bf16.mxu0 0
  %1129 = vmatpush1.bf16.msra.mxu0 %v1003
  %1130 = vmatprep.subr.bf16.mxu0 0
  %1131 = vmatpush1.bf16.msra.mxu0 %v1006
  %1132 = vmatprep.subr.bf16.mxu0 0
  %1133 = vmatpush1.bf16.msra.mxu0 %v1009
  %1134 = vmatprep.subr.bf16.mxu0 0
  %1135 = vmatpush1.bf16.msra.mxu0 %v1012
  %1136 = vmatprep.subr.bf16.mxu0 0
  %1137 = vmatpush1.bf16.msra.mxu0 %v1015
  %1138 = vmatprep.subr.bf16.mxu0 0
  %1139 = vmatpush1.bf16.msra.mxu0 %v1018
  %1140 = vmatprep.mubr.bf16.mxu0 %v554
  %1141 = vmatmul.mubr.bf16.gmra.mrb[0].mxu0 %v553
  %v1142 = vpop.f32.mrb[0].mxu0
  %v1143 = vadd.f32 %v807, %v1142
  %v1144 = vpop.f32.mrb[0].mxu0
  %v1145 = vpop.f32.mrb[0].mxu0
  %v1146 = vpop.f32.mrb[0].mxu0
  %1147 = vdwg.mxu0
  %v1148 = vld [vmem:[%s7] sm:$0xff]
  %v1149 = vld [vmem:[%s7 + $0x8] sm:$0xff]
  %v1150 = vld [vmem:[%s7 + $0x10] sm:$0xff]
  %v1151 = vld [vmem:[%s7 + $0x18] sm:$0xff]
  %v1152 = vld [vmem:[%s7 + $0x20] sm:$0xff]
  %v1153 = vld [vmem:[%s7 + $0x28] sm:$0xff]
  %v1154 = vld [vmem:[%s7 + $0x30] sm:$0xff]
  %v1155 = vld [vmem:[%s7 + $0x38] sm:$0xff]
  %v1156 = vld [vmem:[%s7 + $0x40] sm:$0xff]
  %v1157 = vld [vmem:[%s7 + $0x48] sm:$0xff]
  %v1158 = vld [vmem:[%s7 + $0x50] sm:$0xff]
  %v1159 = vld [vmem:[%s7 + $0x58] sm:$0xff]
  %v1160 = vld [vmem:[%s7 + $0x60] sm:$0xff]
  %v1161 = vld [vmem:[%s7 + $0x68] sm:$0xff]
  %v1162 = vld [vmem:[%s7 + $0x70] sm:$0xff]
  %v1163 = vld [vmem:[%s7 + $0x78] sm:$0xff]
  %v1164 = vld [vmem:[%s7 + $0x80] sm:$0xff]
  %v1165 = vld [vmem:[%s7 + $0x88] sm:$0xff]
  %v1166 = vld [vmem:[%s7 + $0x90] sm:$0xff]
  %v1167 = vld [vmem:[%s7 + $0x98] sm:$0xff]
  %v1168 = vld [vmem:[%s7 + $0xa0] sm:$0xff]
  %v1169 = vld [vmem:[%s7 + $0xa8] sm:$0xff]
  %v1170 = vld [vmem:[%s7 + $0xb0] sm:$0xff]
  %v1171 = vld [vmem:[%s7 + $0xb8] sm:$0xff]
  %v1172 = vld [vmem:[%s7 + $0xc0] sm:$0xff]
  %v1173 = vld [vmem:[%s7 + $0xc8] sm:$0xff]
  %v1174 = vld [vmem:[%s7 + $0xd0] sm:$0xff]
  %v1175 = vld [vmem:[%s7 + $0xd8] sm:$0xff]
  %v1176 = vld [vmem:[%s7 + $0xe0] sm:$0xff]
  %v1177 = vld [vmem:[%s7 + $0xe8] sm:$0xff]
  %v1178 = vld [vmem:[%s7 + $0xf0] sm:$0xff]
  %v1179 = vld [vmem:[%s7 + $0xf8] sm:$0xff]
  %v1180 = vld [vmem:[%s7 + $0x100] sm:$0xff]
  %v1181 = vld [vmem:[%s7 + $0x108] sm:$0xff]
  %v1182 = vld [vmem:[%s7 + $0x110] sm:$0xff]
  %v1183 = vld [vmem:[%s7 + $0x118] sm:$0xff]
  %v1184 = vld [vmem:[%s7 + $0x120] sm:$0xff]
  %v1185 = vld [vmem:[%s7 + $0x128] sm:$0xff]
  %v1186 = vld [vmem:[%s7 + $0x130] sm:$0xff]
  %v1187 = vld [vmem:[%s7 + $0x138] sm:$0xff]
  %v1188 = vld [vmem:[%s7 + $0x140] sm:$0xff]
  %v1189 = vld [vmem:[%s7 + $0x148] sm:$0xff]
  %v1190 = vld [vmem:[%s7 + $0x150] sm:$0xff]
  %v1191 = vld [vmem:[%s7 + $0x158] sm:$0xff]
  %v1192 = vld [vmem:[%s7 + $0x160] sm:$0xff]
  %v1193 = vld [vmem:[%s7 + $0x168] sm:$0xff]
  %v1194 = vld [vmem:[%s7 + $0x170] sm:$0xff]
  %v1195 = vld [vmem:[%s7 + $0x178] sm:$0xff]
  %1196 = vmatprep.subr.mxu0 0.0
  %1197 = vmatpush1.msra.mxu0 %v1148
  %1198 = vmatprep.subr.mxu0 0.0
  %1199 = vmatpush1.msra.mxu0 %v1149
  %1200 = vmatprep.subr.mxu0 0.0
  %1201 = vmatpush1.msra.mxu0 %v1150
  %1202 = vmatprep.subr.mxu0 0.0
  %1203 = vmatpush1.msra.mxu0 %v1151
  %1204 = vmatprep.subr.mxu0 0.0
  %1205 = vmatpush1.msra.mxu0 %v1152
  %1206 = vmatprep.subr.mxu0 0.0
  %1207 = vmatpush1.msra.mxu0 %v1153
  %1208 = vmatprep.subr.mxu0 0.0
  %1209 = vmatpush1.msra.mxu0 %v1154
  %1210 = vmatprep.subr.mxu0 0.0
  %1211 = vmatpush1.msra.mxu0 %v1155
  %1212 = vmatprep.subr.mxu0 0.0
  %1213 = vmatpush1.msra.mxu0 %v1156
  %1214 = vmatprep.subr.mxu0 0.0
  %1215 = vmatpush1.msra.mxu0 %v1157
  %1216 = vmatprep.subr.mxu0 0.0
  %1217 = vmatpush1.msra.mxu0 %v1158
  %1218 = vmatprep.subr.mxu0 0.0
  %1219 = vmatpush1.msra.mxu0 %v1159
  %1220 = vmatprep.subr.mxu0 0.0
  %1221 = vmatpush1.msra.mxu0 %v1160
  %1222 = vmatprep.subr.mxu0 0.0
  %1223 = vmatpush1.msra.mxu0 %v1161
  %1224 = vmatprep.subr.mxu0 0.0
  %1225 = vmatpush1.msra.mxu0 %v1162
  %1226 = vmatprep.subr.mxu0 0.0
  %1227 = vmatpush1.msra.mxu0 %v1163
  %1228 = vmatprep.subr.mxu0 0.0
  %1229 = vmatpush1.msra.mxu0 %v1164
  %1230 = vmatprep.subr.mxu0 0.0
  %1231 = vmatpush1.msra.mxu0 %v1165
  %1232 = vmatprep.subr.mxu0 0.0
  %1233 = vmatpush1.msra.mxu0 %v1166
  %1234 = vmatprep.subr.mxu0 0.0
  %1235 = vmatpush1.msra.mxu0 %v1167
  %1236 = vmatprep.subr.mxu0 0.0
  %1237 = vmatpush1.msra.mxu0 %v1168
  %1238 = vmatprep.subr.mxu0 0.0
  %1239 = vmatpush1.msra.mxu0 %v1169
  %1240 = vmatprep.subr.mxu0 0.0
  %1241 = vmatpush1.msra.mxu0 %v1170
  %1242 = vmatprep.subr.mxu0 0.0
  %1243 = vmatpush1.msra.mxu0 %v1171
  %1244 = vmatprep.subr.mxu0 0.0
  %1245 = vmatpush1.msra.mxu0 %v1172
  %1246 = vmatprep.subr.mxu0 0.0
  %1247 = vmatpush1.msra.mxu0 %v1173
  %1248 = vmatprep.subr.mxu0 0.0
  %1249 = vmatpush1.msra.mxu0 %v1174
  %1250 = vmatprep.subr.mxu0 0.0
  %1251 = vmatpush1.msra.mxu0 %v1175
  %1252 = vmatprep.subr.mxu0 0.0
  %1253 = vmatpush1.msra.mxu0 %v1176
  %1254 = vmatprep.subr.mxu0 0.0
  %1255 = vmatpush1.msra.mxu0 %v1177
  %1256 = vmatprep.subr.mxu0 0.0
  %1257 = vmatpush1.msra.mxu0 %v1178
  %1258 = vmatprep.subr.mxu0 0.0
  %1259 = vmatpush1.msra.mxu0 %v1179
  %1260 = vmatprep.mubr.f32.mxu0 %v1104
  %1261 = vmatmul.mubr.f32.gmra.mrb[0].mxu0 %v1102
  %v1262 = vpop.f32.mrb[0].mxu0
  %v1263 = vadd.f32 0.0, %v1262
  %v1264 = vpop.f32.mrb[0].mxu0
  %1265 = vdwg.mxu0
  %1266 = vmatprep.subr.mxu0 0.0
  %1267 = vmatpush1.msra.mxu0 %v1180
  %1268 = vmatprep.subr.mxu0 0.0
  %1269 = vmatpush1.msra.mxu0 %v1181
  %1270 = vmatprep.subr.mxu0 0.0
  %1271 = vmatpush1.msra.mxu0 %v1182
  %1272 = vmatprep.subr.mxu0 0.0
  %1273 = vmatpush1.msra.mxu0 %v1183
  %1274 = vmatprep.subr.mxu0 0.0
  %1275 = vmatpush1.msra.mxu0 %v1184
  %1276 = vmatprep.subr.mxu0 0.0
  %1277 = vmatpush1.msra.mxu0 %v1185
  %1278 = vmatprep.subr.mxu0 0.0
  %1279 = vmatpush1.msra.mxu0 %v1186
  %1280 = vmatprep.subr.mxu0 0.0
  %1281 = vmatpush1.msra.mxu0 %v1187
  %1282 = vmatprep.subr.mxu0 0.0
  %1283 = vmatpush1.msra.mxu0 %v1188
  %1284 = vmatprep.subr.mxu0 0.0
  %1285 = vmatpush1.msra.mxu0 %v1189
  %1286 = vmatprep.subr.mxu0 0.0
  %1287 = vmatpush1.msra.mxu0 %v1190
  %1288 = vmatprep.subr.mxu0 0.0
  %1289 = vmatpush1.msra.mxu0 %v1191
  %1290 = vmatprep.subr.mxu0 0.0
  %1291 = vmatpush1.msra.mxu0 %v1192
  %1292 = vmatprep.subr.mxu0 0.0
  %1293 = vmatpush1.msra.mxu0 %v1193
  %1294 = vmatprep.subr.mxu0 0.0
  %1295 = vmatpush1.msra.mxu0 %v1194
  %1296 = vmatprep.subr.mxu0 0.0
  %1297 = vmatpush1.msra.mxu0 %v1195
  %1298 = vmatprep.subr.mxu0 0.0
  %1299 = vmatpush1.msra.mxu0 0.0
  %1300 = vmatprep.subr.mxu0 0.0
  %1301 = vmatpush1.msra.mxu0 0.0
  %1302 = vmatprep.subr.mxu0 0.0
  %1303 = vmatpush1.msra.mxu0 0.0
  %1304 = vmatprep.subr.mxu0 0.0
  %1305 = vmatpush1.msra.mxu0 0.0
  %1306 = vmatprep.subr.mxu0 0.0
  %1307 = vmatpush1.msra.mxu0 0.0
  %1308 = vmatprep.subr.mxu0 0.0
  %1309 = vmatpush1.msra.mxu0 0.0
  %1310 = vmatprep.subr.mxu0 0.0
  %1311 = vmatpush1.msra.mxu0 0.0
  %1312 = vmatprep.subr.mxu0 0.0
  %1313 = vmatpush1.msra.mxu0 0.0
  %1314 = vmatprep.subr.mxu0 0.0
  %1315 = vmatpush1.msra.mxu0 0.0
  %1316 = vmatprep.subr.mxu0 0.0
  %1317 = vmatpush1.msra.mxu0 0.0
  %1318 = vmatprep.subr.mxu0 0.0
  %1319 = vmatpush1.msra.mxu0 0.0
  %1320 = vmatprep.subr.mxu0 0.0
  %1321 = vmatpush1.msra.mxu0 0.0
  %1322 = vmatprep.subr.mxu0 0.0
  %1323 = vmatpush1.msra.mxu0 0.0
  %1324 = vmatprep.subr.mxu0 0.0
  %1325 = vmatpush1.msra.mxu0 0.0
  %1326 = vmatprep.subr.mxu0 0.0
  %1327 = vmatpush1.msra.mxu0 0.0
  %1328 = vmatprep.subr.mxu0 0.0
  %1329 = vmatpush1.msra.mxu0 0.0
  %1330 = vmatprep.mubr.f32.mxu0 0.0
  %1331 = vmatmul.mubr.f32.gmra.mrb[0].mxu0 %v1143
  %v1332 = vpop.f32.mrb[0].mxu0
  %v1333 = vadd.f32 %v1263, %v1332
  %v1334 = vpop.f32.mrb[0].mxu0
  %1335 = vdwg.mxu0
  %v1336 = vmul.f32 %v1333, 0.16666667
  %v1337 = vsub.f32 %v725, %v1336
  %v1338 = vld [vmem:[%s8] sm:$0xff]
  %v1339 = vld [vmem:[%s8 + $0x8] sm:$0xff]
  %v1340 = vld [vmem:[%s8 + $0x10] sm:$0xff]
  %v1341 = vld [vmem:[%s8 + $0x18] sm:$0xff]
  %v1342 = vld [vmem:[%s8 + $0x20] sm:$0xff]
  %v1343 = vld [vmem:[%s8 + $0x28] sm:$0xff]
  %v1344 = vld [vmem:[%s8 + $0x30] sm:$0xff]
  %v1345 = vld [vmem:[%s8 + $0x38] sm:$0xff]
  %v1346 = vld [vmem:[%s8 + $0x40] sm:$0xff]
  %v1347 = vld [vmem:[%s8 + $0x48] sm:$0xff]
  %v1348 = vld [vmem:[%s8 + $0x50] sm:$0xff]
  %v1349 = vld [vmem:[%s8 + $0x58] sm:$0xff]
  %v1350 = vld [vmem:[%s8 + $0x60] sm:$0xff]
  %v1351 = vld [vmem:[%s8 + $0x68] sm:$0xff]
  %v1352 = vld [vmem:[%s8 + $0x70] sm:$0xff]
  %v1353 = vld [vmem:[%s8 + $0x78] sm:$0xff]
  %v1354 = vld [vmem:[%s8 + $0x80] sm:$0xff]
  %v1355 = vld [vmem:[%s8 + $0x88] sm:$0xff]
  %v1356 = vld [vmem:[%s8 + $0x90] sm:$0xff]
  %v1357 = vld [vmem:[%s8 + $0x98] sm:$0xff]
  %v1358 = vld [vmem:[%s8 + $0xa0] sm:$0xff]
  %v1359 = vld [vmem:[%s8 + $0xa8] sm:$0xff]
  %v1360 = vld [vmem:[%s8 + $0xb0] sm:$0xff]
  %v1361 = vld [vmem:[%s8 + $0xb8] sm:$0xff]
  %v1362 = vld [vmem:[%s8 + $0xc0] sm:$0xff]
  %v1363 = vld [vmem:[%s8 + $0xc8] sm:$0xff]
  %v1364 = vld [vmem:[%s8 + $0xd0] sm:$0xff]
  %v1365 = vld [vmem:[%s8 + $0xd8] sm:$0xff]
  %v1366 = vld [vmem:[%s8 + $0xe0] sm:$0xff]
  %v1367 = vld [vmem:[%s8 + $0xe8] sm:$0xff]
  %v1368 = vld [vmem:[%s8 + $0xf0] sm:$0xff]
  %v1369 = vld [vmem:[%s8 + $0xf8] sm:$0xff]
  %v1370 = vld [vmem:[%s8 + $0x100] sm:$0xff]
  %v1371 = vld [vmem:[%s8 + $0x108] sm:$0xff]
  %v1372 = vld [vmem:[%s8 + $0x110] sm:$0xff]
  %v1373 = vld [vmem:[%s8 + $0x118] sm:$0xff]
  %v1374 = vld [vmem:[%s8 + $0x120] sm:$0xff]
  %v1375 = vld [vmem:[%s8 + $0x128] sm:$0xff]
  %v1376 = vld [vmem:[%s8 + $0x130] sm:$0xff]
  %v1377 = vld [vmem:[%s8 + $0x138] sm:$0xff]
  %v1378 = vld [vmem:[%s8 + $0x140] sm:$0xff]
  %v1379 = vld [vmem:[%s8 + $0x148] sm:$0xff]
  %v1380 = vld [vmem:[%s8 + $0x150] sm:$0xff]
  %v1381 = vld [vmem:[%s8 + $0x158] sm:$0xff]
  %v1382 = vld [vmem:[%s8 + $0x160] sm:$0xff]
  %v1383 = vld [vmem:[%s8 + $0x168] sm:$0xff]
  %v1384 = vld [vmem:[%s8 + $0x170] sm:$0xff]
  %v1385 = vld [vmem:[%s8 + $0x178] sm:$0xff]
  %1386 = vmatprep.subr.mxu0 %v1339
  %1387 = vmatpush1.msra.mxu0 %v1338
  %1388 = vmatprep.subr.mxu0 %v1342
  %1389 = vmatpush1.msra.mxu0 %v1341
  %1390 = vmatprep.subr.mxu0 %v1345
  %1391 = vmatpush1.msra.mxu0 %v1344
  %1392 = vmatprep.subr.mxu0 %v1348
  %1393 = vmatpush1.msra.mxu0 %v1347
  %1394 = vmatprep.subr.mxu0 %v1351
  %1395 = vmatpush1.msra.mxu0 %v1350
  %1396 = vmatprep.subr.mxu0 %v1354
  %1397 = vmatpush1.msra.mxu0 %v1353
  %1398 = vmatprep.subr.mxu0 %v1357
  %1399 = vmatpush1.msra.mxu0 %v1356
  %1400 = vmatprep.subr.mxu0 %v1360
  %1401 = vmatpush1.msra.mxu0 %v1359
  %1402 = vmatprep.subr.mxu0 %v1363
  %1403 = vmatpush1.msra.mxu0 %v1362
  %1404 = vmatprep.subr.mxu0 %v1366
  %1405 = vmatpush1.msra.mxu0 %v1365
  %1406 = vmatprep.subr.mxu0 %v1369
  %1407 = vmatpush1.msra.mxu0 %v1368
  %1408 = vmatprep.subr.mxu0 %v1372
  %1409 = vmatpush1.msra.mxu0 %v1371
  %1410 = vmatprep.subr.mxu0 %v1375
  %1411 = vmatpush1.msra.mxu0 %v1374
  %1412 = vmatprep.subr.mxu0 %v1378
  %1413 = vmatpush1.msra.mxu0 %v1377
  %1414 = vmatprep.subr.mxu0 %v1381
  %1415 = vmatpush1.msra.mxu0 %v1380
  %1416 = vmatprep.subr.mxu0 %v1384
  %1417 = vmatpush1.msra.mxu0 %v1383
  %1418 = vmatprep.subr.mxu0 0.0
  %1419 = vmatpush1.msra.mxu0 0.0
  %1420 = vmatprep.subr.mxu0 0.0
  %1421 = vmatpush1.msra.mxu0 0.0
  %1422 = vmatprep.subr.mxu0 0.0
  %1423 = vmatpush1.msra.mxu0 0.0
  %1424 = vmatprep.subr.mxu0 0.0
  %1425 = vmatpush1.msra.mxu0 0.0
  %1426 = vmatprep.subr.mxu0 0.0
  %1427 = vmatpush1.msra.mxu0 0.0
  %1428 = vmatprep.subr.mxu0 0.0
  %1429 = vmatpush1.msra.mxu0 0.0
  %1430 = vmatprep.subr.mxu0 0.0
  %1431 = vmatpush1.msra.mxu0 0.0
  %1432 = vmatprep.subr.mxu0 0.0
  %1433 = vmatpush1.msra.mxu0 0.0
  %1434 = vmatprep.subr.mxu0 0.0
  %1435 = vmatpush1.msra.mxu0 0.0
  %1436 = vmatprep.subr.mxu0 0.0
  %1437 = vmatpush1.msra.mxu0 0.0
  %1438 = vmatprep.subr.mxu0 0.0
  %1439 = vmatpush1.msra.mxu0 0.0
  %1440 = vmatprep.subr.mxu0 0.0
  %1441 = vmatpush1.msra.mxu0 0.0
  %1442 = vmatprep.subr.mxu0 0.0
  %1443 = vmatpush1.msra.mxu0 0.0
  %1444 = vmatprep.subr.mxu0 0.0
  %1445 = vmatpush1.msra.mxu0 0.0
  %1446 = vmatprep.subr.mxu0 0.0
  %1447 = vmatpush1.msra.mxu0 0.0
  %1448 = vmatprep.subr.mxu0 0.0
  %1449 = vmatpush1.msra.mxu0 0.0
  %1450 = vmatprep.mubr.f32.mxu0 0.0
  %1451 = vmatmul.mubr.f32.gmra.mrb[0].mxu0 %v1337
  %v1452 = vpop.f32.mrb[0].mxu0
  %v1453 = vadd.f32 0.0, %v1452
  %v1454 = vpop.f32.mrb[0].mxu0
  %v1455 = vadd.f32 0.0, %v1454
  %1456 = vdwg.mxu0
  %1457 = vmatprep.subr.mxu0 0.0
  %1458 = vmatpush1.msra.mxu0 %v1340
  %1459 = vmatprep.subr.mxu0 0.0
  %1460 = vmatpush1.msra.mxu0 %v1343
  %1461 = vmatprep.subr.mxu0 0.0
  %1462 = vmatpush1.msra.mxu0 %v1346
  %1463 = vmatprep.subr.mxu0 0.0
  %1464 = vmatpush1.msra.mxu0 %v1349
  %1465 = vmatprep.subr.mxu0 0.0
  %1466 = vmatpush1.msra.mxu0 %v1352
  %1467 = vmatprep.subr.mxu0 0.0
  %1468 = vmatpush1.msra.mxu0 %v1355
  %1469 = vmatprep.subr.mxu0 0.0
  %1470 = vmatpush1.msra.mxu0 %v1358
  %1471 = vmatprep.subr.mxu0 0.0
  %1472 = vmatpush1.msra.mxu0 %v1361
  %1473 = vmatprep.subr.mxu0 0.0
  %1474 = vmatpush1.msra.mxu0 %v1364
  %1475 = vmatprep.subr.mxu0 0.0
  %1476 = vmatpush1.msra.mxu0 %v1367
  %1477 = vmatprep.subr.mxu0 0.0
  %1478 = vmatpush1.msra.mxu0 %v1370
  %1479 = vmatprep.subr.mxu0 0.0
  %1480 = vmatpush1.msra.mxu0 %v1373
  %1481 = vmatprep.subr.mxu0 0.0
  %1482 = vmatpush1.msra.mxu0 %v1376
  %1483 = vmatprep.subr.mxu0 0.0
  %1484 = vmatpush1.msra.mxu0 %v1379
  %1485 = vmatprep.subr.mxu0 0.0
  %1486 = vmatpush1.msra.mxu0 %v1382
  %1487 = vmatprep.subr.mxu0 0.0
  %1488 = vmatpush1.msra.mxu0 %v1385
  %1489 = vmatprep.subr.mxu0 0.0
  %1490 = vmatpush1.msra.mxu0 0.0
  %1491 = vmatprep.subr.mxu0 0.0
  %1492 = vmatpush1.msra.mxu0 0.0
  %1493 = vmatprep.subr.mxu0 0.0
  %1494 = vmatpush1.msra.mxu0 0.0
  %1495 = vmatprep.subr.mxu0 0.0
  %1496 = vmatpush1.msra.mxu0 0.0
  %1497 = vmatprep.subr.mxu0 0.0
  %1498 = vmatpush1.msra.mxu0 0.0
  %1499 = vmatprep.subr.mxu0 0.0
  %1500 = vmatpush1.msra.mxu0 0.0
  %1501 = vmatprep.subr.mxu0 0.0
  %1502 = vmatpush1.msra.mxu0 0.0
  %1503 = vmatprep.subr.mxu0 0.0
  %1504 = vmatpush1.msra.mxu0 0.0
  %1505 = vmatprep.subr.mxu0 0.0
  %1506 = vmatpush1.msra.mxu0 0.0
  %1507 = vmatprep.subr.mxu0 0.0
  %1508 = vmatpush1.msra.mxu0 0.0
  %1509 = vmatprep.subr.mxu0 0.0
  %1510 = vmatpush1.msra.mxu0 0.0
  %1511 = vmatprep.subr.mxu0 0.0
  %1512 = vmatpush1.msra.mxu0 0.0
  %1513 = vmatprep.subr.mxu0 0.0
  %1514 = vmatpush1.msra.mxu0 0.0
  %1515 = vmatprep.subr.mxu0 0.0
  %1516 = vmatpush1.msra.mxu0 0.0
  %1517 = vmatprep.subr.mxu0 0.0
  %1518 = vmatpush1.msra.mxu0 0.0
  %1519 = vmatprep.subr.mxu0 0.0
  %1520 = vmatpush1.msra.mxu0 0.0
  %1521 = vmatprep.mubr.f32.mxu0 0.0
  %1522 = vmatmul.mubr.f32.gmra.mrb[0].mxu0 %v1337
  %v1523 = vpop.f32.mrb[0].mxu0
  %v1524 = vadd.f32 0.0, %v1523
  %v1525 = vpop.f32.mrb[0].mxu0
  %1526 = vdwg.mxu0
  %v1527 = vadd.f32 %v1102, %v1453
  %v1528 = vadd.f32 %v1104, %v1455
  %v1529 = vadd.f32 %v1143, %v1524
  %v1533 = vcombine.low %v1527, %v1528
  %v1535 = vunpack.c.l.s4 1983009808
  %v1536 = vunpack.c.0.s8 %v1535
  %v1537 = vlaneseq
  %v1538 = vshrl.u32 %v1537, 7
  %v1539 = vsub.s32 %v1536, %v1538
  %v1540 = vrot.slane %v1533, %v1539
  %v1542 = vunpack.c.l.s4 1983009808
  %v1543 = vunpack.c.0.s8 %v1542
  %v1544 = vlaneseq
  %v1545 = vshrl.u32 %v1544, 7
  %v1546 = vsub.s32 %v1543, %v1545
  %v1547 = vrot.slane %v1529, %v1546
  %v1548 = vcombine.low %v1540, %v1547
  %1550 = vst [vmem:[%s9] sm:$0x3f] %v1548
  // Predicated region
  $region38: #{_lambda_.7} parent=0 // pred_check
    _
  $region39: #{_lambda_.7} parent=0 // pred_check_branch
    %1552 = sbr.rel (0) target = $region41
  $region40: #{_lambda_.7} parent=0 // pred_region
    _
  $region41: #{_lambda_.7} parent=0 // pred_fallthru
    _
  // Predicated region
  $region42: #{_lambda_.7} parent=0 // pred_check
    _
  $region43: #{_lambda_.7} parent=0 // pred_check_branch
    %1554 = sbr.rel (0) target = $region45
  $region44: #{_lambda_.7} parent=0 // pred_region
    _
  $region45: #{_lambda_.7} parent=0 // pred_fallthru
    _

</llo_original>
